<compile_context>
chip_gen: v5e
topology: v5e:2x2
jax: 0.10.0
libtpu: 0.0.40
codegen_flags: <defaults>
</compile_context>

<pallas_src>
import functools

import jax
import jax.numpy as jnp
from jax import lax
from jax.experimental import pallas as pl
from jax.experimental.pallas import tpu as pltpu

# Weight storage dtype.  bf16 halves weight HBM bytes (dominant traffic here);
# set to jnp.float32 to match the fp32 torch reference bit-for-bit numerics.
WDTYPE = jnp.bfloat16

# Preferred tile sizes.  At real scale (d_model=2000, non-multiple of 128) the
# picker falls back to full-dim blocks; on v7x re-derive against 64 MiB VMEM.
TN_PREF = 256
TK_PREF = 128


def _pick_tile(dim, pref):
    """Largest 128-multiple divisor of `dim` that is <= pref, else full dim."""
    if dim % 128 != 0 or dim <= 128:
        return dim
    t = min(pref, dim)
    t -= t % 128
    while dim % t != 0:
        t -= 128
    return t


# ----------------------------- Pallas kernels ------------------------------

def _linear_kernel(x_ref, w_ref, b_ref, o_ref, acc_ref, *, relu):
    """Tiled y = x @ w + b (optional fused ReLU), f32 accumulator."""
    k = pl.program_id(2)

    @pl.when(k == 0)
    def _():
        acc_ref[...] = jnp.zeros_like(acc_ref)

    acc_ref[...] += jnp.dot(x_ref[...].astype(w_ref.dtype), w_ref[...],
                            preferred_element_type=jnp.float32)

    @pl.when(k == pl.num_programs(2) - 1)
    def _():
        y = acc_ref[...] + b_ref[...]
        if relu:
            y = jnp.maximum(y, 0.0)
        o_ref[...] = y


def linear(x, wt, b, *, relu=False):
    """y = x @ wt + b with wt pre-transposed to (K, N); optional fused ReLU."""
    M, K = x.shape
    K2, N = wt.shape
    assert K == K2
    tm = M                      # only S*B = 16 token rows -> keep M whole
    tn = _pick_tile(N, TN_PREF)
    tk = _pick_tile(K, TK_PREF)
    grid = (M // tm, N // tn, K // tk)
    return pl.pallas_call(
        functools.partial(_linear_kernel, relu=relu),
        out_shape=jax.ShapeDtypeStruct((M, N), jnp.float32),
        grid_spec=pltpu.PrefetchScalarGridSpec(
            num_scalar_prefetch=0,
            grid=grid,
            in_specs=[pl.BlockSpec((tm, tk), lambda i, j, k: (i, k)),
                      pl.BlockSpec((tk, tn), lambda i, j, k: (k, j)),
                      pl.BlockSpec((1, tn), lambda i, j, k: (0, j))],
            out_specs=pl.BlockSpec((tm, tn), lambda i, j, k: (i, j)),
            scratch_shapes=[pltpu.VMEM((tm, tn), jnp.float32)]),
        compiler_params=pltpu.CompilerParams(
            dimension_semantics=("parallel", "parallel", "arbitrary")),
    )(x, wt, b)


def _linear_addln_kernel(x_ref, w_ref, b_ref, res_ref, g_ref, bet_ref,
                         o_ref, acc_ref, *, eps):
    """Fused: LayerNorm(res + x @ w + b) over the last dim."""
    k = pl.program_id(1)

    @pl.when(k == 0)
    def _():
        acc_ref[...] = jnp.zeros_like(acc_ref)

    acc_ref[...] += jnp.dot(x_ref[...].astype(w_ref.dtype), w_ref[...],
                            preferred_element_type=jnp.float32)

    @pl.when(k == pl.num_programs(1) - 1)
    def _():
        y = acc_ref[...] + b_ref[...] + res_ref[...]
        mu = jnp.mean(y, axis=-1, keepdims=True)
        c = y - mu
        var = jnp.mean(c * c, axis=-1, keepdims=True)
        o_ref[...] = c * lax.rsqrt(var + eps) * g_ref[...] + bet_ref[...]


def linear_add_layernorm(x, wt, b, res, gamma, beta, *, eps=1e-5):
    """LayerNorm(res + x @ wt + b), torch eps=1e-5 (biased variance)."""
    M, K = x.shape
    _, N = wt.shape
    tm = M
    tk = _pick_tile(K, TK_PREF)
    grid = (M // tm, K // tk)   # N stays whole: LN reduces over the last dim
    return pl.pallas_call(
        functools.partial(_linear_addln_kernel, eps=eps),
        out_shape=jax.ShapeDtypeStruct((M, N), jnp.float32),
        grid_spec=pltpu.PrefetchScalarGridSpec(
            num_scalar_prefetch=0,
            grid=grid,
            in_specs=[pl.BlockSpec((tm, tk), lambda i, k: (i, k)),
                      pl.BlockSpec((tk, N), lambda i, k: (k, 0)),
                      pl.BlockSpec((1, N), lambda i, k: (0, 0)),
                      pl.BlockSpec((tm, N), lambda i, k: (i, 0)),
                      pl.BlockSpec((1, N), lambda i, k: (0, 0)),
                      pl.BlockSpec((1, N), lambda i, k: (0, 0))],
            out_specs=pl.BlockSpec((tm, N), lambda i, k: (i, 0)),
            scratch_shapes=[pltpu.VMEM((tm, N), jnp.float32)]),
        compiler_params=pltpu.CompilerParams(
            dimension_semantics=("parallel", "arbitrary")),
    )(x, wt, b, res, gamma, beta)


def _mha_kernel(qkv_ref, o_ref, *, num_heads, d_model, scale):
    """All heads of one batch per grid step; single lane-dense (S, D) store."""
    H, D = num_heads, d_model
    DH = D // H
    outs = []
    for h in range(H):                       # static loop over heads
        q = qkv_ref[:, h * DH:(h + 1) * DH] * scale          # fold scale into q
        k = qkv_ref[:, D + h * DH:D + (h + 1) * DH]
        v = qkv_ref[:, 2 * D + h * DH:2 * D + (h + 1) * DH]
        # q @ k.T without materializing a transpose.
        s = lax.dot_general(q, k, (((1,), (1,)), ((), ())),
                            preferred_element_type=jnp.float32)   # (S, S)
        m = jnp.max(s, axis=-1, keepdims=True)
        p = jnp.exp(s - m)
        p = p * pl.reciprocal(jnp.sum(p, axis=-1, keepdims=True), approx=True)
        outs.append(jnp.dot(p, v, preferred_element_type=jnp.float32))
    o_ref[...] = jnp.concatenate(outs, axis=-1)              # (S, D) store


def attention(qkv, *, batch, seq, d_model, num_heads):
    """Multi-head self-attention; qkv is the fused (B*S, 3D) projection."""
    BS, threeD = qkv.shape
    assert BS == batch * seq and threeD == 3 * d_model
    scale = 1.0 / float(d_model // num_heads) ** 0.5
    return pl.pallas_call(
        functools.partial(_mha_kernel, num_heads=num_heads,
                          d_model=d_model, scale=scale),
        out_shape=jax.ShapeDtypeStruct((BS, d_model), jnp.float32),
        grid_spec=pltpu.PrefetchScalarGridSpec(
            num_scalar_prefetch=0,
            grid=(batch,),
            in_specs=[pl.BlockSpec((seq, 3 * d_model), lambda b: (b, 0))],
            out_specs=pl.BlockSpec((seq, d_model), lambda b: (b, 0))),
        compiler_params=pltpu.CompilerParams(
            dimension_semantics=("parallel",)),
    )(qkv)


def _linear_logsoftmax_kernel(x_ref, w_ref, b_ref, o_ref):
    """Fused fc3 + log_softmax (exact, max-subtracted)."""
    y = jnp.dot(x_ref[...].astype(w_ref.dtype), w_ref[...],
                preferred_element_type=jnp.float32) + b_ref[...]
    m = jnp.max(y, axis=-1, keepdims=True)
    s = y - m
    lse = jnp.log(jnp.sum(jnp.exp(s), axis=-1, keepdims=True))
    o_ref[...] = s - lse


def linear_log_softmax(x, wt, b):
    M, K = x.shape
    _, N = wt.shape
    tm = M
    return pl.pallas_call(
        _linear_logsoftmax_kernel,
        out_shape=jax.ShapeDtypeStruct((M, N), jnp.float32),
        grid_spec=pltpu.PrefetchScalarGridSpec(
            num_scalar_prefetch=0,
            grid=(M // tm,),
            in_specs=[pl.BlockSpec((tm, K), lambda i: (i, 0)),
                      pl.BlockSpec((K, N), lambda i: (0, 0)),
                      pl.BlockSpec((1, N), lambda i: (0, 0))],
            out_specs=pl.BlockSpec((tm, N), lambda i: (i, 0))),
        compiler_params=pltpu.CompilerParams(
            dimension_semantics=("parallel",)),
    )(x, wt, b)


# ------------------------------ model (glue) -------------------------------

def encoder_layer(xf, p, *, batch, seq, d_model, num_heads):
    """One post-norm nn.TransformerEncoderLayer on (B*S, D) token rows."""
    # TODO(synk): dropout layers are identity here (eval-mode forward).
    qkv = linear(xf, p["in_proj_wT"], p["in_proj_b"])                 # (BS, 3D)
    a = attention(qkv, batch=batch, seq=seq,
                  d_model=d_model, num_heads=num_heads)               # (BS, D)
    x1 = linear_add_layernorm(a, p["out_proj_wT"], p["out_proj_b"],
                              xf, p["ln1_g"], p["ln1_b"])             # LN1(x+MHA)
    h = linear(x1, p["lin1_wT"], p["lin1_b"], relu=True)              # (BS, FF)
    x2 = linear_add_layernorm(h, p["lin2_wT"], p["lin2_b"],
                              x1, p["ln2_g"], p["ln2_b"])             # LN2(x+FF)
    return x2


def transformer_classifier(params, x, *, num_heads):
    S, B, D = x.shape
    # Single (S,B,D)->(B*S,D) transpose so each batch's tokens are contiguous
    # rows; no per-layer reshape/transpose glue after this point.
    xf = x.transpose(1, 0, 2).reshape(B * S, D)
    for lp in params["layers"]:
        xf = encoder_layer(xf, lp, batch=B, seq=S,
                           d_model=D, num_heads=num_heads)
    hf = linear(xf, params["fc1_wT"], params["fc1_b"], relu=True)
    hf = linear(hf, params["fc2_wT"], params["fc2_b"], relu=True)
    out = linear_log_softmax(hf, params["fc3_wT"], params["fc3_b"])
    return out.reshape(B, S, -1).transpose(1, 0, 2)                   # (S, B, C)


def init_params(key, num_layers, d, ff, fc1, fc2, out):
    # Weights stored pre-transposed as (in, out) == torch Linear.weight.T,
    # so no per-call transpose; bf16 storage, f32 biases / LN params.
    def w(k, kin, kout, scale=0.02):
        return (scale * jax.random.normal(k, (kin, kout), jnp.float32)
                ).astype(WDTYPE)

    def zb(n):
        return jnp.zeros((1, n), jnp.float32)

    params = {"layers": []}
    for _ in range(num_layers):
        key, k0, k1, k2, k3 = jax.random.split(key, 5)
        params["layers"].append(dict(
            in_proj_wT=w(k0, d, 3 * d),
            in_proj_b=zb(3 * d),
            out_proj_wT=w(k1, d, d),
            out_proj_b=zb(d),
            lin1_wT=w(k2, d, ff),
            lin1_b=zb(ff),
            lin2_wT=w(k3, ff, d),
            lin2_b=zb(d),
            ln1_g=jnp.ones((1, d), jnp.float32),
            ln1_b=zb(d),
            ln2_g=jnp.ones((1, d), jnp.float32),
            ln2_b=zb(d),
        ))
    key, k1, k2, k3 = jax.random.split(key, 4)
    params["fc1_wT"] = w(k1, d, fc1)
    params["fc1_b"] = zb(fc1)
    params["fc2_wT"] = w(k2, fc1, fc2)
    params["fc2_b"] = zb(fc2)
    params["fc3_wT"] = w(k3, fc2, out)
    params["fc3_b"] = zb(out)
    return params


if __name__ == "__main__":
    # Small, structure-preserving shapes (original: d_model=2000, ff=2000,
    # heads=8, layers=8, fc 2000->1000->500->5).
    S, B = 8, 2
    D, H, FF = 256, 4, 256
    NUM_LAYERS = 8
    FC1, FC2, OUT = 128, 64, 5

    key = jax.random.PRNGKey(0)
    kx, kp = jax.random.split(key)
    x = jax.random.normal(kx, (S, B, D), dtype=jnp.float32)
    params = init_params(kp, NUM_LAYERS, D, FF, FC1, FC2, OUT)

    fwd = jax.jit(functools.partial(transformer_classifier, num_heads=H))
    y = fwd(params, x)
    y = jax.block_until_ready(y)

    assert y.shape == (S, B, OUT)
    assert bool(jnp.all(jnp.isfinite(y)))
    # rows of log_softmax must exp-sum to 1
    assert bool(jnp.allclose(jnp.sum(jnp.exp(y), axis=-1), 1.0, atol=1e-4))
    print("KERNEL_OK")
</pallas_src>

<mosaic_0001>
module attributes {stable_mosaic.version = 11 : i64} {
  func.func @_linear_kernel(%arg0: i32, %arg1: i32, %arg2: i32, %arg3: memref<16x128xf32, #tpu.memory_space<vmem>>, %arg4: memref<128x256xbf16, #tpu.memory_space<vmem>>, %arg5: memref<1x256xf32, #tpu.memory_space<vmem>>, %arg6: memref<16x256xf32, #tpu.memory_space<vmem>>, %arg7: memref<16x256xf32, #tpu.memory_space<vmem>>) attributes {dimension_semantics = [#tpu.dimension_semantics<parallel>, #tpu.dimension_semantics<parallel>, #tpu.dimension_semantics<arbitrary>], iteration_bounds = array<i64: 1, 3, 2>, scalar_prefetch = 0 : i64, scratch_operands = 1 : i64, tpu.core_type = #tpu.core_type<tc>, window_params = [{transform_indices = @transform_0, window_bounds = array<i64: 16, 128>}, {transform_indices = @transform_1, window_bounds = array<i64: 128, 256>}, {transform_indices = @transform_2, window_bounds = array<i64: 1, 256>}, {transform_indices = @transform_3, window_bounds = array<i64: 16, 256>}]} {
    %c0_i32 = arith.constant 0 : i32
    %0 = arith.cmpi eq, %arg2, %c0_i32 : i32
    %1 = arith.extui %0 : i1 to i32
    %c0_i32_0 = arith.constant 0 : i32
    %2 = arith.cmpi ne, %1, %c0_i32_0 : i32
    scf.if %2 {
      %cst_9 = arith.constant 0.000000e+00 : f32
      %13 = vector.broadcast %cst_9 : f32 to vector<16x256xf32>
      %c0_10 = arith.constant 0 : index
      %c0_11 = arith.constant 0 : index
      %14 = vector.load %arg7[%c0_10, %c0_11] : memref<16x256xf32, #tpu.memory_space<vmem>>, vector<16x256xf32>
      tpu.vector_store %arg7[%c0_10, %c0_11], %13 {strides = array<i32>} : memref<16x256xf32, #tpu.memory_space<vmem>>, vector<16x256xf32>,
    } else {
    }
    %c0 = arith.constant 0 : index
    %c0_1 = arith.constant 0 : index
    %3 = vector.load %arg7[%c0, %c0_1] : memref<16x256xf32, #tpu.memory_space<vmem>>, vector<16x256xf32>
    %c0_2 = arith.constant 0 : index
    %c0_3 = arith.constant 0 : index
    %4 = vector.load %arg3[%c0_2, %c0_3] : memref<16x128xf32, #tpu.memory_space<vmem>>, vector<16x128xf32>
    %5 = arith.truncf %4 : vector<16x128xf32> to vector<16x128xbf16>
    %c0_4 = arith.constant 0 : index
    %c0_5 = arith.constant 0 : index
    %6 = vector.load %arg4[%c0_4, %c0_5] : memref<128x256xbf16, #tpu.memory_space<vmem>>, vector<128x256xbf16>
    %cst = arith.constant dense<0.000000e+00> : vector<16x256xf32>
    %7 = tpu.matmul %5, %6, %cst {dimension_numbers = #tpu.dot_dimension_numbers<[1], [0], [0], [1], [0, 0, 1, 1], [], []>} : vector<16x128xbf16>, vector<128x256xbf16>, vector<16x256xf32> -> vector<16x256xf32>
    %8 = arith.addf %3, %7 : vector<16x256xf32>
    %c0_6 = arith.constant 0 : index
    %c0_7 = arith.constant 0 : index
    %9 = vector.load %arg7[%c0_6, %c0_7] : memref<16x256xf32, #tpu.memory_space<vmem>>, vector<16x256xf32>
    tpu.vector_store %arg7[%c0_6, %c0_7], %8 {strides = array<i32>} : memref<16x256xf32, #tpu.memory_space<vmem>>, vector<16x256xf32>,
    %c1_i32 = arith.constant 1 : i32
    %10 = arith.cmpi eq, %arg2, %c1_i32 : i32
    %11 = arith.extui %10 : i1 to i32
    %c0_i32_8 = arith.constant 0 : i32
    %12 = arith.cmpi ne, %11, %c0_i32_8 : i32
    scf.if %12 {
      %c0_9 = arith.constant 0 : index
      %c0_10 = arith.constant 0 : index
      %13 = vector.load %arg7[%c0_9, %c0_10] : memref<16x256xf32, #tpu.memory_space<vmem>>, vector<16x256xf32>
      %c0_11 = arith.constant 0 : index
      %c0_12 = arith.constant 0 : index
      %14 = vector.load %arg5[%c0_11, %c0_12] : memref<1x256xf32, #tpu.memory_space<vmem>>, vector<1x256xf32>
      %15 = vector.broadcast %14 : vector<1x256xf32> to vector<16x256xf32>
      %16 = arith.addf %13, %15 : vector<16x256xf32>
      %c0_13 = arith.constant 0 : index
      %c0_14 = arith.constant 0 : index
      %17 = vector.load %arg6[%c0_13, %c0_14] : memref<16x256xf32, #tpu.memory_space<vmem>>, vector<16x256xf32>
      tpu.vector_store %arg6[%c0_13, %c0_14], %16 {strides = array<i32>} : memref<16x256xf32, #tpu.memory_space<vmem>>, vector<16x256xf32>,
    } else {
    }
    return
  }
  func.func @transform_0(%arg0: i32, %arg1: i32, %arg2: i32) -> (i32, i32) {
    %c0_i32 = arith.constant 0 : i32
    return %arg0, %arg2 : i32, i32
  }
  func.func @transform_1(%arg0: i32, %arg1: i32, %arg2: i32) -> (i32, i32) {
    %c0_i32 = arith.constant 0 : i32
    return %arg2, %arg1 : i32, i32
  }
  func.func @transform_2(%arg0: i32, %arg1: i32, %arg2: i32) -> (i32, i32) {
    %c0_i32 = arith.constant 0 : i32
    %c0_i32_0 = arith.constant 0 : i32
    return %c0_i32, %arg1 : i32, i32
  }
  func.func @transform_3(%arg0: i32, %arg1: i32, %arg2: i32) -> (i32, i32) {
    %c0_i32 = arith.constant 0 : i32
    return %arg0, %arg1 : i32, i32
  }
}

module attributes {stable_mosaic.version = 11 : i64} {
  func.func @_mha_kernel(%arg0: i32, %arg1: memref<8x768xf32, #tpu.memory_space<vmem>>, %arg2: memref<8x256xf32, #tpu.memory_space<vmem>>) attributes {dimension_semantics = [#tpu.dimension_semantics<parallel>], iteration_bounds = array<i64: 2>, scalar_prefetch = 0 : i64, scratch_operands = 0 : i64, tpu.core_type = #tpu.core_type<tc>, window_params = [{transform_indices = @transform_0, window_bounds = array<i64: 8, 768>}, {transform_indices = @transform_1, window_bounds = array<i64: 8, 256>}]} {
    %c0 = arith.constant 0 : index
    %c0_0 = arith.constant 0 : index
    %0 = vector.load %arg1[%c0, %c0_0] : memref<8x768xf32, #tpu.memory_space<vmem>>, vector<8x64xf32>
    %cst = arith.constant 1.250000e-01 : f32
    %1 = vector.broadcast %cst : f32 to vector<8x64xf32>
    %2 = arith.mulf %0, %1 : vector<8x64xf32>
    %c0_1 = arith.constant 0 : index
    %c256 = arith.constant 256 : index
    %3 = vector.load %arg1[%c0_1, %c256] : memref<8x768xf32, #tpu.memory_space<vmem>>, vector<8x64xf32>
    %c0_2 = arith.constant 0 : index
    %c512 = arith.constant 512 : index
    %4 = vector.load %arg1[%c0_2, %c512] : memref<8x768xf32, #tpu.memory_space<vmem>>, vector<8x64xf32>
    %cst_3 = arith.constant dense<0.000000e+00> : vector<8x8xf32>
    %5 = tpu.matmul %2, %3, %cst_3 {dimension_numbers = #tpu.dot_dimension_numbers<[1], [1], [0], [0], [0, 0, 1, 0], [], []>} : vector<8x64xf32>, vector<8x64xf32>, vector<8x8xf32> -> vector<8x8xf32>
    %cst_4 = arith.constant dense<0xFF800000> : vector<8xf32>
    %6 = vector.multi_reduction <maximumf>, %5, %cst_4 [1] : vector<8x8xf32> to vector<8xf32>
    %7 = vector.shape_cast %6 : vector<8xf32> to vector<8x1xf32>
    %8 = vector.broadcast %7 : vector<8x1xf32> to vector<8x8xf32>
    %9 = arith.subf %5, %8 : vector<8x8xf32>
    %10 = math.exp %9 : vector<8x8xf32>
    %cst_5 = arith.constant dense<0.000000e+00> : vector<8xf32>
    %11 = vector.multi_reduction <add>, %10, %cst_5 [1] : vector<8x8xf32> to vector<8xf32>
    %12 = vector.shape_cast %11 : vector<8xf32> to vector<8x1xf32>
    %13 = tpu.reciprocal %12 {approx = true} : vector<8x1xf32> -> vector<8x1xf32>
    %14 = vector.broadcast %13 : vector<8x1xf32> to vector<8x8xf32>
    %15 = arith.mulf %10, %14 : vector<8x8xf32>
    %cst_6 = arith.constant dense<0.000000e+00> : vector<8x64xf32>
    %16 = tpu.matmul %15, %4, %cst_6 {dimension_numbers = #tpu.dot_dimension_numbers<[1], [0], [0], [1], [0, 0, 1, 1], [], []>} : vector<8x8xf32>, vector<8x64xf32>, vector<8x64xf32> -> vector<8x64xf32>
    %c0_7 = arith.constant 0 : index
    %c64 = arith.constant 64 : index
    %17 = vector.load %arg1[%c0_7, %c64] : memref<8x768xf32, #tpu.memory_space<vmem>>, vector<8x64xf32>
    %cst_8 = arith.constant 1.250000e-01 : f32
    %18 = vector.broadcast %cst_8 : f32 to vector<8x64xf32>
    %19 = arith.mulf %17, %18 : vector<8x64xf32>
    %c0_9 = arith.constant 0 : index
    %c320 = arith.constant 320 : index
    %20 = vector.load %arg1[%c0_9, %c320] : memref<8x768xf32, #tpu.memory_space<vmem>>, vector<8x64xf32>
    %c0_10 = arith.constant 0 : index
    %c576 = arith.constant 576 : index
    %21 = vector.load %arg1[%c0_10, %c576] : memref<8x768xf32, #tpu.memory_space<vmem>>, vector<8x64xf32>
    %cst_11 = arith.constant dense<0.000000e+00> : vector<8x8xf32>
    %22 = tpu.matmul %19, %20, %cst_11 {dimension_numbers = #tpu.dot_dimension_numbers<[1], [1], [0], [0], [0, 0, 1, 0], [], []>} : vector<8x64xf32>, vector<8x64xf32>, vector<8x8xf32> -> vector<8x8xf32>
    %cst_12 = arith.constant dense<0xFF800000> : vector<8xf32>
    %23 = vector.multi_reduction <maximumf>, %22, %cst_12 [1] : vector<8x8xf32> to vector<8xf32>
    %24 = vector.shape_cast %23 : vector<8xf32> to vector<8x1xf32>
    %25 = vector.broadcast %24 : vector<8x1xf32> to vector<8x8xf32>
    %26 = arith.subf %22, %25 : vector<8x8xf32>
    %27 = math.exp %26 : vector<8x8xf32>
    %cst_13 = arith.constant dense<0.000000e+00> : vector<8xf32>
    %28 = vector.multi_reduction <add>, %27, %cst_13 [1] : vector<8x8xf32> to vector<8xf32>
    %29 = vector.shape_cast %28 : vector<8xf32> to vector<8x1xf32>
    %30 = tpu.reciprocal %29 {approx = true} : vector<8x1xf32> -> vector<8x1xf32>
    %31 = vector.broadcast %30 : vector<8x1xf32> to vector<8x8xf32>
    %32 = arith.mulf %27, %31 : vector<8x8xf32>
    %cst_14 = arith.constant dense<0.000000e+00> : vector<8x64xf32>
    %33 = tpu.matmul %32, %21, %cst_14 {dimension_numbers = #tpu.dot_dimension_numbers<[1], [0], [0], [1], [0, 0, 1, 1], [], []>} : vector<8x8xf32>, vector<8x64xf32>, vector<8x64xf32> -> vector<8x64xf32>
    %c0_15 = arith.constant 0 : index
    %c128 = arith.constant 128 : index
    %34 = vector.load %arg1[%c0_15, %c128] : memref<8x768xf32, #tpu.memory_space<vmem>>, vector<8x64xf32>
    %cst_16 = arith.constant 1.250000e-01 : f32
    %35 = vector.broadcast %cst_16 : f32 to vector<8x64xf32>
    %36 = arith.mulf %34, %35 : vector<8x64xf32>
    %c0_17 = arith.constant 0 : index
    %c384 = arith.constant 384 : index
    %37 = vector.load %arg1[%c0_17, %c384] : memref<8x768xf32, #tpu.memory_space<vmem>>, vector<8x64xf32>
    %c0_18 = arith.constant 0 : index
    %c640 = arith.constant 640 : index
    %38 = vector.load %arg1[%c0_18, %c640] : memref<8x768xf32, #tpu.memory_space<vmem>>, vector<8x64xf32>
    %cst_19 = arith.constant dense<0.000000e+00> : vector<8x8xf32>
    %39 = tpu.matmul %36, %37, %cst_19 {dimension_numbers = #tpu.dot_dimension_numbers<[1], [1], [0], [0], [0, 0, 1, 0], [], []>} : vector<8x64xf32>, vector<8x64xf32>, vector<8x8xf32> -> vector<8x8xf32>
    %cst_20 = arith.constant dense<0xFF800000> : vector<8xf32>
    %40 = vector.multi_reduction <maximumf>, %39, %cst_20 [1] : vector<8x8xf32> to vector<8xf32>
    %41 = vector.shape_cast %40 : vector<8xf32> to vector<8x1xf32>
    %42 = vector.broadcast %41 : vector<8x1xf32> to vector<8x8xf32>
    %43 = arith.subf %39, %42 : vector<8x8xf32>
    %44 = math.exp %43 : vector<8x8xf32>
    %cst_21 = arith.constant dense<0.000000e+00> : vector<8xf32>
    %45 = vector.multi_reduction <add>, %44, %cst_21 [1] : vector<8x8xf32> to vector<8xf32>
    %46 = vector.shape_cast %45 : vector<8xf32> to vector<8x1xf32>
    %47 = tpu.reciprocal %46 {approx = true} : vector<8x1xf32> -> vector<8x1xf32>
    %48 = vector.broadcast %47 : vector<8x1xf32> to vector<8x8xf32>
    %49 = arith.mulf %44, %48 : vector<8x8xf32>
    %cst_22 = arith.constant dense<0.000000e+00> : vector<8x64xf32>
    %50 = tpu.matmul %49, %38, %cst_22 {dimension_numbers = #tpu.dot_dimension_numbers<[1], [0], [0], [1], [0, 0, 1, 1], [], []>} : vector<8x8xf32>, vector<8x64xf32>, vector<8x64xf32> -> vector<8x64xf32>
    %c0_23 = arith.constant 0 : index
    %c192 = arith.constant 192 : index
    %51 = vector.load %arg1[%c0_23, %c192] : memref<8x768xf32, #tpu.memory_space<vmem>>, vector<8x64xf32>
    %cst_24 = arith.constant 1.250000e-01 : f32
    %52 = vector.broadcast %cst_24 : f32 to vector<8x64xf32>
    %53 = arith.mulf %51, %52 : vector<8x64xf32>
    %c0_25 = arith.constant 0 : index
    %c448 = arith.constant 448 : index
    %54 = vector.load %arg1[%c0_25, %c448] : memref<8x768xf32, #tpu.memory_space<vmem>>, vector<8x64xf32>
    %c0_26 = arith.constant 0 : index
    %c704 = arith.constant 704 : index
    %55 = vector.load %arg1[%c0_26, %c704] : memref<8x768xf32, #tpu.memory_space<vmem>>, vector<8x64xf32>
    %cst_27 = arith.constant dense<0.000000e+00> : vector<8x8xf32>
    %56 = tpu.matmul %53, %54, %cst_27 {dimension_numbers = #tpu.dot_dimension_numbers<[1], [1], [0], [0], [0, 0, 1, 0], [], []>} : vector<8x64xf32>, vector<8x64xf32>, vector<8x8xf32> -> vector<8x8xf32>
    %cst_28 = arith.constant dense<0xFF800000> : vector<8xf32>
    %57 = vector.multi_reduction <maximumf>, %56, %cst_28 [1] : vector<8x8xf32> to vector<8xf32>
    %58 = vector.shape_cast %57 : vector<8xf32> to vector<8x1xf32>
    %59 = vector.broadcast %58 : vector<8x1xf32> to vector<8x8xf32>
    %60 = arith.subf %56, %59 : vector<8x8xf32>
    %61 = math.exp %60 : vector<8x8xf32>
    %cst_29 = arith.constant dense<0.000000e+00> : vector<8xf32>
    %62 = vector.multi_reduction <add>, %61, %cst_29 [1] : vector<8x8xf32> to vector<8xf32>
    %63 = vector.shape_cast %62 : vector<8xf32> to vector<8x1xf32>
    %64 = tpu.reciprocal %63 {approx = true} : vector<8x1xf32> -> vector<8x1xf32>
    %65 = vector.broadcast %64 : vector<8x1xf32> to vector<8x8xf32>
    %66 = arith.mulf %61, %65 : vector<8x8xf32>
    %cst_30 = arith.constant dense<0.000000e+00> : vector<8x64xf32>
    %67 = tpu.matmul %66, %55, %cst_30 {dimension_numbers = #tpu.dot_dimension_numbers<[1], [0], [0], [1], [0, 0, 1, 1], [], []>} : vector<8x8xf32>, vector<8x64xf32>, vector<8x64xf32> -> vector<8x64xf32>
    %68 = tpu.concatenate %16, %33, %50, %67 in 1 : vector<8x64xf32>, vector<8x64xf32>, vector<8x64xf32>, vector<8x64xf32> -> vector<8x256xf32>
    %c0_31 = arith.constant 0 : index
    %c0_32 = arith.constant 0 : index
    %69 = vector.load %arg2[%c0_31, %c0_32] : memref<8x256xf32, #tpu.memory_space<vmem>>, vector<8x256xf32>
    tpu.vector_store %arg2[%c0_31, %c0_32], %68 {strides = array<i32>} : memref<8x256xf32, #tpu.memory_space<vmem>>, vector<8x256xf32>,
    return
  }
  func.func @transform_0(%arg0: i32) -> (i32, i32) {
    %c0_i32 = arith.constant 0 : i32
    %c0_i32_0 = arith.constant 0 : i32
    return %arg0, %c0_i32 : i32, i32
  }
  func.func @transform_1(%arg0: i32) -> (i32, i32) {
    %c0_i32 = arith.constant 0 : i32
    %c0_i32_0 = arith.constant 0 : i32
    return %arg0, %c0_i32 : i32, i32
  }
}

module attributes {stable_mosaic.version = 11 : i64} {
  func.func @_linear_addln_kernel(%arg0: i32, %arg1: i32, %arg2: memref<16x128xf32, #tpu.memory_space<vmem>>, %arg3: memref<128x256xbf16, #tpu.memory_space<vmem>>, %arg4: memref<1x256xf32, #tpu.memory_space<vmem>>, %arg5: memref<16x256xf32, #tpu.memory_space<vmem>>, %arg6: memref<1x256xf32, #tpu.memory_space<vmem>>, %arg7: memref<1x256xf32, #tpu.memory_space<vmem>>, %arg8: memref<16x256xf32, #tpu.memory_space<vmem>>, %arg9: memref<16x256xf32, #tpu.memory_space<vmem>>) attributes {dimension_semantics = [#tpu.dimension_semantics<parallel>, #tpu.dimension_semantics<arbitrary>], iteration_bounds = array<i64: 1, 2>, scalar_prefetch = 0 : i64, scratch_operands = 1 : i64, tpu.core_type = #tpu.core_type<tc>, window_params = [{transform_indices = @transform_0, window_bounds = array<i64: 16, 128>}, {transform_indices = @transform_1, window_bounds = array<i64: 128, 256>}, {pipeline_mode = #tpu.pipeline_mode<synchronous>, transform_indices = @transform_2, window_bounds = array<i64: 1, 256>}, {transform_indices = @transform_3, window_bounds = array<i64: 16, 256>}, {pipeline_mode = #tpu.pipeline_mode<synchronous>, transform_indices = @transform_4, window_bounds = array<i64: 1, 256>}, {pipeline_mode = #tpu.pipeline_mode<synchronous>, transform_indices = @transform_5, window_bounds = array<i64: 1, 256>}, {transform_indices = @transform_6, window_bounds = array<i64: 16, 256>}]} {
    %c0_i32 = arith.constant 0 : i32
    %0 = arith.cmpi eq, %arg1, %c0_i32 : i32
    %1 = arith.extui %0 : i1 to i32
    %c0_i32_0 = arith.constant 0 : i32
    %2 = arith.cmpi ne, %1, %c0_i32_0 : i32
    scf.if %2 {
      %cst_9 = arith.constant 0.000000e+00 : f32
      %13 = vector.broadcast %cst_9 : f32 to vector<16x256xf32>
      %c0_10 = arith.constant 0 : index
      %c0_11 = arith.constant 0 : index
      %14 = vector.load %arg9[%c0_10, %c0_11] : memref<16x256xf32, #tpu.memory_space<vmem>>, vector<16x256xf32>
      tpu.vector_store %arg9[%c0_10, %c0_11], %13 {strides = array<i32>} : memref<16x256xf32, #tpu.memory_space<vmem>>, vector<16x256xf32>,
    } else {
    }
    %c0 = arith.constant 0 : index
    %c0_1 = arith.constant 0 : index
    %3 = vector.load %arg9[%c0, %c0_1] : memref<16x256xf32, #tpu.memory_space<vmem>>, vector<16x256xf32>
    %c0_2 = arith.constant 0 : index
    %c0_3 = arith.constant 0 : index
    %4 = vector.load %arg2[%c0_2, %c0_3] : memref<16x128xf32, #tpu.memory_space<vmem>>, vector<16x128xf32>
    %5 = arith.truncf %4 : vector<16x128xf32> to vector<16x128xbf16>
    %c0_4 = arith.constant 0 : index
    %c0_5 = arith.constant 0 : index
    %6 = vector.load %arg3[%c0_4, %c0_5] : memref<128x256xbf16, #tpu.memory_space<vmem>>, vector<128x256xbf16>
    %cst = arith.constant dense<0.000000e+00> : vector<16x256xf32>
    %7 = tpu.matmul %5, %6, %cst {dimension_numbers = #tpu.dot_dimension_numbers<[1], [0], [0], [1], [0, 0, 1, 1], [], []>} : vector<16x128xbf16>, vector<128x256xbf16>, vector<16x256xf32> -> vector<16x256xf32>
    %8 = arith.addf %3, %7 : vector<16x256xf32>
    %c0_6 = arith.constant 0 : index
    %c0_7 = arith.constant 0 : index
    %9 = vector.load %arg9[%c0_6, %c0_7] : memref<16x256xf32, #tpu.memory_space<vmem>>, vector<16x256xf32>
    tpu.vector_store %arg9[%c0_6, %c0_7], %8 {strides = array<i32>} : memref<16x256xf32, #tpu.memory_space<vmem>>, vector<16x256xf32>,
    %c1_i32 = arith.constant 1 : i32
    %10 = arith.cmpi eq, %arg1, %c1_i32 : i32
    %11 = arith.extui %10 : i1 to i32
    %c0_i32_8 = arith.constant 0 : i32
    %12 = arith.cmpi ne, %11, %c0_i32_8 : i32
    scf.if %12 {
      %c0_9 = arith.constant 0 : index
      %c0_10 = arith.constant 0 : index
      %13 = vector.load %arg9[%c0_9, %c0_10] : memref<16x256xf32, #tpu.memory_space<vmem>>, vector<16x256xf32>
      %c0_11 = arith.constant 0 : index
      %c0_12 = arith.constant 0 : index
      %14 = vector.load %arg4[%c0_11, %c0_12] : memref<1x256xf32, #tpu.memory_space<vmem>>, vector<1x256xf32>
      %15 = vector.broadcast %14 : vector<1x256xf32> to vector<16x256xf32>
      %16 = arith.addf %13, %15 : vector<16x256xf32>
      %c0_13 = arith.constant 0 : index
      %c0_14 = arith.constant 0 : index
      %17 = vector.load %arg5[%c0_13, %c0_14] : memref<16x256xf32, #tpu.memory_space<vmem>>, vector<16x256xf32>
      %18 = arith.addf %16, %17 : vector<16x256xf32>
      %cst_15 = arith.constant dense<0.000000e+00> : vector<16xf32>
      %19 = vector.multi_reduction <add>, %18, %cst_15 [1] : vector<16x256xf32> to vector<16xf32>
      %20 = vector.shape_cast %19 : vector<16xf32> to vector<16x1xf32>
      %cst_16 = arith.constant 2.560000e+02 : f32
      %21 = vector.broadcast %cst_16 : f32 to vector<16x1xf32>
      %22 = arith.divf %20, %21 : vector<16x1xf32>
      %23 = vector.broadcast %22 : vector<16x1xf32> to vector<16x256xf32>
      %24 = arith.subf %18, %23 : vector<16x256xf32>
      %25 = arith.mulf %24, %24 : vector<16x256xf32>
      %cst_17 = arith.constant dense<0.000000e+00> : vector<16xf32>
      %26 = vector.multi_reduction <add>, %25, %cst_17 [1] : vector<16x256xf32> to vector<16xf32>
      %27 = vector.shape_cast %26 : vector<16xf32> to vector<16x1xf32>
      %cst_18 = arith.constant 2.560000e+02 : f32
      %28 = vector.broadcast %cst_18 : f32 to vector<16x1xf32>
      %29 = arith.divf %27, %28 : vector<16x1xf32>
      %cst_19 = arith.constant 9.99999974E-6 : f32
      %30 = vector.broadcast %cst_19 : f32 to vector<16x1xf32>
      %31 = arith.addf %29, %30 : vector<16x1xf32>
      %32 = math.rsqrt %31 : vector<16x1xf32>
      %33 = vector.broadcast %32 : vector<16x1xf32> to vector<16x256xf32>
      %34 = arith.mulf %24, %33 : vector<16x256xf32>
      %c0_20 = arith.constant 0 : index
      %c0_21 = arith.constant 0 : index
      %35 = vector.load %arg6[%c0_20, %c0_21] : memref<1x256xf32, #tpu.memory_space<vmem>>, vector<1x256xf32>
      %36 = vector.broadcast %35 : vector<1x256xf32> to vector<16x256xf32>
      %37 = arith.mulf %34, %36 : vector<16x256xf32>
      %c0_22 = arith.constant 0 : index
      %c0_23 = arith.constant 0 : index
      %38 = vector.load %arg7[%c0_22, %c0_23] : memref<1x256xf32, #tpu.memory_space<vmem>>, vector<1x256xf32>
      %39 = vector.broadcast %38 : vector<1x256xf32> to vector<16x256xf32>
      %40 = arith.addf %37, %39 : vector<16x256xf32>
      %c0_24 = arith.constant 0 : index
      %c0_25 = arith.constant 0 : index
      %41 = vector.load %arg8[%c0_24, %c0_25] : memref<16x256xf32, #tpu.memory_space<vmem>>, vector<16x256xf32>
      tpu.vector_store %arg8[%c0_24, %c0_25], %40 {strides = array<i32>} : memref<16x256xf32, #tpu.memory_space<vmem>>, vector<16x256xf32>,
    } else {
    }
    return
  }
  func.func @transform_0(%arg0: i32, %arg1: i32) -> (i32, i32) {
    %c0_i32 = arith.constant 0 : i32
    return %arg0, %arg1 : i32, i32
  }
  func.func @transform_1(%arg0: i32, %arg1: i32) -> (i32, i32) {
    %c0_i32 = arith.constant 0 : i32
    %c0_i32_0 = arith.constant 0 : i32
    return %arg1, %c0_i32 : i32, i32
  }
  func.func @transform_2(%arg0: i32, %arg1: i32) -> (i32, i32) {
    %c0_i32 = arith.constant 0 : i32
    %c0_i32_0 = arith.constant 0 : i32
    %c0_i32_1 = arith.constant 0 : i32
    return %c0_i32, %c0_i32_0 : i32, i32
  }
  func.func @transform_3(%arg0: i32, %arg1: i32) -> (i32, i32) {
    %c0_i32 = arith.constant 0 : i32
    %c0_i32_0 = arith.constant 0 : i32
    return %arg0, %c0_i32 : i32, i32
  }
  func.func @transform_4(%arg0: i32, %arg1: i32) -> (i32, i32) {
    %c0_i32 = arith.constant 0 : i32
    %c0_i32_0 = arith.constant 0 : i32
    %c0_i32_1 = arith.constant 0 : i32
    return %c0_i32, %c0_i32_0 : i32, i32
  }
  func.func @transform_5(%arg0: i32, %arg1: i32) -> (i32, i32) {
    %c0_i32 = arith.constant 0 : i32
    %c0_i32_0 = arith.constant 0 : i32
    %c0_i32_1 = arith.constant 0 : i32
    return %c0_i32, %c0_i32_0 : i32, i32
  }
  func.func @transform_6(%arg0: i32, %arg1: i32) -> (i32, i32) {
    %c0_i32 = arith.constant 0 : i32
    %c0_i32_0 = arith.constant 0 : i32
    return %arg0, %c0_i32 : i32, i32
  }
}

module attributes {stable_mosaic.version = 11 : i64} {
  func.func @_linear_kernel(%arg0: i32, %arg1: i32, %arg2: i32, %arg3: memref<16x128xf32, #tpu.memory_space<vmem>>, %arg4: memref<128x256xbf16, #tpu.memory_space<vmem>>, %arg5: memref<1x256xf32, #tpu.memory_space<vmem>>, %arg6: memref<16x256xf32, #tpu.memory_space<vmem>>, %arg7: memref<16x256xf32, #tpu.memory_space<vmem>>) attributes {dimension_semantics = [#tpu.dimension_semantics<parallel>, #tpu.dimension_semantics<parallel>, #tpu.dimension_semantics<arbitrary>], iteration_bounds = array<i64: 1, 1, 2>, scalar_prefetch = 0 : i64, scratch_operands = 1 : i64, tpu.core_type = #tpu.core_type<tc>, window_params = [{transform_indices = @transform_0, window_bounds = array<i64: 16, 128>}, {transform_indices = @transform_1, window_bounds = array<i64: 128, 256>}, {transform_indices = @transform_2, window_bounds = array<i64: 1, 256>}, {transform_indices = @transform_3, window_bounds = array<i64: 16, 256>}]} {
    %c0_i32 = arith.constant 0 : i32
    %0 = arith.cmpi eq, %arg2, %c0_i32 : i32
    %1 = arith.extui %0 : i1 to i32
    %c0_i32_0 = arith.constant 0 : i32
    %2 = arith.cmpi ne, %1, %c0_i32_0 : i32
    scf.if %2 {
      %cst_9 = arith.constant 0.000000e+00 : f32
      %13 = vector.broadcast %cst_9 : f32 to vector<16x256xf32>
      %c0_10 = arith.constant 0 : index
      %c0_11 = arith.constant 0 : index
      %14 = vector.load %arg7[%c0_10, %c0_11] : memref<16x256xf32, #tpu.memory_space<vmem>>, vector<16x256xf32>
      tpu.vector_store %arg7[%c0_10, %c0_11], %13 {strides = array<i32>} : memref<16x256xf32, #tpu.memory_space<vmem>>, vector<16x256xf32>,
    } else {
    }
    %c0 = arith.constant 0 : index
    %c0_1 = arith.constant 0 : index
    %3 = vector.load %arg7[%c0, %c0_1] : memref<16x256xf32, #tpu.memory_space<vmem>>, vector<16x256xf32>
    %c0_2 = arith.constant 0 : index
    %c0_3 = arith.constant 0 : index
    %4 = vector.load %arg3[%c0_2, %c0_3] : memref<16x128xf32, #tpu.memory_space<vmem>>, vector<16x128xf32>
    %5 = arith.truncf %4 : vector<16x128xf32> to vector<16x128xbf16>
    %c0_4 = arith.constant 0 : index
    %c0_5 = arith.constant 0 : index
    %6 = vector.load %arg4[%c0_4, %c0_5] : memref<128x256xbf16, #tpu.memory_space<vmem>>, vector<128x256xbf16>
    %cst = arith.constant dense<0.000000e+00> : vector<16x256xf32>
    %7 = tpu.matmul %5, %6, %cst {dimension_numbers = #tpu.dot_dimension_numbers<[1], [0], [0], [1], [0, 0, 1, 1], [], []>} : vector<16x128xbf16>, vector<128x256xbf16>, vector<16x256xf32> -> vector<16x256xf32>
    %8 = arith.addf %3, %7 : vector<16x256xf32>
    %c0_6 = arith.constant 0 : index
    %c0_7 = arith.constant 0 : index
    %9 = vector.load %arg7[%c0_6, %c0_7] : memref<16x256xf32, #tpu.memory_space<vmem>>, vector<16x256xf32>
    tpu.vector_store %arg7[%c0_6, %c0_7], %8 {strides = array<i32>} : memref<16x256xf32, #tpu.memory_space<vmem>>, vector<16x256xf32>,
    %c1_i32 = arith.constant 1 : i32
    %10 = arith.cmpi eq, %arg2, %c1_i32 : i32
    %11 = arith.extui %10 : i1 to i32
    %c0_i32_8 = arith.constant 0 : i32
    %12 = arith.cmpi ne, %11, %c0_i32_8 : i32
    scf.if %12 {
      %c0_9 = arith.constant 0 : index
      %c0_10 = arith.constant 0 : index
      %13 = vector.load %arg7[%c0_9, %c0_10] : memref<16x256xf32, #tpu.memory_space<vmem>>, vector<16x256xf32>
      %c0_11 = arith.constant 0 : index
      %c0_12 = arith.constant 0 : index
      %14 = vector.load %arg5[%c0_11, %c0_12] : memref<1x256xf32, #tpu.memory_space<vmem>>, vector<1x256xf32>
      %15 = vector.broadcast %14 : vector<1x256xf32> to vector<16x256xf32>
      %16 = arith.addf %13, %15 : vector<16x256xf32>
      %cst_13 = arith.constant 0.000000e+00 : f32
      %17 = vector.broadcast %cst_13 : f32 to vector<16x256xf32>
      %18 = arith.maximumf %16, %17 : vector<16x256xf32>
      %c0_14 = arith.constant 0 : index
      %c0_15 = arith.constant 0 : index
      %19 = vector.load %arg6[%c0_14, %c0_15] : memref<16x256xf32, #tpu.memory_space<vmem>>, vector<16x256xf32>
      tpu.vector_store %arg6[%c0_14, %c0_15], %18 {strides = array<i32>} : memref<16x256xf32, #tpu.memory_space<vmem>>, vector<16x256xf32>,
    } else {
    }
    return
  }
  func.func @transform_0(%arg0: i32, %arg1: i32, %arg2: i32) -> (i32, i32) {
    %c0_i32 = arith.constant 0 : i32
    return %arg0, %arg2 : i32, i32
  }
  func.func @transform_1(%arg0: i32, %arg1: i32, %arg2: i32) -> (i32, i32) {
    %c0_i32 = arith.constant 0 : i32
    return %arg2, %arg1 : i32, i32
  }
  func.func @transform_2(%arg0: i32, %arg1: i32, %arg2: i32) -> (i32, i32) {
    %c0_i32 = arith.constant 0 : i32
    %c0_i32_0 = arith.constant 0 : i32
    return %c0_i32, %arg1 : i32, i32
  }
  func.func @transform_3(%arg0: i32, %arg1: i32, %arg2: i32) -> (i32, i32) {
    %c0_i32 = arith.constant 0 : i32
    return %arg0, %arg1 : i32, i32
  }
}

module attributes {stable_mosaic.version = 11 : i64} {
  func.func @_linear_kernel(%arg0: i32, %arg1: i32, %arg2: i32, %arg3: memref<16x128xf32, #tpu.memory_space<vmem>>, %arg4: memref<128x128xbf16, #tpu.memory_space<vmem>>, %arg5: memref<1x128xf32, #tpu.memory_space<vmem>>, %arg6: memref<16x128xf32, #tpu.memory_space<vmem>>, %arg7: memref<16x128xf32, #tpu.memory_space<vmem>>) attributes {dimension_semantics = [#tpu.dimension_semantics<parallel>, #tpu.dimension_semantics<parallel>, #tpu.dimension_semantics<arbitrary>], iteration_bounds = array<i64: 1, 1, 2>, scalar_prefetch = 0 : i64, scratch_operands = 1 : i64, tpu.core_type = #tpu.core_type<tc>, window_params = [{transform_indices = @transform_0, window_bounds = array<i64: 16, 128>}, {transform_indices = @transform_1, window_bounds = array<i64: 128, 128>}, {transform_indices = @transform_2, window_bounds = array<i64: 1, 128>}, {transform_indices = @transform_3, window_bounds = array<i64: 16, 128>}]} {
    %c0_i32 = arith.constant 0 : i32
    %0 = arith.cmpi eq, %arg2, %c0_i32 : i32
    %1 = arith.extui %0 : i1 to i32
    %c0_i32_0 = arith.constant 0 : i32
    %2 = arith.cmpi ne, %1, %c0_i32_0 : i32
    scf.if %2 {
      %cst_9 = arith.constant 0.000000e+00 : f32
      %13 = vector.broadcast %cst_9 : f32 to vector<16x128xf32>
      %c0_10 = arith.constant 0 : index
      %c0_11 = arith.constant 0 : index
      %14 = vector.load %arg7[%c0_10, %c0_11] : memref<16x128xf32, #tpu.memory_space<vmem>>, vector<16x128xf32>
      tpu.vector_store %arg7[%c0_10, %c0_11], %13 {strides = array<i32>} : memref<16x128xf32, #tpu.memory_space<vmem>>, vector<16x128xf32>,
    } else {
    }
    %c0 = arith.constant 0 : index
    %c0_1 = arith.constant 0 : index
    %3 = vector.load %arg7[%c0, %c0_1] : memref<16x128xf32, #tpu.memory_space<vmem>>, vector<16x128xf32>
    %c0_2 = arith.constant 0 : index
    %c0_3 = arith.constant 0 : index
    %4 = vector.load %arg3[%c0_2, %c0_3] : memref<16x128xf32, #tpu.memory_space<vmem>>, vector<16x128xf32>
    %5 = arith.truncf %4 : vector<16x128xf32> to vector<16x128xbf16>
    %c0_4 = arith.constant 0 : index
    %c0_5 = arith.constant 0 : index
    %6 = vector.load %arg4[%c0_4, %c0_5] : memref<128x128xbf16, #tpu.memory_space<vmem>>, vector<128x128xbf16>
    %cst = arith.constant dense<0.000000e+00> : vector<16x128xf32>
    %7 = tpu.matmul %5, %6, %cst {dimension_numbers = #tpu.dot_dimension_numbers<[1], [0], [0], [1], [0, 0, 1, 1], [], []>} : vector<16x128xbf16>, vector<128x128xbf16>, vector<16x128xf32> -> vector<16x128xf32>
    %8 = arith.addf %3, %7 : vector<16x128xf32>
    %c0_6 = arith.constant 0 : index
    %c0_7 = arith.constant 0 : index
    %9 = vector.load %arg7[%c0_6, %c0_7] : memref<16x128xf32, #tpu.memory_space<vmem>>, vector<16x128xf32>
    tpu.vector_store %arg7[%c0_6, %c0_7], %8 {strides = array<i32>} : memref<16x128xf32, #tpu.memory_space<vmem>>, vector<16x128xf32>,
    %c1_i32 = arith.constant 1 : i32
    %10 = arith.cmpi eq, %arg2, %c1_i32 : i32
    %11 = arith.extui %10 : i1 to i32
    %c0_i32_8 = arith.constant 0 : i32
    %12 = arith.cmpi ne, %11, %c0_i32_8 : i32
    scf.if %12 {
      %c0_9 = arith.constant 0 : index
      %c0_10 = arith.constant 0 : index
      %13 = vector.load %arg7[%c0_9, %c0_10] : memref<16x128xf32, #tpu.memory_space<vmem>>, vector<16x128xf32>
      %c0_11 = arith.constant 0 : index
      %c0_12 = arith.constant 0 : index
      %14 = vector.load %arg5[%c0_11, %c0_12] : memref<1x128xf32, #tpu.memory_space<vmem>>, vector<1x128xf32>
      %15 = vector.broadcast %14 : vector<1x128xf32> to vector<16x128xf32>
      %16 = arith.addf %13, %15 : vector<16x128xf32>
      %cst_13 = arith.constant 0.000000e+00 : f32
      %17 = vector.broadcast %cst_13 : f32 to vector<16x128xf32>
      %18 = arith.maximumf %16, %17 : vector<16x128xf32>
      %c0_14 = arith.constant 0 : index
      %c0_15 = arith.constant 0 : index
      %19 = vector.load %arg6[%c0_14, %c0_15] : memref<16x128xf32, #tpu.memory_space<vmem>>, vector<16x128xf32>
      tpu.vector_store %arg6[%c0_14, %c0_15], %18 {strides = array<i32>} : memref<16x128xf32, #tpu.memory_space<vmem>>, vector<16x128xf32>,
    } else {
    }
    return
  }
  func.func @transform_0(%arg0: i32, %arg1: i32, %arg2: i32) -> (i32, i32) {
    %c0_i32 = arith.constant 0 : i32
    return %arg0, %arg2 : i32, i32
  }
  func.func @transform_1(%arg0: i32, %arg1: i32, %arg2: i32) -> (i32, i32) {
    %c0_i32 = arith.constant 0 : i32
    return %arg2, %arg1 : i32, i32
  }
  func.func @transform_2(%arg0: i32, %arg1: i32, %arg2: i32) -> (i32, i32) {
    %c0_i32 = arith.constant 0 : i32
    %c0_i32_0 = arith.constant 0 : i32
    return %c0_i32, %arg1 : i32, i32
  }
  func.func @transform_3(%arg0: i32, %arg1: i32, %arg2: i32) -> (i32, i32) {
    %c0_i32 = arith.constant 0 : i32
    return %arg0, %arg1 : i32, i32
  }
}

module attributes {stable_mosaic.version = 11 : i64} {
  func.func @_linear_kernel(%arg0: i32, %arg1: i32, %arg2: i32, %arg3: memref<16x128xf32, #tpu.memory_space<vmem>>, %arg4: memref<128x64xbf16, #tpu.memory_space<vmem>>, %arg5: memref<1x64xf32, #tpu.memory_space<vmem>>, %arg6: memref<16x64xf32, #tpu.memory_space<vmem>>, %arg7: memref<16x64xf32, #tpu.memory_space<vmem>>) attributes {dimension_semantics = [#tpu.dimension_semantics<parallel>, #tpu.dimension_semantics<parallel>, #tpu.dimension_semantics<arbitrary>], iteration_bounds = array<i64: 1, 1, 1>, scalar_prefetch = 0 : i64, scratch_operands = 1 : i64, tpu.core_type = #tpu.core_type<tc>, window_params = [{transform_indices = @transform_0, window_bounds = array<i64: 16, 128>}, {transform_indices = @transform_1, window_bounds = array<i64: 128, 64>}, {transform_indices = @transform_2, window_bounds = array<i64: 1, 64>}, {transform_indices = @transform_3, window_bounds = array<i64: 16, 64>}]} {
    %c0_i32 = arith.constant 0 : i32
    %0 = arith.cmpi eq, %arg2, %c0_i32 : i32
    %1 = arith.extui %0 : i1 to i32
    %c0_i32_0 = arith.constant 0 : i32
    %2 = arith.cmpi ne, %1, %c0_i32_0 : i32
    scf.if %2 {
      %cst_10 = arith.constant 0.000000e+00 : f32
      %13 = vector.broadcast %cst_10 : f32 to vector<16x64xf32>
      %c0_11 = arith.constant 0 : index
      %c0_12 = arith.constant 0 : index
      %14 = vector.load %arg7[%c0_11, %c0_12] : memref<16x64xf32, #tpu.memory_space<vmem>>, vector<16x64xf32>
      tpu.vector_store %arg7[%c0_11, %c0_12], %13 {strides = array<i32>} : memref<16x64xf32, #tpu.memory_space<vmem>>, vector<16x64xf32>,
    } else {
    }
    %c0 = arith.constant 0 : index
    %c0_1 = arith.constant 0 : index
    %3 = vector.load %arg7[%c0, %c0_1] : memref<16x64xf32, #tpu.memory_space<vmem>>, vector<16x64xf32>
    %c0_2 = arith.constant 0 : index
    %c0_3 = arith.constant 0 : index
    %4 = vector.load %arg3[%c0_2, %c0_3] : memref<16x128xf32, #tpu.memory_space<vmem>>, vector<16x128xf32>
    %5 = arith.truncf %4 : vector<16x128xf32> to vector<16x128xbf16>
    %c0_4 = arith.constant 0 : index
    %c0_5 = arith.constant 0 : index
    %6 = vector.load %arg4[%c0_4, %c0_5] : memref<128x64xbf16, #tpu.memory_space<vmem>>, vector<128x64xbf16>
    %cst = arith.constant dense<0.000000e+00> : vector<16x64xf32>
    %7 = tpu.matmul %5, %6, %cst {dimension_numbers = #tpu.dot_dimension_numbers<[1], [0], [0], [1], [0, 0, 1, 1], [], []>} : vector<16x128xbf16>, vector<128x64xbf16>, vector<16x64xf32> -> vector<16x64xf32>
    %8 = arith.addf %3, %7 : vector<16x64xf32>
    %c0_6 = arith.constant 0 : index
    %c0_7 = arith.constant 0 : index
    %9 = vector.load %arg7[%c0_6, %c0_7] : memref<16x64xf32, #tpu.memory_space<vmem>>, vector<16x64xf32>
    tpu.vector_store %arg7[%c0_6, %c0_7], %8 {strides = array<i32>} : memref<16x64xf32, #tpu.memory_space<vmem>>, vector<16x64xf32>,
    %c0_i32_8 = arith.constant 0 : i32
    %10 = arith.cmpi eq, %arg2, %c0_i32_8 : i32
    %11 = arith.extui %10 : i1 to i32
    %c0_i32_9 = arith.constant 0 : i32
    %12 = arith.cmpi ne, %11, %c0_i32_9 : i32
    scf.if %12 {
      %c0_10 = arith.constant 0 : index
      %c0_11 = arith.constant 0 : index
      %13 = vector.load %arg7[%c0_10, %c0_11] : memref<16x64xf32, #tpu.memory_space<vmem>>, vector<16x64xf32>
      %c0_12 = arith.constant 0 : index
      %c0_13 = arith.constant 0 : index
      %14 = vector.load %arg5[%c0_12, %c0_13] : memref<1x64xf32, #tpu.memory_space<vmem>>, vector<1x64xf32>
      %15 = vector.broadcast %14 : vector<1x64xf32> to vector<16x64xf32>
      %16 = arith.addf %13, %15 : vector<16x64xf32>
      %cst_14 = arith.constant 0.000000e+00 : f32
      %17 = vector.broadcast %cst_14 : f32 to vector<16x64xf32>
      %18 = arith.maximumf %16, %17 : vector<16x64xf32>
      %c0_15 = arith.constant 0 : index
      %c0_16 = arith.constant 0 : index
      %19 = vector.load %arg6[%c0_15, %c0_16] : memref<16x64xf32, #tpu.memory_space<vmem>>, vector<16x64xf32>
      tpu.vector_store %arg6[%c0_15, %c0_16], %18 {strides = array<i32>} : memref<16x64xf32, #tpu.memory_space<vmem>>, vector<16x64xf32>,
    } else {
    }
    return
  }
  func.func @transform_0(%arg0: i32, %arg1: i32, %arg2: i32) -> (i32, i32) {
    %c0_i32 = arith.constant 0 : i32
    return %arg0, %arg2 : i32, i32
  }
  func.func @transform_1(%arg0: i32, %arg1: i32, %arg2: i32) -> (i32, i32) {
    %c0_i32 = arith.constant 0 : i32
    return %arg2, %arg1 : i32, i32
  }
  func.func @transform_2(%arg0: i32, %arg1: i32, %arg2: i32) -> (i32, i32) {
    %c0_i32 = arith.constant 0 : i32
    %c0_i32_0 = arith.constant 0 : i32
    return %c0_i32, %arg1 : i32, i32
  }
  func.func @transform_3(%arg0: i32, %arg1: i32, %arg2: i32) -> (i32, i32) {
    %c0_i32 = arith.constant 0 : i32
    return %arg0, %arg1 : i32, i32
  }
}

module attributes {stable_mosaic.version = 11 : i64} {
  func.func @_linear_logsoftmax_kernel(%arg0: i32, %arg1: memref<16x64xf32, #tpu.memory_space<vmem>>, %arg2: memref<64x5xbf16, #tpu.memory_space<vmem>>, %arg3: memref<1x5xf32, #tpu.memory_space<vmem>>, %arg4: memref<16x5xf32, #tpu.memory_space<vmem>>) attributes {dimension_semantics = [#tpu.dimension_semantics<parallel>], iteration_bounds = array<i64: 1>, scalar_prefetch = 0 : i64, scratch_operands = 0 : i64, tpu.core_type = #tpu.core_type<tc>, window_params = [{transform_indices = @transform_0, window_bounds = array<i64: 16, 64>}, {pipeline_mode = #tpu.pipeline_mode<synchronous>, transform_indices = @transform_1, window_bounds = array<i64: 64, 5>}, {pipeline_mode = #tpu.pipeline_mode<synchronous>, transform_indices = @transform_2, window_bounds = array<i64: 1, 5>}, {transform_indices = @transform_3, window_bounds = array<i64: 16, 5>}]} {
    %c0 = arith.constant 0 : index
    %c0_0 = arith.constant 0 : index
    %0 = vector.load %arg1[%c0, %c0_0] : memref<16x64xf32, #tpu.memory_space<vmem>>, vector<16x64xf32>
    %1 = arith.truncf %0 : vector<16x64xf32> to vector<16x64xbf16>
    %c0_1 = arith.constant 0 : index
    %c0_2 = arith.constant 0 : index
    %2 = vector.load %arg2[%c0_1, %c0_2] : memref<64x5xbf16, #tpu.memory_space<vmem>>, vector<64x5xbf16>
    %cst = arith.constant dense<0.000000e+00> : vector<16x5xf32>
    %3 = tpu.matmul %1, %2, %cst {dimension_numbers = #tpu.dot_dimension_numbers<[1], [0], [0], [1], [0, 0, 1, 1], [], []>} : vector<16x64xbf16>, vector<64x5xbf16>, vector<16x5xf32> -> vector<16x5xf32>
    %c0_3 = arith.constant 0 : index
    %c0_4 = arith.constant 0 : index
    %4 = vector.load %arg3[%c0_3, %c0_4] : memref<1x5xf32, #tpu.memory_space<vmem>>, vector<1x5xf32>
    %5 = vector.broadcast %4 : vector<1x5xf32> to vector<16x5xf32>
    %6 = arith.addf %3, %5 : vector<16x5xf32>
    %cst_5 = arith.constant dense<0xFF800000> : vector<16xf32>
    %7 = vector.multi_reduction <maximumf>, %6, %cst_5 [1] : vector<16x5xf32> to vector<16xf32>
    %8 = vector.shape_cast %7 : vector<16xf32> to vector<16x1xf32>
    %9 = vector.broadcast %8 : vector<16x1xf32> to vector<16x5xf32>
    %10 = arith.subf %6, %9 : vector<16x5xf32>
    %11 = math.exp %10 : vector<16x5xf32>
    %cst_6 = arith.constant dense<0.000000e+00> : vector<16xf32>
    %12 = vector.multi_reduction <add>, %11, %cst_6 [1] : vector<16x5xf32> to vector<16xf32>
    %13 = vector.shape_cast %12 : vector<16xf32> to vector<16x1xf32>
    %14 = math.log %13 : vector<16x1xf32>
    %15 = vector.broadcast %14 : vector<16x1xf32> to vector<16x5xf32>
    %16 = arith.subf %10, %15 : vector<16x5xf32>
    %c0_7 = arith.constant 0 : index
    %c0_8 = arith.constant 0 : index
    %17 = vector.load %arg4[%c0_7, %c0_8] : memref<16x5xf32, #tpu.memory_space<vmem>>, vector<16x5xf32>
    tpu.vector_store %arg4[%c0_7, %c0_8], %16 {strides = array<i32>} : memref<16x5xf32, #tpu.memory_space<vmem>>, vector<16x5xf32>,
    return
  }
  func.func @transform_0(%arg0: i32) -> (i32, i32) {
    %c0_i32 = arith.constant 0 : i32
    %c0_i32_0 = arith.constant 0 : i32
    return %arg0, %c0_i32 : i32, i32
  }
  func.func @transform_1(%arg0: i32) -> (i32, i32) {
    %c0_i32 = arith.constant 0 : i32
    %c0_i32_0 = arith.constant 0 : i32
    %c0_i32_1 = arith.constant 0 : i32
    return %c0_i32, %c0_i32_0 : i32, i32
  }
  func.func @transform_2(%arg0: i32) -> (i32, i32) {
    %c0_i32 = arith.constant 0 : i32
    %c0_i32_0 = arith.constant 0 : i32
    %c0_i32_1 = arith.constant 0 : i32
    return %c0_i32, %c0_i32_0 : i32, i32
  }
  func.func @transform_3(%arg0: i32) -> (i32, i32) {
    %c0_i32 = arith.constant 0 : i32
    %c0_i32_0 = arith.constant 0 : i32
    return %arg0, %c0_i32 : i32, i32
  }
}

</mosaic_0001>

<llo_original>
// kernel: transformer_classifier.45
$region0: #{transformer_classifier.45}
  #allocation0 [shape = 'u32[]', space=smem, size = 0x4, offset = 0x4, fixed_abs, tag = 'smem constant byte address 0x4 - core index']
  #allocation1 [shape = 'u32[72,128]{1,0:T(1,128)}', space=vmem, size = 0x9000, scoped, tag = 'internal scratch']
  #allocation2 [shape = 'f32[16,256]{1,0:T(8,128)}', space=vmem, size = 0x4000, scoped, tag = 'scratch operand']
  %s0 = inlined_call_operand.vmem [shape: f32[16,256], index: 0, kind: input, shape index: {}]
  %s1 = inlined_call_operand.hbm [shape: bf16[256,256], index: 1, kind: input, shape index: {}]
  %s2 = inlined_call_operand.vmem [shape: f32[1,256], index: 2, kind: input, shape index: {}]
  %s3 = inlined_call_operand.vmem [shape: f32[16,256], index: 3, kind: input, shape index: {}]
  %s4 = inlined_call_operand.vmem [shape: f32[1,256], index: 4, kind: input, shape index: {}]
  %s5 = inlined_call_operand.vmem [shape: f32[1,256], index: 5, kind: input, shape index: {}]
  %s6 = inlined_call_operand.vmem [shape: f32[16,256], index: 6, kind: output, shape index: {}]
  %s7 = sld [smem:[#allocation0]]
  $region107: #{transformer_classifier.45} parent=0
    _
  %s9 = ssub.s32 1, %s7
  %s10 = scalar_select 0, %s9, %s7
  $region1: #{transformer_classifier.45} parent=0
    #allocation3 [shape = 'u8[16384]{0}', space=vmem, size = 0x4000, scoped, tag = 'input window, operand 0']
    #allocation4 [shape = 'u8[131072]{0}', space=vmem, size = 0x20000, scoped, tag = 'input window, operand 1']
    #allocation5 [shape = 's32[2]{0}', space=sflag, size = 0x8, scoped, tag = 'scoped memory for transformer_classifier.45']
    %11 = vsyncpa [#allocation5], 0
    %s12 = scalar_lea.sflag [#allocation5], 1
    %13 = vsyncpa %s12, 0
    loop: start=0, step=1, limit=4
    $region2: #{transformer_classifier.45} parent=1 // loop_pre_header
      _
    $region3: #{transformer_classifier.45} parent=1 // loop_header
      %s15 = sphi 0, %s19
      %p16 = scmp.ge.s32.totalorder %s15, 4
      %s22 = sphi 0, %s34
      %s23 = sphi 0, %s30
      %s24 = sphi 0, %s22
      %s25 = sphi 0, %s23
      %s26 = sphi 0, %s24
      %s27 = sphi 0, %s25
      %s39 = sphi 0, %s41
      %s42 = sphi 0, %s39
      %s43 = sphi 0, %s42
      %s59 = sphi 0, %s43
      %s65 = sphi 0, %s67
      %s68 = sphi 0, %s65
      %s69 = sphi 0, %s68
      %s85 = sphi 0, %s69
      %s89 = sphi 0, %s89
      %s91 = sphi 0, %s89
      %s92 = sphi 0, %s91
      %s106 = sphi 0, %s92
      %s112 = sphi 0, %s114
      %s115 = sphi 0, %s112
      %s116 = sphi 0, %s115
      %s132 = sphi 0, %s116
      %s136 = sphi 0, %s136
      %s138 = sphi 0, %s136
      %s139 = sphi 0, %s138
      %s153 = sphi 0, %s139
      %s157 = sphi 0, %s157
      %s159 = sphi 0, %s157
      %s160 = sphi 0, %s159
      %s174 = sphi 0, %s160
      %s180 = sphi 0, %s182
      %s183 = sphi 0, %s180
      %s184 = sphi 0, %s183
      %s200 = sphi 0, %s184
    $region4: #{transformer_classifier.45} parent=1 // loop_header_branch
      %18 = sbr.rel (%p16) target = $region8
    $region5: #{transformer_classifier.45} parent=1 // loop_body
      %s20 = ssub.s32 %s15, 1
      %s21 = ssub.s32 %s15, 2
      %s28 = sadd.s32 1, %s23
      %p29 = scmp.ge.s32.totalorder %s28, 2
      %s30 = scalar_select %p29, 0, %s28
      %s31 = sadd.s32 1, %s22
      %s32 = scalar_select %p29, %s31, %s22
      %p33 = scmp.ge.s32.totalorder %s32, 1
      %s34 = scalar_select %p33, 0, %s32
      %s35 = ssub.s32 %s22, %s34
      %s36 = ssub.s32 %s23, %s30
      %s37 = sor.u32 %s35, %s36
      %p38 = scmp.eq.s32.totalorder %s37, 0
      %s40 = sadd.s32 %s39, 1
      %s41 = scalar_select %p38, %s39, %s40
      %p44 = pneg %p38
      %p45 = scmp.eq.s32.totalorder %s15, 1
      %p46 = por %p44, %p45
      %p47 = scmp.ne.s32.totalorder %s39, %s42
      %p48 = scmp.eq.s32.totalorder %s15, 0
      %p49 = por %p47, %p48
      %p50 = scmp.ne.s32.totalorder %s39, %s42
      %p51 = scmp.eq.s32.totalorder %s20, 1
      %p52 = por %p50, %p51
      %p53 = scmp.ne.s32.totalorder %s42, %s43
      %p54 = scmp.eq.s32.totalorder %s20, 0
      %p55 = por %p53, %p54
      %p56 = scmp.ne.s32.totalorder %s42, %s43
      %p57 = scmp.eq.s32.totalorder %s21, 1
      %p58 = por %p56, %p57
      %p60 = scmp.ne.s32.totalorder %s43, %s59
      %p61 = scmp.eq.s32.totalorder %s21, 0
      %p62 = por %p60, %p61
      %s63 = ssub.s32 %s23, %s30
      %p64 = scmp.eq.s32.totalorder %s63, 0
      %s66 = sadd.s32 %s65, 1
      %s67 = scalar_select %p64, %s65, %s66
      %p70 = pneg %p64
      %p71 = scmp.eq.s32.totalorder %s15, 1
      %p72 = por %p70, %p71
      %p73 = scmp.ne.s32.totalorder %s65, %s68
      %p74 = scmp.eq.s32.totalorder %s15, 0
      %p75 = por %p73, %p74
      %p76 = scmp.ne.s32.totalorder %s65, %s68
      %p77 = scmp.eq.s32.totalorder %s20, 1
      %p78 = por %p76, %p77
      %p79 = scmp.ne.s32.totalorder %s68, %s69
      %p80 = scmp.eq.s32.totalorder %s20, 0
      %p81 = por %p79, %p80
      %p82 = scmp.ne.s32.totalorder %s68, %s69
      %p83 = scmp.eq.s32.totalorder %s21, 1
      %p84 = por %p82, %p83
      %p86 = scmp.ne.s32.totalorder %s69, %s85
      %p87 = scmp.eq.s32.totalorder %s21, 0
      %p88 = por %p86, %p87
      %s90 = sadd.s32 %s89, 1
      %p93 = scmp.eq.s32.totalorder %s15, 1
      %p94 = scmp.ne.s32.totalorder %s89, %s91
      %p95 = scmp.eq.s32.totalorder %s15, 0
      %p96 = por %p94, %p95
      %p97 = scmp.ne.s32.totalorder %s89, %s91
      %p98 = scmp.eq.s32.totalorder %s20, 1
      %p99 = por %p97, %p98
      %p100 = scmp.ne.s32.totalorder %s91, %s92
      %p101 = scmp.eq.s32.totalorder %s20, 0
      %p102 = por %p100, %p101
      %p103 = scmp.ne.s32.totalorder %s91, %s92
      %p104 = scmp.eq.s32.totalorder %s21, 1
      %p105 = por %p103, %p104
      %p107 = scmp.ne.s32.totalorder %s92, %s106
      %p108 = scmp.eq.s32.totalorder %s21, 0
      %p109 = por %p107, %p108
      %s110 = ssub.s32 %s22, %s34
      %p111 = scmp.eq.s32.totalorder %s110, 0
      %s113 = sadd.s32 %s112, 1
      %s114 = scalar_select %p111, %s112, %s113
      %p117 = pneg %p111
      %p118 = scmp.eq.s32.totalorder %s15, 1
      %p119 = por %p117, %p118
      %p120 = scmp.ne.s32.totalorder %s112, %s115
      %p121 = scmp.eq.s32.totalorder %s15, 0
      %p122 = por %p120, %p121
      %p123 = scmp.ne.s32.totalorder %s112, %s115
      %p124 = scmp.eq.s32.totalorder %s20, 1
      %p125 = por %p123, %p124
      %p126 = scmp.ne.s32.totalorder %s115, %s116
      %p127 = scmp.eq.s32.totalorder %s20, 0
      %p128 = por %p126, %p127
      %p129 = scmp.ne.s32.totalorder %s115, %s116
      %p130 = scmp.eq.s32.totalorder %s21, 1
      %p131 = por %p129, %p130
      %p133 = scmp.ne.s32.totalorder %s116, %s132
      %p134 = scmp.eq.s32.totalorder %s21, 0
      %p135 = por %p133, %p134
      %s137 = sadd.s32 %s136, 1
      %p140 = scmp.eq.s32.totalorder %s15, 1
      %p141 = scmp.ne.s32.totalorder %s136, %s138
      %p142 = scmp.eq.s32.totalorder %s15, 0
      %p143 = por %p141, %p142
      %p144 = scmp.ne.s32.totalorder %s136, %s138
      %p145 = scmp.eq.s32.totalorder %s20, 1
      %p146 = por %p144, %p145
      %p147 = scmp.ne.s32.totalorder %s138, %s139
      %p148 = scmp.eq.s32.totalorder %s20, 0
      %p149 = por %p147, %p148
      %p150 = scmp.ne.s32.totalorder %s138, %s139
      %p151 = scmp.eq.s32.totalorder %s21, 1
      %p152 = por %p150, %p151
      %p154 = scmp.ne.s32.totalorder %s139, %s153
      %p155 = scmp.eq.s32.totalorder %s21, 0
      %p156 = por %p154, %p155
      %s158 = sadd.s32 %s157, 1
      %p161 = scmp.eq.s32.totalorder %s15, 1
      %p162 = scmp.ne.s32.totalorder %s157, %s159
      %p163 = scmp.eq.s32.totalorder %s15, 0
      %p164 = por %p162, %p163
      %p165 = scmp.ne.s32.totalorder %s157, %s159
      %p166 = scmp.eq.s32.totalorder %s20, 1
      %p167 = por %p165, %p166
      %p168 = scmp.ne.s32.totalorder %s159, %s160
      %p169 = scmp.eq.s32.totalorder %s20, 0
      %p170 = por %p168, %p169
      %p171 = scmp.ne.s32.totalorder %s159, %s160
      %p172 = scmp.eq.s32.totalorder %s21, 1
      %p173 = por %p171, %p172
      %p175 = scmp.ne.s32.totalorder %s160, %s174
      %p176 = scmp.eq.s32.totalorder %s21, 0
      %p177 = por %p175, %p176
      %s178 = ssub.s32 %s22, %s34
      %p179 = scmp.eq.s32.totalorder %s178, 0
      %s181 = sadd.s32 %s180, 1
      %s182 = scalar_select %p179, %s180, %s181
      %p185 = pneg %p179
      %p186 = scmp.eq.s32.totalorder %s15, 1
      %p187 = por %p185, %p186
      %p188 = scmp.ne.s32.totalorder %s180, %s183
      %p189 = scmp.eq.s32.totalorder %s15, 0
      %p190 = por %p188, %p189
      %p191 = scmp.ne.s32.totalorder %s180, %s183
      %p192 = scmp.eq.s32.totalorder %s20, 1
      %p193 = por %p191, %p192
      %p194 = scmp.ne.s32.totalorder %s183, %s184
      %p195 = scmp.eq.s32.totalorder %s20, 0
      %p196 = por %p194, %p195
      %p197 = scmp.ne.s32.totalorder %s183, %s184
      %p198 = scmp.eq.s32.totalorder %s21, 1
      %p199 = por %p197, %p198
      %p201 = scmp.ne.s32.totalorder %s184, %s200
      %p202 = scmp.eq.s32.totalorder %s21, 0
      %p203 = por %p201, %p202
      %p204 = scmp.le.s32.totalorder 1, %s15
      %p205 = scmp.lt.s32.totalorder %s15, 3
      %p206 = pnand %p204, %p205
      %p207 = pneg %p206
      // Predicated region
      $region9: #{transformer_classifier.45} parent=5 // pred_check
        _
      $region10: #{transformer_classifier.45} parent=5 // pred_check_branch
        %209 = sbr.rel (%p206) target = $region12
      $region11: #{transformer_classifier.45} parent=5 // pred_region
        %s210 = ssub.s32 %s15, 1
        // Predicated region
        $region13: #{transformer_classifier.45} parent=11 // pred_check
          %p211 = pneg %p102
        $region14: #{transformer_classifier.45} parent=11 // pred_check_branch
          %213 = sbr.rel (%p211) target = $region16
        $region15: #{transformer_classifier.45} parent=11 // pred_region
          _
        $region16: #{transformer_classifier.45} parent=11 // pred_fallthru
          _
        // Predicated region
        $region17: #{transformer_classifier.45} parent=11 // pred_check
          %p214 = pneg %p128
        $region18: #{transformer_classifier.45} parent=11 // pred_check_branch
          %216 = sbr.rel (%p214) target = $region20
        $region19: #{transformer_classifier.45} parent=11 // pred_region
          %s217 = smul.u32 2, %s24
          %p218 = scmp.lt.s32.totalorder %s217, 1
          %s219 = scalar_select %p218, %s217, 1
          %s220 = smul.addr %s219, 2
          %s221 = smul.addr %s220, 8
          %s222 = scalar_lea.vmem %s3, %s221
          %s223 = smul.u32 2, %s24
        $region20: #{transformer_classifier.45} parent=11 // pred_fallthru
          _
        // Predicated region
        $region21: #{transformer_classifier.45} parent=11 // pred_check
          %p224 = pneg %p149
        $region22: #{transformer_classifier.45} parent=11 // pred_check_branch
          %226 = sbr.rel (%p224) target = $region24
        $region23: #{transformer_classifier.45} parent=11 // pred_region
          _
        $region24: #{transformer_classifier.45} parent=11 // pred_fallthru
          _
        // Predicated region
        $region25: #{transformer_classifier.45} parent=11 // pred_check
          %p227 = pneg %p170
        $region26: #{transformer_classifier.45} parent=11 // pred_check_branch
          %229 = sbr.rel (%p227) target = $region28
        $region27: #{transformer_classifier.45} parent=11 // pred_region
          _
        $region28: #{transformer_classifier.45} parent=11 // pred_fallthru
          _
      $region12: #{transformer_classifier.45} parent=5 // pred_fallthru
        _
      %p230 = scmp.lt.s32.totalorder %s15, 2
      // Predicated region
      $region29: #{transformer_classifier.45} parent=5 // pred_check
        %p231 = pneg %p230
      $region30: #{transformer_classifier.45} parent=5 // pred_check_branch
        %233 = sbr.rel (%p231) target = $region32
      $region31: #{transformer_classifier.45} parent=5 // pred_region
        // Predicated region
        $region33: #{transformer_classifier.45} parent=31 // pred_check
          %p234 = pneg %p49
        $region34: #{transformer_classifier.45} parent=31 // pred_check_branch
          %236 = sbr.rel (%p234) target = $region36
        $region35: #{transformer_classifier.45} parent=31 // pred_region
          %s237 = sand.u32 %s39, 1
          %s238 = sand.u32 %s39, 1
          %s239 = smul.addr %s238, 16
          %s240 = scalar_lea.vmem [#allocation3], %s239
          %s241 = smul.u32 2, %s22
          %s242 = smul.addr %s241, 2
          %s243 = sadd.s32 %s23, %s242
          %s244 = smul.addr %s243, 8
          %s245 = scalar_lea.vmem %s0, %s244
          // Predicated region
          $region37: #{transformer_classifier.45} parent=35 // pred_check
            _
          $region38: #{transformer_classifier.45} parent=35 // pred_check_branch
            %247 = sbr.rel (0) target = $region40
          $region39: #{transformer_classifier.45} parent=35 // pred_region
            // Predicated region
            $region41: #{transformer_classifier.45} parent=39 // pred_check
              _
            $region42: #{transformer_classifier.45} parent=39 // pred_check_branch
              %249 = sbr.rel (0) target = $region44
            $region43: #{transformer_classifier.45} parent=39 // pred_region
              // Predicated region
              $region56: #{transformer_classifier.45} parent=43 // pred_check
                _
              $region57: #{transformer_classifier.45} parent=43 // pred_check_branch
                %267 = sbr.rel (0) target = $region59
              $region58: #{transformer_classifier.45} parent=43 // pred_region
                loop: start=0, step=1, limit=1
                $region60: #{transformer_classifier.45} parent=58 // loop_pre_header
                  _
                $region61: #{transformer_classifier.45} parent=58 // loop_header
                  %s269 = sphi 0, %s273
                  %p270 = scmp.ge.s32.totalorder %s269, 1
                  %s274 = sphi %s245, %s245
                  %s275 = sphi %s240, %s240
                $region62: #{transformer_classifier.45} parent=58 // loop_header_branch
                  %272 = sbr.rel (%p270) target = $region66
                $region63: #{transformer_classifier.45} parent=58 // loop_body
                  %v276 = vld [vmem:[%s274] sm:$0xff]
                  %277 = vst [vmem:[%s275] sm:$0xff] %v276
                  %v278 = vld [vmem:[%s274 + $0x10] sm:$0xff]
                  %279 = vst [vmem:[%s275 + $0x8] sm:$0xff] %v278
                $region64: #{transformer_classifier.45} parent=58 // loop_footer
                  %s273 = sadd.s32 1, %s269
                $region65: #{transformer_classifier.45} parent=58 // loop_footer_branch
                  %268 = sbr.rel target = $region61
                $region66: #{transformer_classifier.45} parent=58 // loop_exit
                  _
              $region59: #{transformer_classifier.45} parent=43 // pred_fallthru
                _
              // Predicated region
              $region67: #{transformer_classifier.45} parent=43 // pred_check
                _
              $region68: #{transformer_classifier.45} parent=43 // pred_check_branch
                %281 = sbr.rel target = $region70
              $region69: #{transformer_classifier.45} parent=43 // pred_region
                _
              $region70: #{transformer_classifier.45} parent=43 // pred_fallthru
                _
            $region44: #{transformer_classifier.45} parent=39 // pred_fallthru
              _
            // Predicated region
            $region45: #{transformer_classifier.45} parent=39 // pred_check
              _
            $region46: #{transformer_classifier.45} parent=39 // pred_check_branch
              %251 = sbr.rel target = $region48
            $region47: #{transformer_classifier.45} parent=39 // pred_region
              %s253 = ssub.s32 256, 1
              loop: start=0, step=1, limit=1
              $region49: #{transformer_classifier.45} parent=47 // loop_pre_header
                _
              $region50: #{transformer_classifier.45} parent=47 // loop_header
                %s255 = sphi 0, %s259
                %p256 = scmp.ge.s32.totalorder %s255, 1
                %s260 = sphi %s245, %s245
                %s261 = sphi %s240, %s240
              $region51: #{transformer_classifier.45} parent=47 // loop_header_branch
                %258 = sbr.rel (%p256) target = $region55
              $region52: #{transformer_classifier.45} parent=47 // loop_body
                %v262 = vld [vmem:[%s260] sm:%s253]
                %263 = vst [vmem:[%s261] sm:%s253] %v262
                %v264 = vld [vmem:[%s260 + $0x10] sm:%s253]
                %265 = vst [vmem:[%s261 + $0x8] sm:%s253] %v264
              $region53: #{transformer_classifier.45} parent=47 // loop_footer
                %s259 = sadd.s32 1, %s255
              $region54: #{transformer_classifier.45} parent=47 // loop_footer_branch
                %254 = sbr.rel target = $region50
              $region55: #{transformer_classifier.45} parent=47 // loop_exit
                _
            $region48: #{transformer_classifier.45} parent=39 // pred_fallthru
              _
          $region40: #{transformer_classifier.45} parent=35 // pred_fallthru
            _
          %282 = vnop
        $region36: #{transformer_classifier.45} parent=31 // pred_fallthru
          _
        // Predicated region
        $region71: #{transformer_classifier.45} parent=31 // pred_check
          %p283 = pneg %p75
        $region72: #{transformer_classifier.45} parent=31 // pred_check_branch
          %285 = sbr.rel (%p283) target = $region74
        $region73: #{transformer_classifier.45} parent=31 // pred_region
          %s286 = sand.u32 %s65, 1
          %s287 = scalar_lea.sflag [#allocation5], %s286
          %s288 = sand.u32 %s65, 1
          %s289 = smul.addr %s288, 128
          %s290 = scalar_lea.vmem [#allocation4], %s289
          %s291 = smul.u32 16, %s23
          %293 = vsyncadd %s287, 0
          %s294 = smul.addr %s291, 2
          %s295 = smul.addr %s294, 4
          %s296 = scalar_lea.hbm %s1, %s295
          %s297 = sshll.u32 %s296, 4
          %s298 = int_to_ptr.hbm [resolvable:$true] %s297
          %s299 = sshll.u32 %s290, 4
          %s300 = int_to_ptr.vmem [resolvable:$true] %s299
          %305 = dma.hbm_to_vmem [thread:$0]  %s298, 2048, %s300, %s287, 128, 128, 8
        $region74: #{transformer_classifier.45} parent=31 // pred_fallthru
          _
      $region32: #{transformer_classifier.45} parent=5 // pred_fallthru
        _
      %p306 = scmp.le.s32.totalorder 1, %s15
      %p307 = scmp.lt.s32.totalorder %s15, 3
      %p308 = pnand %p306, %p307
      %p309 = pneg %p308
      // Predicated region
      $region75: #{transformer_classifier.45} parent=5 // pred_check
        _
      $region76: #{transformer_classifier.45} parent=5 // pred_check_branch
        %311 = sbr.rel (%p308) target = $region78
      $region77: #{transformer_classifier.45} parent=5 // pred_region
        %s312 = ssub.s32 %s15, 1
        %s313 = sand.u32 %s42, 1
        %s314 = sand.u32 %s42, 1
        %s315 = smul.addr %s314, 16
        %s316 = scalar_lea.vmem [#allocation3], %s315
        // Predicated region
        $region79: #{transformer_classifier.45} parent=77 // pred_check
          %p317 = pneg %p55
        $region80: #{transformer_classifier.45} parent=77 // pred_check_branch
          %319 = sbr.rel (%p317) target = $region82
        $region81: #{transformer_classifier.45} parent=77 // pred_region
          _
        $region82: #{transformer_classifier.45} parent=77 // pred_fallthru
          _
        %s320 = sand.u32 %s68, 1
        %s321 = scalar_lea.sflag [#allocation5], %s320
        %s322 = sand.u32 %s68, 1
        %s323 = smul.addr %s322, 128
        %s324 = scalar_lea.vmem [#allocation4], %s323
        // Predicated region
        $region83: #{transformer_classifier.45} parent=77 // pred_check
          %p325 = pneg %p81
        $region84: #{transformer_classifier.45} parent=77 // pred_check_branch
          %327 = sbr.rel (%p325) target = $region86
        $region85: #{transformer_classifier.45} parent=77 // pred_region
          %329 = dma.done %s321, 2048
        $region86: #{transformer_classifier.45} parent=77 // pred_fallthru
          _
        %s330 = sand.u32 %s42, 1
        %s331 = sand.u32 %s42, 1
        %s332 = smul.addr %s331, 16
        %s333 = scalar_lea.vmem [#allocation3], %s332
        %p334 = pneg %p55
        %p335 = pneg %p52
        %s336 = sand.u32 %s68, 1
        %s337 = scalar_lea.sflag [#allocation5], %s336
        %s338 = sand.u32 %s68, 1
        %s339 = smul.addr %s338, 128
        %s340 = scalar_lea.vmem [#allocation4], %s339
        %p341 = pneg %p81
        %p342 = pneg %p78
        %p343 = pneg %p102
        %p344 = pneg %p99
        %s345 = smul.u32 2, %s24
        %p346 = scmp.lt.s32.totalorder %s345, 1
        %s347 = scalar_select %p346, %s345, 1
        %s348 = smul.addr %s347, 2
        %s349 = smul.addr %s348, 8
        %s350 = scalar_lea.vmem %s3, %s349
        %p351 = pneg %p128
        %p352 = pneg %p125
        %p353 = pneg %p149
        %p354 = pneg %p146
        %p355 = pneg %p170
        %p356 = pneg %p167
        %p357 = pneg %p196
        %p358 = pneg %p193
        %s359 = smul.u32 2, %s24
        %p360 = scmp.lt.s32.totalorder %s359, 1
        %s361 = scalar_select %p360, %s359, 1
        %s362 = smul.addr %s361, 2
        %s363 = smul.addr %s362, 8
        %s364 = scalar_lea.vmem %s6, %s363
        %s365 = smul.u32 2, %s24
        %s366 = smul.u32 16, %s25
        %s367 = smul.u32 2, %s24
        %p368 = scmp.lt.s32.totalorder %s367, 1
        %s369 = scalar_select %p368, %s367, 1
        %s370 = smul.addr %s369, 2
        %s371 = smul.addr %s370, 8
        %s372 = scalar_lea.vmem %s3, %s371
        %s373 = smul.u32 2, %s24
        %s374 = smul.u32 2, %s24
        %p375 = scmp.lt.s32.totalorder %s374, 1
        %s376 = scalar_select %p375, %s374, 1
        %s377 = smul.addr %s376, 2
        %s378 = smul.addr %s377, 8
        %s379 = scalar_lea.vmem %s6, %s378
        %s380 = smul.u32 2, %s24
        %p381 = scmp.eq.s32.totalorder %s25, 0
        // Predicated region
        $region87: #{transformer_classifier.45} parent=77 // pred_check
          %p382 = pneg %p381
        $region88: #{transformer_classifier.45} parent=77 // pred_check_branch
          %384 = sbr.rel (%p382) target = $region90
        $region89: #{transformer_classifier.45} parent=77 // pred_region
          %385 = vst [vmem:[#allocation2] sm:$0xff] 0.0
          %386 = vst [vmem:[#allocation2 + $0x8] sm:$0xff] 0.0
          %387 = vst [vmem:[#allocation2 + $0x10] sm:$0xff] 0.0
          %388 = vst [vmem:[#allocation2 + $0x18] sm:$0xff] 0.0
        $region90: #{transformer_classifier.45} parent=77 // pred_fallthru
          _
        %v389 = vld [vmem:[#allocation2] sm:$0xff]
        %v390 = vld [vmem:[#allocation2 + $0x8] sm:$0xff]
        %v391 = vld [vmem:[#allocation2 + $0x10] sm:$0xff]
        %v392 = vld [vmem:[#allocation2 + $0x18] sm:$0xff]
        %v393 = vld [vmem:[%s316] sm:$0xff]
        %v394 = vld [vmem:[%s316 + $0x8] sm:$0xff]
        %v395 = vpack.c.bf16 %v394, %v393
        %v396 = vld [vmem:[%s324] sm:$0xff]
        %v397 = vld [vmem:[%s324 + $0x8] sm:$0xff]
        %v398 = vld [vmem:[%s324 + $0x10] sm:$0xff]
        %v399 = vld [vmem:[%s324 + $0x18] sm:$0xff]
        %v400 = vld [vmem:[%s324 + $0x20] sm:$0xff]
        %v401 = vld [vmem:[%s324 + $0x28] sm:$0xff]
        %v402 = vld [vmem:[%s324 + $0x30] sm:$0xff]
        %v403 = vld [vmem:[%s324 + $0x38] sm:$0xff]
        %v404 = vld [vmem:[%s324 + $0x40] sm:$0xff]
        %v405 = vld [vmem:[%s324 + $0x48] sm:$0xff]
        %v406 = vld [vmem:[%s324 + $0x50] sm:$0xff]
        %v407 = vld [vmem:[%s324 + $0x58] sm:$0xff]
        %v408 = vld [vmem:[%s324 + $0x60] sm:$0xff]
        %v409 = vld [vmem:[%s324 + $0x68] sm:$0xff]
        %v410 = vld [vmem:[%s324 + $0x70] sm:$0xff]
        %v411 = vld [vmem:[%s324 + $0x78] sm:$0xff]
        %v428 = vunpack.c.l.b16 %v396
        %v429 = vunpack.c.h.b16 %v396
        %v430 = vunpack.c.l.b16 %v397
        %v431 = vunpack.c.h.b16 %v397
        %v432 = vunpack.c.l.b16 %v398
        %v433 = vunpack.c.h.b16 %v398
        %v434 = vunpack.c.l.b16 %v399
        %v435 = vunpack.c.h.b16 %v399
        %v436 = vunpack.c.l.b16 %v400
        %v437 = vunpack.c.h.b16 %v400
        %v438 = vunpack.c.l.b16 %v401
        %v439 = vunpack.c.h.b16 %v401
        %v440 = vunpack.c.l.b16 %v402
        %v441 = vunpack.c.h.b16 %v402
        %v442 = vunpack.c.l.b16 %v403
        %v443 = vunpack.c.h.b16 %v403
        %v444 = vunpack.c.l.b16 %v404
        %v445 = vunpack.c.h.b16 %v404
        %v446 = vunpack.c.l.b16 %v405
        %v447 = vunpack.c.h.b16 %v405
        %v448 = vunpack.c.l.b16 %v406
        %v449 = vunpack.c.h.b16 %v406
        %v450 = vunpack.c.l.b16 %v407
        %v451 = vunpack.c.h.b16 %v407
        %v452 = vunpack.c.l.b16 %v408
        %v453 = vunpack.c.h.b16 %v408
        %v454 = vunpack.c.l.b16 %v409
        %v455 = vunpack.c.h.b16 %v409
        %v456 = vunpack.c.l.b16 %v410
        %v457 = vunpack.c.h.b16 %v410
        %v458 = vunpack.c.l.b16 %v411
        %v459 = vunpack.c.h.b16 %v411
        %v460 = vpack.c.b16 %v430, %v428
        %v461 = vpack.c.b16 %v431, %v429
        %v462 = vpack.c.b16 %v434, %v432
        %v463 = vpack.c.b16 %v435, %v433
        %v464 = vpack.c.b16 %v438, %v436
        %v465 = vpack.c.b16 %v439, %v437
        %v466 = vpack.c.b16 %v442, %v440
        %v467 = vpack.c.b16 %v443, %v441
        %v468 = vpack.c.b16 %v446, %v444
        %v469 = vpack.c.b16 %v447, %v445
        %v470 = vpack.c.b16 %v450, %v448
        %v471 = vpack.c.b16 %v451, %v449
        %v472 = vpack.c.b16 %v454, %v452
        %v473 = vpack.c.b16 %v455, %v453
        %v474 = vpack.c.b16 %v458, %v456
        %v475 = vpack.c.b16 %v459, %v457
        %492 = vmatpush.bf16.msra.mxu0 %v474
        %493 = vmatpush.bf16.msra.mxu0 %v472
        %494 = vmatpush.bf16.msra.mxu0 %v470
        %495 = vmatpush.bf16.msra.mxu0 %v468
        %496 = vmatpush.bf16.msra.mxu0 %v466
        %497 = vmatpush.bf16.msra.mxu0 %v464
        %498 = vmatpush.bf16.msra.mxu0 %v462
        %499 = vmatpush.bf16.msra.mxu0 %v460
        %500 = vmatmul.bf16.gmra.mxu0 %v395
        %v501 = vpop.f32.mrf.mxu0
        %v502 = vadd.f32 0.0, %v501
        %v503 = vpop.f32.mrf.mxu0
        %v504 = vadd.f32 0.0, %v503
        %505 = vdwg.mxu0
        %506 = vmatpush.bf16.msra.mxu0 %v475
        %507 = vmatpush.bf16.msra.mxu0 %v473
        %508 = vmatpush.bf16.msra.mxu0 %v471
        %509 = vmatpush.bf16.msra.mxu0 %v469
        %510 = vmatpush.bf16.msra.mxu0 %v467
        %511 = vmatpush.bf16.msra.mxu0 %v465
        %512 = vmatpush.bf16.msra.mxu0 %v463
        %513 = vmatpush.bf16.msra.mxu0 %v461
        %514 = vmatmul.bf16.gmra.mxu0 %v395
        %v515 = vpop.f32.mrf.mxu0
        %v516 = vadd.f32 0.0, %v515
        %v517 = vpop.f32.mrf.mxu0
        %v518 = vadd.f32 0.0, %v517
        %519 = vdwg.mxu0
        %v520 = vadd.f32 %v389, %v502
        %v521 = vadd.f32 %v390, %v516
        %v522 = vadd.f32 %v391, %v504
        %v523 = vadd.f32 %v392, %v518
        %524 = vst [vmem:[#allocation2] sm:$0xff] %v520
        %525 = vst [vmem:[#allocation2 + $0x8] sm:$0xff] %v521
        %526 = vst [vmem:[#allocation2 + $0x10] sm:$0xff] %v522
        %527 = vst [vmem:[#allocation2 + $0x18] sm:$0xff] %v523
        %p528 = scmp.eq.s32.totalorder %s25, 1
        // Predicated region
        $region91: #{transformer_classifier.45} parent=77 // pred_check
          %p529 = pneg %p528
        $region92: #{transformer_classifier.45} parent=77 // pred_check_branch
          %531 = sbr.rel (%p529) target = $region94
        $region93: #{transformer_classifier.45} parent=77 // pred_region
          %v532 = vld [vmem:[#allocation2] sm:$0xff]
          %v533 = vld [vmem:[#allocation2 + $0x8] sm:$0xff]
          %v534 = vld [vmem:[#allocation2 + $0x10] sm:$0xff]
          %v535 = vld [vmem:[#allocation2 + $0x18] sm:$0xff]
          %v536 = vld [vmem:[%s2] sm:$0x3]
          %v538 = vperm.slane %v536, 0
          %v539 = vperm.slane %v536, 1
          %v542 = vadd.f32 %v532, %v538
          %v543 = vadd.f32 %v533, %v539
          %v544 = vadd.f32 %v534, %v538
          %v545 = vadd.f32 %v535, %v539
          %v546 = vld [vmem:[%s372] sm:$0xff]
          %v547 = vld [vmem:[%s372 + $0x8] sm:$0xff]
          %v548 = vld [vmem:[%s372 + $0x10] sm:$0xff]
          %v549 = vld [vmem:[%s372 + $0x18] sm:$0xff]
          %v550 = vadd.f32 %v542, %v546
          %v551 = vadd.f32 %v543, %v547
          %v552 = vadd.f32 %v544, %v548
          %v553 = vadd.f32 %v545, %v549
          %v554 = vadd.f32 %v550, %v551
          %555 = vadd.xlane.f32.xlu0 %v554
          %v556 = vpop.xlane.xlu0 %555
          %v557 = vadd.f32 %v552, %v553
          %558 = vadd.xlane.f32.xlu0 %v557
          %v559 = vpop.xlane.xlu0 %558
          %v560 = vrcp.pop 256.0
          %v561 = vmul.f32 256.0, %v560
          %v562 = vsub.f32 1.0, %v561
          %v563 = vmul.f32 %v560, %v562
          %v564 = vadd.f32 %v560, %v563
          %vm565 = vweird.f32 %v560
          %v566 = vsel %vm565, %v560, %v564
          %v567 = vmul.f32 %v556, %v566
          %v568 = vmul.f32 %v559, %v566
          %v569 = vsub.f32 %v550, %v567
          %v570 = vsub.f32 %v551, %v567
          %v571 = vsub.f32 %v552, %v568
          %v572 = vsub.f32 %v553, %v568
          %v573 = vmul.f32 %v569, %v569
          %v574 = vmul.f32 %v570, %v570
          %v575 = vmul.f32 %v571, %v571
          %v576 = vmul.f32 %v572, %v572
          %v577 = vadd.f32 %v573, %v574
          %578 = vadd.xlane.f32.xlu0 %v577
          %v579 = vpop.xlane.xlu0 %578
          %v580 = vadd.f32 %v575, %v576
          %581 = vadd.xlane.f32.xlu0 %v580
          %v582 = vpop.xlane.xlu0 %581
          %v583 = vmul.f32 %v579, %v566
          %v584 = vmul.f32 %v582, %v566
          %v585 = vadd.f32 %v583, 1e-05
          %v586 = vadd.f32 %v584, 1e-05
          %v587 = vrsqrt.pop %v585
          %v588 = vmul.f32 %v587, %v585
          %v589 = vmul.f32 %v588, %v587
          %v590 = vmul.f32 0.5, %v589
          %v591 = vsub.f32 1.5, %v590
          %v592 = vmul.f32 %v587, %v591
          %vm593 = vweird.f32 %v585
          %vm594 = vweird.f32 %v587
          %vm595 = vmor %vm593, %vm594
          %v596 = vsel %vm595, %v587, %v592
          %v597 = vrsqrt.pop %v586
          %v598 = vmul.f32 %v597, %v586
          %v599 = vmul.f32 %v598, %v597
          %v600 = vmul.f32 0.5, %v599
          %v601 = vsub.f32 1.5, %v600
          %v602 = vmul.f32 %v597, %v601
          %vm603 = vweird.f32 %v586
          %vm604 = vweird.f32 %v597
          %vm605 = vmor %vm603, %vm604
          %v606 = vsel %vm605, %v597, %v602
          %v607 = vmul.f32 %v569, %v596
          %v608 = vmul.f32 %v570, %v596
          %v609 = vmul.f32 %v571, %v606
          %v610 = vmul.f32 %v572, %v606
          %v611 = vld [vmem:[%s4] sm:$0x3]
          %v613 = vperm.slane %v611, 0
          %v614 = vperm.slane %v611, 1
          %v617 = vmul.f32 %v607, %v613
          %v618 = vmul.f32 %v608, %v614
          %v619 = vmul.f32 %v609, %v613
          %v620 = vmul.f32 %v610, %v614
          %v621 = vld [vmem:[%s5] sm:$0x3]
          %v623 = vperm.slane %v621, 0
          %v624 = vperm.slane %v621, 1
          %v627 = vadd.f32 %v617, %v623
          %v628 = vadd.f32 %v618, %v624
          %v629 = vadd.f32 %v619, %v623
          %v630 = vadd.f32 %v620, %v624
          %631 = vst [vmem:[%s379] sm:$0xff] %v627
          %632 = vst [vmem:[%s379 + $0x8] sm:$0xff] %v628
          %633 = vst [vmem:[%s379 + $0x10] sm:$0xff] %v629
          %634 = vst [vmem:[%s379 + $0x18] sm:$0xff] %v630
        $region94: #{transformer_classifier.45} parent=77 // pred_fallthru
          _
        %s635 = smul.u32 2, %s24
        %p636 = scmp.lt.s32.totalorder %s635, 1
        %s637 = scalar_select %p636, %s635, 1
        %s638 = smul.addr %s637, 2
        %s639 = smul.addr %s638, 8
        %s640 = scalar_lea.vmem %s6, %s639
        // Predicated region
        $region95: #{transformer_classifier.45} parent=77 // pred_check
          %p641 = pneg %p193
        $region96: #{transformer_classifier.45} parent=77 // pred_check_branch
          %643 = sbr.rel (%p641) target = $region98
        $region97: #{transformer_classifier.45} parent=77 // pred_region
          %s644 = smul.u32 2, %s24
        $region98: #{transformer_classifier.45} parent=77 // pred_fallthru
          _
        // Predicated region
        $region99: #{transformer_classifier.45} parent=77 // pred_check
          %p645 = pneg %p193
        $region100: #{transformer_classifier.45} parent=77 // pred_check_branch
          %647 = sbr.rel (%p645) target = $region102
        $region101: #{transformer_classifier.45} parent=77 // pred_region
          %s648 = smul.u32 2, %s24
          %p649 = scmp.lt.s32.totalorder %s648, 1
          %s650 = scalar_select %p649, %s648, 1
          %s651 = smul.addr %s650, 2
          %s652 = smul.addr %s651, 8
          %s653 = scalar_lea.vmem %s6, %s652
        $region102: #{transformer_classifier.45} parent=77 // pred_fallthru
          _
      $region78: #{transformer_classifier.45} parent=5 // pred_fallthru
        _
      %p654 = scmp.le.s32.totalorder 2, %s15
      // Predicated region
      $region103: #{transformer_classifier.45} parent=5 // pred_check
        %p655 = pneg %p654
      $region104: #{transformer_classifier.45} parent=5 // pred_check_branch
        %657 = sbr.rel (%p655) target = $region106
      $region105: #{transformer_classifier.45} parent=5 // pred_region
        %s658 = ssub.s32 %s15, 2
      $region106: #{transformer_classifier.45} parent=5 // pred_fallthru
        _
    $region6: #{transformer_classifier.45} parent=1 // loop_footer
      %s19 = sadd.s32 1, %s15
    $region7: #{transformer_classifier.45} parent=1 // loop_footer_branch
      %14 = sbr.rel target = $region3
    $region8: #{transformer_classifier.45} parent=1 // loop_exit
      _
    %659 = vsyncpa [#allocation5], 1
    %s660 = scalar_lea.sflag [#allocation5], 1
    %661 = vsyncpa %s660, 1

// kernel: transformer_classifier.43
$region0: #{transformer_classifier.43}
  #allocation0 [shape = 'u32[]', space=smem, size = 0x4, offset = 0x4, fixed_abs, tag = 'smem constant byte address 0x4 - core index']
  #allocation1 [shape = 'u32[72,128]{1,0:T(1,128)}', space=vmem, size = 0x9000, scoped, tag = 'internal scratch']
  #allocation2 [shape = 'f32[16,256]{1,0:T(8,128)}', space=vmem, size = 0x4000, scoped, tag = 'scratch operand']
  %s0 = inlined_call_operand.vmem [shape: f32[16,256], index: 0, kind: input, shape index: {}]
  %s1 = inlined_call_operand.hbm [shape: bf16[256,768], index: 1, kind: input, shape index: {}]
  %s2 = inlined_call_operand.vmem [shape: f32[1,768], index: 2, kind: input, shape index: {}]
  %s3 = inlined_call_operand.vmem [shape: f32[16,768], index: 3, kind: output, shape index: {}]
  %s4 = sld [smem:[#allocation0]]
  $region114: #{transformer_classifier.43} parent=0
    _
  %s6 = ssub.s32 1, %s4
  %s7 = scalar_select 0, %s6, %s4
  $region1: #{transformer_classifier.43} parent=0
    #allocation3 [shape = 'u8[16384]{0}', space=vmem, size = 0x4000, scoped, tag = 'input window, operand 0']
    #allocation4 [shape = 'u8[131072]{0}', space=vmem, size = 0x20000, scoped, tag = 'input window, operand 1']
    #allocation5 [shape = 's32[2]{0}', space=sflag, size = 0x8, scoped, tag = 'scoped memory for transformer_classifier.43']
    #allocation6 [shape = 'u8[32768]{0}', space=vmem, size = 0x8000, scoped, tag = 'output window, operand 0']
    %8 = vsyncpa [#allocation5], 0
    %s9 = scalar_lea.sflag [#allocation5], 1
    %10 = vsyncpa %s9, 0
    loop: start=0, step=1, limit=8
    $region2: #{transformer_classifier.43} parent=1 // loop_pre_header
      _
    $region3: #{transformer_classifier.43} parent=1 // loop_header
      %s12 = sphi 0, %s16
      %p13 = scmp.ge.s32.totalorder %s12, 8
      %s19 = sphi 0, %s38
      %s20 = sphi 0, %s34
      %s21 = sphi 0, %s30
      %s22 = sphi 0, %s19
      %s23 = sphi 0, %s20
      %s24 = sphi 0, %s21
      %s25 = sphi 0, %s22
      %s26 = sphi 0, %s23
      %s27 = sphi 0, %s24
      %s43 = sphi 0, %s45
      %s46 = sphi 0, %s43
      %s47 = sphi 0, %s46
      %s63 = sphi 0, %s47
      %s71 = sphi 0, %s73
      %s74 = sphi 0, %s71
      %s75 = sphi 0, %s74
      %s91 = sphi 0, %s75
      %s97 = sphi 0, %s99
      %s100 = sphi 0, %s97
      %s101 = sphi 0, %s100
      %s117 = sphi 0, %s101
      %s125 = sphi 0, %s127
      %s128 = sphi 0, %s125
      %s129 = sphi 0, %s128
      %s145 = sphi 0, %s129
    $region4: #{transformer_classifier.43} parent=1 // loop_header_branch
      %15 = sbr.rel (%p13) target = $region8
    $region5: #{transformer_classifier.43} parent=1 // loop_body
      %s17 = ssub.s32 %s12, 1
      %s18 = ssub.s32 %s12, 2
      %s28 = sadd.s32 1, %s21
      %p29 = scmp.ge.s32.totalorder %s28, 2
      %s30 = scalar_select %p29, 0, %s28
      %s31 = sadd.s32 1, %s20
      %s32 = scalar_select %p29, %s31, %s20
      %p33 = scmp.ge.s32.totalorder %s32, 3
      %s34 = scalar_select %p33, 0, %s32
      %s35 = sadd.s32 1, %s19
      %s36 = scalar_select %p33, %s35, %s19
      %p37 = scmp.ge.s32.totalorder %s36, 1
      %s38 = scalar_select %p37, 0, %s36
      %s39 = ssub.s32 %s19, %s38
      %s40 = ssub.s32 %s21, %s30
      %s41 = sor.u32 %s39, %s40
      %p42 = scmp.eq.s32.totalorder %s41, 0
      %s44 = sadd.s32 %s43, 1
      %s45 = scalar_select %p42, %s43, %s44
      %p48 = pneg %p42
      %p49 = scmp.eq.s32.totalorder %s12, 5
      %p50 = por %p48, %p49
      %p51 = scmp.ne.s32.totalorder %s43, %s46
      %p52 = scmp.eq.s32.totalorder %s12, 0
      %p53 = por %p51, %p52
      %p54 = scmp.ne.s32.totalorder %s43, %s46
      %p55 = scmp.eq.s32.totalorder %s17, 5
      %p56 = por %p54, %p55
      %p57 = scmp.ne.s32.totalorder %s46, %s47
      %p58 = scmp.eq.s32.totalorder %s17, 0
      %p59 = por %p57, %p58
      %p60 = scmp.ne.s32.totalorder %s46, %s47
      %p61 = scmp.eq.s32.totalorder %s18, 5
      %p62 = por %p60, %p61
      %p64 = scmp.ne.s32.totalorder %s47, %s63
      %p65 = scmp.eq.s32.totalorder %s18, 0
      %p66 = por %p64, %p65
      %s67 = ssub.s32 %s21, %s30
      %s68 = ssub.s32 %s20, %s34
      %s69 = sor.u32 %s67, %s68
      %p70 = scmp.eq.s32.totalorder %s69, 0
      %s72 = sadd.s32 %s71, 1
      %s73 = scalar_select %p70, %s71, %s72
      %p76 = pneg %p70
      %p77 = scmp.eq.s32.totalorder %s12, 5
      %p78 = por %p76, %p77
      %p79 = scmp.ne.s32.totalorder %s71, %s74
      %p80 = scmp.eq.s32.totalorder %s12, 0
      %p81 = por %p79, %p80
      %p82 = scmp.ne.s32.totalorder %s71, %s74
      %p83 = scmp.eq.s32.totalorder %s17, 5
      %p84 = por %p82, %p83
      %p85 = scmp.ne.s32.totalorder %s74, %s75
      %p86 = scmp.eq.s32.totalorder %s17, 0
      %p87 = por %p85, %p86
      %p88 = scmp.ne.s32.totalorder %s74, %s75
      %p89 = scmp.eq.s32.totalorder %s18, 5
      %p90 = por %p88, %p89
      %p92 = scmp.ne.s32.totalorder %s75, %s91
      %p93 = scmp.eq.s32.totalorder %s18, 0
      %p94 = por %p92, %p93
      %s95 = ssub.s32 %s20, %s34
      %p96 = scmp.eq.s32.totalorder %s95, 0
      %s98 = sadd.s32 %s97, 1
      %s99 = scalar_select %p96, %s97, %s98
      %p102 = pneg %p96
      %p103 = scmp.eq.s32.totalorder %s12, 5
      %p104 = por %p102, %p103
      %p105 = scmp.ne.s32.totalorder %s97, %s100
      %p106 = scmp.eq.s32.totalorder %s12, 0
      %p107 = por %p105, %p106
      %p108 = scmp.ne.s32.totalorder %s97, %s100
      %p109 = scmp.eq.s32.totalorder %s17, 5
      %p110 = por %p108, %p109
      %p111 = scmp.ne.s32.totalorder %s100, %s101
      %p112 = scmp.eq.s32.totalorder %s17, 0
      %p113 = por %p111, %p112
      %p114 = scmp.ne.s32.totalorder %s100, %s101
      %p115 = scmp.eq.s32.totalorder %s18, 5
      %p116 = por %p114, %p115
      %p118 = scmp.ne.s32.totalorder %s101, %s117
      %p119 = scmp.eq.s32.totalorder %s18, 0
      %p120 = por %p118, %p119
      %s121 = ssub.s32 %s19, %s38
      %s122 = ssub.s32 %s20, %s34
      %s123 = sor.u32 %s121, %s122
      %p124 = scmp.eq.s32.totalorder %s123, 0
      %s126 = sadd.s32 %s125, 1
      %s127 = scalar_select %p124, %s125, %s126
      %p130 = pneg %p124
      %p131 = scmp.eq.s32.totalorder %s12, 5
      %p132 = por %p130, %p131
      %p133 = scmp.ne.s32.totalorder %s125, %s128
      %p134 = scmp.eq.s32.totalorder %s12, 0
      %p135 = por %p133, %p134
      %p136 = scmp.ne.s32.totalorder %s125, %s128
      %p137 = scmp.eq.s32.totalorder %s17, 5
      %p138 = por %p136, %p137
      %p139 = scmp.ne.s32.totalorder %s128, %s129
      %p140 = scmp.eq.s32.totalorder %s17, 0
      %p141 = por %p139, %p140
      %p142 = scmp.ne.s32.totalorder %s128, %s129
      %p143 = scmp.eq.s32.totalorder %s18, 5
      %p144 = por %p142, %p143
      %p146 = scmp.ne.s32.totalorder %s129, %s145
      %p147 = scmp.eq.s32.totalorder %s18, 0
      %p148 = por %p146, %p147
      %p149 = scmp.le.s32.totalorder 1, %s12
      %p150 = scmp.lt.s32.totalorder %s12, 7
      %p151 = pnand %p149, %p150
      %p152 = pneg %p151
      // Predicated region
      $region9: #{transformer_classifier.43} parent=5 // pred_check
        _
      $region10: #{transformer_classifier.43} parent=5 // pred_check_branch
        %154 = sbr.rel (%p151) target = $region12
      $region11: #{transformer_classifier.43} parent=5 // pred_region
        %s155 = ssub.s32 %s12, 1
      $region12: #{transformer_classifier.43} parent=5 // pred_fallthru
        _
      %p156 = scmp.lt.s32.totalorder %s12, 6
      // Predicated region
      $region13: #{transformer_classifier.43} parent=5 // pred_check
        %p157 = pneg %p156
      $region14: #{transformer_classifier.43} parent=5 // pred_check_branch
        %159 = sbr.rel (%p157) target = $region16
      $region15: #{transformer_classifier.43} parent=5 // pred_region
        // Predicated region
        $region17: #{transformer_classifier.43} parent=15 // pred_check
          %p160 = pneg %p53
        $region18: #{transformer_classifier.43} parent=15 // pred_check_branch
          %162 = sbr.rel (%p160) target = $region20
        $region19: #{transformer_classifier.43} parent=15 // pred_region
          %s163 = sand.u32 %s43, 1
          %s164 = sand.u32 %s43, 1
          %s165 = smul.addr %s164, 16
          %s166 = scalar_lea.vmem [#allocation3], %s165
          %s167 = smul.u32 2, %s19
          %s168 = smul.addr %s167, 2
          %s169 = sadd.s32 %s21, %s168
          %s170 = smul.addr %s169, 8
          %s171 = scalar_lea.vmem %s0, %s170
          // Predicated region
          $region21: #{transformer_classifier.43} parent=19 // pred_check
            _
          $region22: #{transformer_classifier.43} parent=19 // pred_check_branch
            %173 = sbr.rel (0) target = $region24
          $region23: #{transformer_classifier.43} parent=19 // pred_region
            // Predicated region
            $region25: #{transformer_classifier.43} parent=23 // pred_check
              _
            $region26: #{transformer_classifier.43} parent=23 // pred_check_branch
              %175 = sbr.rel (0) target = $region28
            $region27: #{transformer_classifier.43} parent=23 // pred_region
              // Predicated region
              $region40: #{transformer_classifier.43} parent=27 // pred_check
                _
              $region41: #{transformer_classifier.43} parent=27 // pred_check_branch
                %193 = sbr.rel (0) target = $region43
              $region42: #{transformer_classifier.43} parent=27 // pred_region
                loop: start=0, step=1, limit=1
                $region44: #{transformer_classifier.43} parent=42 // loop_pre_header
                  _
                $region45: #{transformer_classifier.43} parent=42 // loop_header
                  %s195 = sphi 0, %s199
                  %p196 = scmp.ge.s32.totalorder %s195, 1
                  %s200 = sphi %s171, %s171
                  %s201 = sphi %s166, %s166
                $region46: #{transformer_classifier.43} parent=42 // loop_header_branch
                  %198 = sbr.rel (%p196) target = $region50
                $region47: #{transformer_classifier.43} parent=42 // loop_body
                  %v202 = vld [vmem:[%s200] sm:$0xff]
                  %203 = vst [vmem:[%s201] sm:$0xff] %v202
                  %v204 = vld [vmem:[%s200 + $0x10] sm:$0xff]
                  %205 = vst [vmem:[%s201 + $0x8] sm:$0xff] %v204
                $region48: #{transformer_classifier.43} parent=42 // loop_footer
                  %s199 = sadd.s32 1, %s195
                $region49: #{transformer_classifier.43} parent=42 // loop_footer_branch
                  %194 = sbr.rel target = $region45
                $region50: #{transformer_classifier.43} parent=42 // loop_exit
                  _
              $region43: #{transformer_classifier.43} parent=27 // pred_fallthru
                _
              // Predicated region
              $region51: #{transformer_classifier.43} parent=27 // pred_check
                _
              $region52: #{transformer_classifier.43} parent=27 // pred_check_branch
                %207 = sbr.rel target = $region54
              $region53: #{transformer_classifier.43} parent=27 // pred_region
                _
              $region54: #{transformer_classifier.43} parent=27 // pred_fallthru
                _
            $region28: #{transformer_classifier.43} parent=23 // pred_fallthru
              _
            // Predicated region
            $region29: #{transformer_classifier.43} parent=23 // pred_check
              _
            $region30: #{transformer_classifier.43} parent=23 // pred_check_branch
              %177 = sbr.rel target = $region32
            $region31: #{transformer_classifier.43} parent=23 // pred_region
              %s179 = ssub.s32 256, 1
              loop: start=0, step=1, limit=1
              $region33: #{transformer_classifier.43} parent=31 // loop_pre_header
                _
              $region34: #{transformer_classifier.43} parent=31 // loop_header
                %s181 = sphi 0, %s185
                %p182 = scmp.ge.s32.totalorder %s181, 1
                %s186 = sphi %s171, %s171
                %s187 = sphi %s166, %s166
              $region35: #{transformer_classifier.43} parent=31 // loop_header_branch
                %184 = sbr.rel (%p182) target = $region39
              $region36: #{transformer_classifier.43} parent=31 // loop_body
                %v188 = vld [vmem:[%s186] sm:%s179]
                %189 = vst [vmem:[%s187] sm:%s179] %v188
                %v190 = vld [vmem:[%s186 + $0x10] sm:%s179]
                %191 = vst [vmem:[%s187 + $0x8] sm:%s179] %v190
              $region37: #{transformer_classifier.43} parent=31 // loop_footer
                %s185 = sadd.s32 1, %s181
              $region38: #{transformer_classifier.43} parent=31 // loop_footer_branch
                %180 = sbr.rel target = $region34
              $region39: #{transformer_classifier.43} parent=31 // loop_exit
                _
            $region32: #{transformer_classifier.43} parent=23 // pred_fallthru
              _
          $region24: #{transformer_classifier.43} parent=19 // pred_fallthru
            _
          %208 = vnop
        $region20: #{transformer_classifier.43} parent=15 // pred_fallthru
          _
        // Predicated region
        $region55: #{transformer_classifier.43} parent=15 // pred_check
          %p209 = pneg %p81
        $region56: #{transformer_classifier.43} parent=15 // pred_check_branch
          %211 = sbr.rel (%p209) target = $region58
        $region57: #{transformer_classifier.43} parent=15 // pred_region
          %s212 = sand.u32 %s71, 1
          %s213 = scalar_lea.sflag [#allocation5], %s212
          %s214 = sand.u32 %s71, 1
          %s215 = smul.addr %s214, 128
          %s216 = scalar_lea.vmem [#allocation4], %s215
          %s217 = smul.u32 16, %s21
          %s218 = smul.u32 2, %s20
          %220 = vsyncadd %s213, 0
          %s221 = smul.addr %s217, 6
          %s222 = sadd.s32 %s218, %s221
          %s223 = smul.addr %s222, 4
          %s224 = scalar_lea.hbm %s1, %s223
          %s225 = sshll.u32 %s224, 4
          %s226 = int_to_ptr.hbm [resolvable:$true] %s225
          %s227 = sshll.u32 %s216, 4
          %s228 = int_to_ptr.vmem [resolvable:$true] %s227
          %233 = dma.hbm_to_vmem [thread:$0]  %s226, 2048, %s228, %s213, 384, 128, 8
        $region58: #{transformer_classifier.43} parent=15 // pred_fallthru
          _
        // Predicated region
        $region59: #{transformer_classifier.43} parent=15 // pred_check
          %p234 = pneg %p107
        $region60: #{transformer_classifier.43} parent=15 // pred_check_branch
          %236 = sbr.rel (%p234) target = $region62
        $region61: #{transformer_classifier.43} parent=15 // pred_region
          %s237 = smul.u32 2, %s20
          %p238 = scmp.lt.s32.totalorder %s237, 5
          %s239 = scalar_select %p238, %s237, 5
          %s240 = scalar_lea.vmem %s2, %s239
          %s241 = smul.u32 2, %s20
        $region62: #{transformer_classifier.43} parent=15 // pred_fallthru
          _
      $region16: #{transformer_classifier.43} parent=5 // pred_fallthru
        _
      %p242 = scmp.le.s32.totalorder 1, %s12
      %p243 = scmp.lt.s32.totalorder %s12, 7
      %p244 = pnand %p242, %p243
      %p245 = pneg %p244
      // Predicated region
      $region63: #{transformer_classifier.43} parent=5 // pred_check
        _
      $region64: #{transformer_classifier.43} parent=5 // pred_check_branch
        %247 = sbr.rel (%p244) target = $region66
      $region65: #{transformer_classifier.43} parent=5 // pred_region
        %s248 = ssub.s32 %s12, 1
        %s249 = sand.u32 %s46, 1
        %s250 = sand.u32 %s46, 1
        %s251 = smul.addr %s250, 16
        %s252 = scalar_lea.vmem [#allocation3], %s251
        // Predicated region
        $region67: #{transformer_classifier.43} parent=65 // pred_check
          %p253 = pneg %p59
        $region68: #{transformer_classifier.43} parent=65 // pred_check_branch
          %255 = sbr.rel (%p253) target = $region70
        $region69: #{transformer_classifier.43} parent=65 // pred_region
          _
        $region70: #{transformer_classifier.43} parent=65 // pred_fallthru
          _
        %s256 = sand.u32 %s74, 1
        %s257 = scalar_lea.sflag [#allocation5], %s256
        %s258 = sand.u32 %s74, 1
        %s259 = smul.addr %s258, 128
        %s260 = scalar_lea.vmem [#allocation4], %s259
        // Predicated region
        $region71: #{transformer_classifier.43} parent=65 // pred_check
          %p261 = pneg %p87
        $region72: #{transformer_classifier.43} parent=65 // pred_check_branch
          %263 = sbr.rel (%p261) target = $region74
        $region73: #{transformer_classifier.43} parent=65 // pred_region
          %265 = dma.done %s257, 2048
        $region74: #{transformer_classifier.43} parent=65 // pred_fallthru
          _
        %s266 = sand.u32 %s46, 1
        %s267 = sand.u32 %s46, 1
        %s268 = smul.addr %s267, 16
        %s269 = scalar_lea.vmem [#allocation3], %s268
        %p270 = pneg %p59
        %p271 = pneg %p56
        %s272 = sand.u32 %s74, 1
        %s273 = scalar_lea.sflag [#allocation5], %s272
        %s274 = sand.u32 %s74, 1
        %s275 = smul.addr %s274, 128
        %s276 = scalar_lea.vmem [#allocation4], %s275
        %p277 = pneg %p87
        %p278 = pneg %p84
        %s279 = smul.u32 2, %s23
        %p280 = scmp.lt.s32.totalorder %s279, 5
        %s281 = scalar_select %p280, %s279, 5
        %s282 = scalar_lea.vmem %s2, %s281
        %p283 = pneg %p113
        %p284 = pneg %p110
        %p285 = pneg %p141
        %p286 = pneg %p138
        %s287 = sand.u32 %s128, 1
        %s288 = sand.u32 %s128, 1
        %s289 = smul.addr %s288, 32
        %s290 = scalar_lea.vmem [#allocation6], %s289
        %s291 = smul.u32 2, %s22
        %s292 = smul.u32 16, %s24
        %s293 = smul.u32 2, %s23
        %s294 = smul.u32 2, %s23
        %p295 = scmp.lt.s32.totalorder %s294, 5
        %s296 = scalar_select %p295, %s294, 5
        %s297 = scalar_lea.vmem %s2, %s296
        %s298 = smul.u32 2, %s23
        %s299 = smul.u32 2, %s22
        %s300 = smul.u32 2, %s23
        %p301 = scmp.eq.s32.totalorder %s24, 0
        // Predicated region
        $region75: #{transformer_classifier.43} parent=65 // pred_check
          %p302 = pneg %p301
        $region76: #{transformer_classifier.43} parent=65 // pred_check_branch
          %304 = sbr.rel (%p302) target = $region78
        $region77: #{transformer_classifier.43} parent=65 // pred_region
          %305 = vst [vmem:[#allocation2] sm:$0xff] 0.0
          %306 = vst [vmem:[#allocation2 + $0x8] sm:$0xff] 0.0
          %307 = vst [vmem:[#allocation2 + $0x10] sm:$0xff] 0.0
          %308 = vst [vmem:[#allocation2 + $0x18] sm:$0xff] 0.0
        $region78: #{transformer_classifier.43} parent=65 // pred_fallthru
          _
        %v309 = vld [vmem:[#allocation2] sm:$0xff]
        %v310 = vld [vmem:[#allocation2 + $0x8] sm:$0xff]
        %v311 = vld [vmem:[#allocation2 + $0x10] sm:$0xff]
        %v312 = vld [vmem:[#allocation2 + $0x18] sm:$0xff]
        %v313 = vld [vmem:[%s252] sm:$0xff]
        %v314 = vld [vmem:[%s252 + $0x8] sm:$0xff]
        %v315 = vpack.c.bf16 %v314, %v313
        %v316 = vld [vmem:[%s260] sm:$0xff]
        %v317 = vld [vmem:[%s260 + $0x8] sm:$0xff]
        %v318 = vld [vmem:[%s260 + $0x10] sm:$0xff]
        %v319 = vld [vmem:[%s260 + $0x18] sm:$0xff]
        %v320 = vld [vmem:[%s260 + $0x20] sm:$0xff]
        %v321 = vld [vmem:[%s260 + $0x28] sm:$0xff]
        %v322 = vld [vmem:[%s260 + $0x30] sm:$0xff]
        %v323 = vld [vmem:[%s260 + $0x38] sm:$0xff]
        %v324 = vld [vmem:[%s260 + $0x40] sm:$0xff]
        %v325 = vld [vmem:[%s260 + $0x48] sm:$0xff]
        %v326 = vld [vmem:[%s260 + $0x50] sm:$0xff]
        %v327 = vld [vmem:[%s260 + $0x58] sm:$0xff]
        %v328 = vld [vmem:[%s260 + $0x60] sm:$0xff]
        %v329 = vld [vmem:[%s260 + $0x68] sm:$0xff]
        %v330 = vld [vmem:[%s260 + $0x70] sm:$0xff]
        %v331 = vld [vmem:[%s260 + $0x78] sm:$0xff]
        %v348 = vunpack.c.l.b16 %v316
        %v349 = vunpack.c.h.b16 %v316
        %v350 = vunpack.c.l.b16 %v317
        %v351 = vunpack.c.h.b16 %v317
        %v352 = vunpack.c.l.b16 %v318
        %v353 = vunpack.c.h.b16 %v318
        %v354 = vunpack.c.l.b16 %v319
        %v355 = vunpack.c.h.b16 %v319
        %v356 = vunpack.c.l.b16 %v320
        %v357 = vunpack.c.h.b16 %v320
        %v358 = vunpack.c.l.b16 %v321
        %v359 = vunpack.c.h.b16 %v321
        %v360 = vunpack.c.l.b16 %v322
        %v361 = vunpack.c.h.b16 %v322
        %v362 = vunpack.c.l.b16 %v323
        %v363 = vunpack.c.h.b16 %v323
        %v364 = vunpack.c.l.b16 %v324
        %v365 = vunpack.c.h.b16 %v324
        %v366 = vunpack.c.l.b16 %v325
        %v367 = vunpack.c.h.b16 %v325
        %v368 = vunpack.c.l.b16 %v326
        %v369 = vunpack.c.h.b16 %v326
        %v370 = vunpack.c.l.b16 %v327
        %v371 = vunpack.c.h.b16 %v327
        %v372 = vunpack.c.l.b16 %v328
        %v373 = vunpack.c.h.b16 %v328
        %v374 = vunpack.c.l.b16 %v329
        %v375 = vunpack.c.h.b16 %v329
        %v376 = vunpack.c.l.b16 %v330
        %v377 = vunpack.c.h.b16 %v330
        %v378 = vunpack.c.l.b16 %v331
        %v379 = vunpack.c.h.b16 %v331
        %v380 = vpack.c.b16 %v350, %v348
        %v381 = vpack.c.b16 %v351, %v349
        %v382 = vpack.c.b16 %v354, %v352
        %v383 = vpack.c.b16 %v355, %v353
        %v384 = vpack.c.b16 %v358, %v356
        %v385 = vpack.c.b16 %v359, %v357
        %v386 = vpack.c.b16 %v362, %v360
        %v387 = vpack.c.b16 %v363, %v361
        %v388 = vpack.c.b16 %v366, %v364
        %v389 = vpack.c.b16 %v367, %v365
        %v390 = vpack.c.b16 %v370, %v368
        %v391 = vpack.c.b16 %v371, %v369
        %v392 = vpack.c.b16 %v374, %v372
        %v393 = vpack.c.b16 %v375, %v373
        %v394 = vpack.c.b16 %v378, %v376
        %v395 = vpack.c.b16 %v379, %v377
        %412 = vmatpush.bf16.msra.mxu0 %v394
        %413 = vmatpush.bf16.msra.mxu0 %v392
        %414 = vmatpush.bf16.msra.mxu0 %v390
        %415 = vmatpush.bf16.msra.mxu0 %v388
        %416 = vmatpush.bf16.msra.mxu0 %v386
        %417 = vmatpush.bf16.msra.mxu0 %v384
        %418 = vmatpush.bf16.msra.mxu0 %v382
        %419 = vmatpush.bf16.msra.mxu0 %v380
        %420 = vmatmul.bf16.gmra.mxu0 %v315
        %v421 = vpop.f32.mrf.mxu0
        %v422 = vadd.f32 0.0, %v421
        %v423 = vpop.f32.mrf.mxu0
        %v424 = vadd.f32 0.0, %v423
        %425 = vdwg.mxu0
        %426 = vmatpush.bf16.msra.mxu0 %v395
        %427 = vmatpush.bf16.msra.mxu0 %v393
        %428 = vmatpush.bf16.msra.mxu0 %v391
        %429 = vmatpush.bf16.msra.mxu0 %v389
        %430 = vmatpush.bf16.msra.mxu0 %v387
        %431 = vmatpush.bf16.msra.mxu0 %v385
        %432 = vmatpush.bf16.msra.mxu0 %v383
        %433 = vmatpush.bf16.msra.mxu0 %v381
        %434 = vmatmul.bf16.gmra.mxu0 %v315
        %v435 = vpop.f32.mrf.mxu0
        %v436 = vadd.f32 0.0, %v435
        %v437 = vpop.f32.mrf.mxu0
        %v438 = vadd.f32 0.0, %v437
        %439 = vdwg.mxu0
        %v440 = vadd.f32 %v309, %v422
        %v441 = vadd.f32 %v310, %v436
        %v442 = vadd.f32 %v311, %v424
        %v443 = vadd.f32 %v312, %v438
        %444 = vst [vmem:[#allocation2] sm:$0xff] %v440
        %445 = vst [vmem:[#allocation2 + $0x8] sm:$0xff] %v441
        %446 = vst [vmem:[#allocation2 + $0x10] sm:$0xff] %v442
        %447 = vst [vmem:[#allocation2 + $0x18] sm:$0xff] %v443
        %p448 = scmp.eq.s32.totalorder %s24, 1
        // Predicated region
        $region79: #{transformer_classifier.43} parent=65 // pred_check
          %p449 = pneg %p448
        $region80: #{transformer_classifier.43} parent=65 // pred_check_branch
          %451 = sbr.rel (%p449) target = $region82
        $region81: #{transformer_classifier.43} parent=65 // pred_region
          %v452 = vld [vmem:[#allocation2] sm:$0xff]
          %v453 = vld [vmem:[#allocation2 + $0x8] sm:$0xff]
          %v454 = vld [vmem:[#allocation2 + $0x10] sm:$0xff]
          %v455 = vld [vmem:[#allocation2 + $0x18] sm:$0xff]
          %v456 = vld [vmem:[%s297] sm:$0x3]
          %v458 = vperm.slane %v456, 0
          %v459 = vperm.slane %v456, 1
          %v462 = vadd.f32 %v452, %v458
          %v463 = vadd.f32 %v453, %v459
          %v464 = vadd.f32 %v454, %v458
          %v465 = vadd.f32 %v455, %v459
          %466 = vst [vmem:[%s290] sm:$0xff] %v462
          %467 = vst [vmem:[%s290 + $0x8] sm:$0xff] %v463
          %468 = vst [vmem:[%s290 + $0x10] sm:$0xff] %v464
          %469 = vst [vmem:[%s290 + $0x18] sm:$0xff] %v465
        $region82: #{transformer_classifier.43} parent=65 // pred_fallthru
          _
        %s470 = sand.u32 %s128, 1
        %s471 = sand.u32 %s128, 1
        %s472 = smul.addr %s471, 32
        %s473 = scalar_lea.vmem [#allocation6], %s472
        // Predicated region
        $region83: #{transformer_classifier.43} parent=65 // pred_check
          %p474 = pneg %p138
        $region84: #{transformer_classifier.43} parent=65 // pred_check_branch
          %476 = sbr.rel (%p474) target = $region86
        $region85: #{transformer_classifier.43} parent=65 // pred_region
          %s477 = smul.u32 2, %s22
          %s478 = smul.u32 2, %s23
          %s479 = smul.addr %s477, 6
          %s480 = sadd.s32 %s478, %s479
          %s481 = smul.addr %s480, 8
          %s482 = scalar_lea.vmem %s3, %s481
          // Predicated region
          $region87: #{transformer_classifier.43} parent=85 // pred_check
            _
          $region88: #{transformer_classifier.43} parent=85 // pred_check_branch
            %484 = sbr.rel (0) target = $region90
          $region89: #{transformer_classifier.43} parent=85 // pred_region
            // Predicated region
            $region91: #{transformer_classifier.43} parent=89 // pred_check
              _
            $region92: #{transformer_classifier.43} parent=89 // pred_check_branch
              %486 = sbr.rel (0) target = $region94
            $region93: #{transformer_classifier.43} parent=89 // pred_region
              loop: start=0, step=1, limit=1
              $region95: #{transformer_classifier.43} parent=93 // loop_pre_header
                _
              $region96: #{transformer_classifier.43} parent=93 // loop_header
                %s488 = sphi 0, %s492
                %p489 = scmp.ge.s32.totalorder %s488, 1
                %s493 = sphi %s473, %s473
                %s494 = sphi %s482, %s482
              $region97: #{transformer_classifier.43} parent=93 // loop_header_branch
                %491 = sbr.rel (%p489) target = $region101
              $region98: #{transformer_classifier.43} parent=93 // loop_body
                %v495 = vld [vmem:[%s493] sm:$0xff]
                %496 = vst [vmem:[%s494] sm:$0xff] %v495
                %v497 = vld [vmem:[%s493 + $0x8] sm:$0xff]
                %498 = vst [vmem:[%s494 + $0x8] sm:$0xff] %v497
                %v499 = vld [vmem:[%s493 + $0x10] sm:$0xff]
                %500 = vst [vmem:[%s494 + $0x30] sm:$0xff] %v499
                %v501 = vld [vmem:[%s493 + $0x18] sm:$0xff]
                %502 = vst [vmem:[%s494 + $0x38] sm:$0xff] %v501
              $region99: #{transformer_classifier.43} parent=93 // loop_footer
                %s492 = sadd.s32 1, %s488
              $region100: #{transformer_classifier.43} parent=93 // loop_footer_branch
                %487 = sbr.rel target = $region96
              $region101: #{transformer_classifier.43} parent=93 // loop_exit
                _
            $region94: #{transformer_classifier.43} parent=89 // pred_fallthru
              _
            // Predicated region
            $region102: #{transformer_classifier.43} parent=89 // pred_check
              _
            $region103: #{transformer_classifier.43} parent=89 // pred_check_branch
              %504 = sbr.rel target = $region105
            $region104: #{transformer_classifier.43} parent=89 // pred_region
              _
            $region105: #{transformer_classifier.43} parent=89 // pred_fallthru
              _
          $region90: #{transformer_classifier.43} parent=85 // pred_fallthru
            _
          %505 = vnop
        $region86: #{transformer_classifier.43} parent=65 // pred_fallthru
          _
      $region66: #{transformer_classifier.43} parent=5 // pred_fallthru
        _
      %p506 = scmp.le.s32.totalorder 2, %s12
      // Predicated region
      $region106: #{transformer_classifier.43} parent=5 // pred_check
        %p507 = pneg %p506
      $region107: #{transformer_classifier.43} parent=5 // pred_check_branch
        %509 = sbr.rel (%p507) target = $region109
      $region108: #{transformer_classifier.43} parent=5 // pred_region
        %s510 = ssub.s32 %s12, 2
        // Predicated region
        $region110: #{transformer_classifier.43} parent=108 // pred_check
          %p511 = pneg %p144
        $region111: #{transformer_classifier.43} parent=108 // pred_check_branch
          %513 = sbr.rel (%p511) target = $region113
        $region112: #{transformer_classifier.43} parent=108 // pred_region
          %s514 = sand.u32 %s129, 1
          %s515 = sand.u32 %s129, 1
          %s516 = smul.addr %s515, 32
          %s517 = scalar_lea.vmem [#allocation6], %s516
        $region113: #{transformer_classifier.43} parent=108 // pred_fallthru
          _
      $region109: #{transformer_classifier.43} parent=5 // pred_fallthru
        _
    $region6: #{transformer_classifier.43} parent=1 // loop_footer
      %s16 = sadd.s32 1, %s12
    $region7: #{transformer_classifier.43} parent=1 // loop_footer_branch
      %11 = sbr.rel target = $region3
    $region8: #{transformer_classifier.43} parent=1 // loop_exit
      _
    %518 = vsyncpa [#allocation5], 1
    %s519 = scalar_lea.sflag [#allocation5], 1
    %520 = vsyncpa %s519, 1

// kernel: transformer_classifier.44
$region0: #{transformer_classifier.44}
  #allocation0 [shape = 'u32[]', space=smem, size = 0x4, offset = 0x4, fixed_abs, tag = 'smem constant byte address 0x4 - core index']
  #allocation1 [shape = 'u32[72,128]{1,0:T(1,128)}', space=vmem, size = 0x9000, scoped, tag = 'internal scratch']
  %s0 = inlined_call_operand.vmem [shape: f32[16,768], index: 0, kind: input, shape index: {}]
  %s1 = inlined_call_operand.vmem [shape: f32[16,256], index: 1, kind: output, shape index: {}]
  %s2 = sld [smem:[#allocation0]]
  $region37: #{transformer_classifier.44} parent=0
    _
  %s4 = ssub.s32 1, %s2
  %s5 = scalar_select 0, %s4, %s2
  loop: start=0, step=1, limit=4
  $region2: #{transformer_classifier.44} parent=0 // loop_pre_header
    _
  $region3: #{transformer_classifier.44} parent=0 // loop_header
    %s7 = sphi 0, %s11
    %p8 = scmp.ge.s32.totalorder %s7, 4
    %s17 = sphi 0, %s19
    %s20 = sphi 0, %s17
    %s21 = sphi 0, %s20
    %s37 = sphi 0, %s21
    %s43 = sphi 0, %s45
    %s46 = sphi 0, %s43
    %s47 = sphi 0, %s46
    %s63 = sphi 0, %s47
  $region4: #{transformer_classifier.44} parent=0 // loop_header_branch
    %10 = sbr.rel (%p8) target = $region8
  $region5: #{transformer_classifier.44} parent=0 // loop_body
    %s12 = ssub.s32 %s7, 1
    %s13 = ssub.s32 %s7, 2
    %s14 = sadd.s32 %s7, 1
    %s15 = ssub.s32 %s7, %s14
    %p16 = scmp.eq.s32.totalorder %s15, 0
    %s18 = sadd.s32 %s17, 1
    %s19 = scalar_select %p16, %s17, %s18
    %p22 = pneg %p16
    %p23 = scmp.eq.s32.totalorder %s7, 1
    %p24 = por %p22, %p23
    %p25 = scmp.ne.s32.totalorder %s17, %s20
    %p26 = scmp.eq.s32.totalorder %s7, 0
    %p27 = por %p25, %p26
    %p28 = scmp.ne.s32.totalorder %s17, %s20
    %p29 = scmp.eq.s32.totalorder %s12, 1
    %p30 = por %p28, %p29
    %p31 = scmp.ne.s32.totalorder %s20, %s21
    %p32 = scmp.eq.s32.totalorder %s12, 0
    %p33 = por %p31, %p32
    %p34 = scmp.ne.s32.totalorder %s20, %s21
    %p35 = scmp.eq.s32.totalorder %s13, 1
    %p36 = por %p34, %p35
    %p38 = scmp.ne.s32.totalorder %s21, %s37
    %p39 = scmp.eq.s32.totalorder %s13, 0
    %p40 = por %p38, %p39
    %s41 = ssub.s32 %s7, %s14
    %p42 = scmp.eq.s32.totalorder %s41, 0
    %s44 = sadd.s32 %s43, 1
    %s45 = scalar_select %p42, %s43, %s44
    %p48 = pneg %p42
    %p49 = scmp.eq.s32.totalorder %s7, 1
    %p50 = por %p48, %p49
    %p51 = scmp.ne.s32.totalorder %s43, %s46
    %p52 = scmp.eq.s32.totalorder %s7, 0
    %p53 = por %p51, %p52
    %p54 = scmp.ne.s32.totalorder %s43, %s46
    %p55 = scmp.eq.s32.totalorder %s12, 1
    %p56 = por %p54, %p55
    %p57 = scmp.ne.s32.totalorder %s46, %s47
    %p58 = scmp.eq.s32.totalorder %s12, 0
    %p59 = por %p57, %p58
    %p60 = scmp.ne.s32.totalorder %s46, %s47
    %p61 = scmp.eq.s32.totalorder %s13, 1
    %p62 = por %p60, %p61
    %p64 = scmp.ne.s32.totalorder %s47, %s63
    %p65 = scmp.eq.s32.totalorder %s13, 0
    %p66 = por %p64, %p65
    %p67 = scmp.le.s32.totalorder 1, %s7
    %p68 = scmp.lt.s32.totalorder %s7, 3
    %p69 = pnand %p67, %p68
    %p70 = pneg %p69
    // Predicated region
    $region9: #{transformer_classifier.44} parent=5 // pred_check
      _
    $region10: #{transformer_classifier.44} parent=5 // pred_check_branch
      %72 = sbr.rel (%p69) target = $region12
    $region11: #{transformer_classifier.44} parent=5 // pred_region
      %s73 = ssub.s32 %s7, 1
    $region12: #{transformer_classifier.44} parent=5 // pred_fallthru
      _
    %p74 = scmp.lt.s32.totalorder %s7, 2
    // Predicated region
    $region13: #{transformer_classifier.44} parent=5 // pred_check
      %p75 = pneg %p74
    $region14: #{transformer_classifier.44} parent=5 // pred_check_branch
      %77 = sbr.rel (%p75) target = $region16
    $region15: #{transformer_classifier.44} parent=5 // pred_region
      // Predicated region
      $region17: #{transformer_classifier.44} parent=15 // pred_check
        %p78 = pneg %p27
      $region18: #{transformer_classifier.44} parent=15 // pred_check_branch
        %80 = sbr.rel (%p78) target = $region20
      $region19: #{transformer_classifier.44} parent=15 // pred_region
        %p81 = scmp.lt.s32.totalorder %s7, 1
        %s82 = scalar_select %p81, %s7, 1
        %s83 = smul.addr %s82, 6
        %s84 = smul.addr %s83, 8
        %s85 = scalar_lea.vmem %s0, %s84
      $region20: #{transformer_classifier.44} parent=15 // pred_fallthru
        _
    $region16: #{transformer_classifier.44} parent=5 // pred_fallthru
      _
    %p86 = scmp.le.s32.totalorder 1, %s7
    %p87 = scmp.lt.s32.totalorder %s7, 3
    %p88 = pnand %p86, %p87
    %p89 = pneg %p88
    // Predicated region
    $region21: #{transformer_classifier.44} parent=5 // pred_check
      _
    $region22: #{transformer_classifier.44} parent=5 // pred_check_branch
      %91 = sbr.rel (%p88) target = $region24
    $region23: #{transformer_classifier.44} parent=5 // pred_region
      %s92 = ssub.s32 %s7, 1
      %p93 = scmp.lt.s32.totalorder %s12, 1
      %s94 = scalar_select %p93, %s12, 1
      %s95 = smul.addr %s94, 6
      %s96 = smul.addr %s95, 8
      %s97 = scalar_lea.vmem %s0, %s96
      %p98 = pneg %p33
      %p99 = pneg %p30
      %p100 = pneg %p59
      %p101 = pneg %p56
      %p102 = scmp.lt.s32.totalorder %s12, 1
      %s103 = scalar_select %p102, %s12, 1
      %s104 = smul.addr %s103, 2
      %s105 = smul.addr %s104, 8
      %s106 = scalar_lea.vmem %s1, %s105
      %p107 = scmp.lt.s32.totalorder %s12, 1
      %s108 = scalar_select %p107, %s12, 1
      %s109 = smul.addr %s108, 6
      %s110 = smul.addr %s109, 8
      %s111 = scalar_lea.vmem %s0, %s110
      %p112 = scmp.lt.s32.totalorder %s12, 1
      %s113 = scalar_select %p112, %s12, 1
      %s114 = smul.addr %s113, 2
      %s115 = smul.addr %s114, 8
      %s116 = scalar_lea.vmem %s1, %s115
      %v117 = vld [vmem:[%s111] sm:$0xff]
      %v118 = vmul.f32 %v117, 0.125
      %v119 = vld [vmem:[%s111 + $0x10] sm:$0xff]
      %v120 = vld [vmem:[%s111 + $0x20] sm:$0xff]
      %vm121 = vcmask 523264
      %v123 = vsel %vm121, %v118, 0
      %v126 = vsel %vm121, %v119, 0
      %128 = vmatpush.xpose.msra.mxu0 0.0
      %129 = vmatpush.xpose.msra.mxu0 0.0
      %130 = vmatpush.xpose.msra.mxu0 0.0
      %131 = vmatpush.xpose.msra.mxu0 0.0
      %132 = vmatpush.xpose.msra.mxu0 0.0
      %133 = vmatpush.xpose.msra.mxu0 0.0
      %134 = vmatpush.xpose.msra.mxu0 0.0
      %135 = vmatpush.xpose.msra.mxu0 0.0
      %136 = vmatpush.xpose.msra.mxu0 0.0
      %137 = vmatpush.xpose.msra.mxu0 0.0
      %138 = vmatpush.xpose.msra.mxu0 0.0
      %139 = vmatpush.xpose.msra.mxu0 0.0
      %140 = vmatpush.xpose.msra.mxu0 0.0
      %141 = vmatpush.xpose.msra.mxu0 0.0
      %142 = vmatpush.xpose.msra.mxu0 0.0
      %143 = vmatpush.xpose.msra.mxu0 %v126
      %144 = vmatmul.f32.gmra.mxu0 %v123
      %v145 = vpop.f32.mrf.mxu0
      %v146 = vadd.f32 0.0, %v145
      %147 = vdwg.mxu0
      %vm148 = vcmask 64512
      %v149 = vsel %vm148, %v146, -inf
      %150 = vmax.xlane.f32.xlu0 %v149
      %v151 = vpop.xlane.xlu0 %150
      %v152 = vsub.f32 %v146, %v151
      %v153 = vmul.f32 %v152, 1.442695
      %v154 = vpow.pop %v153
      %v155 = vsel %vm148, %v154, 0.0
      %156 = vadd.xlane.f32.xlu0 %v155
      %v157 = vpop.xlane.xlu0 %156
      %v158 = vrcp.pop %v157
      %v159 = vmul.f32 %v154, %v158
      %v161 = vsel %vm148, %v159, 0
      %163 = vmatpush.msra.mxu0 0.0
      %164 = vmatpush.msra.mxu0 0.0
      %165 = vmatpush.msra.mxu0 0.0
      %166 = vmatpush.msra.mxu0 0.0
      %167 = vmatpush.msra.mxu0 0.0
      %168 = vmatpush.msra.mxu0 0.0
      %169 = vmatpush.msra.mxu0 0.0
      %170 = vmatpush.msra.mxu0 0.0
      %171 = vmatpush.msra.mxu0 0.0
      %172 = vmatpush.msra.mxu0 0.0
      %173 = vmatpush.msra.mxu0 0.0
      %174 = vmatpush.msra.mxu0 0.0
      %175 = vmatpush.msra.mxu0 0.0
      %176 = vmatpush.msra.mxu0 0.0
      %177 = vmatpush.msra.mxu0 0.0
      %178 = vmatpush.msra.mxu0 %v120
      %179 = vmatmul.f32.gmra.mxu0 %v161
      %v180 = vpop.f32.mrf.mxu0
      %v181 = vadd.f32 0.0, %v180
      %182 = vdwg.mxu0
      %183 = vrot.lane.b32.xlu0 %v118, 64
      %v184 = vpop.permute.xlu0 %183
      %185 = vrot.lane.b32.xlu0 %v119, 64
      %v186 = vpop.permute.xlu0 %185
      %v187 = vsel %vm121, %v184, 0
      %v189 = vsel %vm121, %v186, 0
      %191 = vmatpush.xpose.msra.mxu0 0.0
      %192 = vmatpush.xpose.msra.mxu0 0.0
      %193 = vmatpush.xpose.msra.mxu0 0.0
      %194 = vmatpush.xpose.msra.mxu0 0.0
      %195 = vmatpush.xpose.msra.mxu0 0.0
      %196 = vmatpush.xpose.msra.mxu0 0.0
      %197 = vmatpush.xpose.msra.mxu0 0.0
      %198 = vmatpush.xpose.msra.mxu0 0.0
      %199 = vmatpush.xpose.msra.mxu0 0.0
      %200 = vmatpush.xpose.msra.mxu0 0.0
      %201 = vmatpush.xpose.msra.mxu0 0.0
      %202 = vmatpush.xpose.msra.mxu0 0.0
      %203 = vmatpush.xpose.msra.mxu0 0.0
      %204 = vmatpush.xpose.msra.mxu0 0.0
      %205 = vmatpush.xpose.msra.mxu0 0.0
      %206 = vmatpush.xpose.msra.mxu0 %v189
      %207 = vmatmul.f32.gmra.mxu0 %v187
      %v208 = vpop.f32.mrf.mxu0
      %v209 = vadd.f32 0.0, %v208
      %210 = vdwg.mxu0
      %v211 = vsel %vm148, %v209, -inf
      %212 = vmax.xlane.f32.xlu0 %v211
      %v213 = vpop.xlane.xlu0 %212
      %v214 = vsub.f32 %v209, %v213
      %v215 = vmul.f32 %v214, 1.442695
      %v216 = vpow.pop %v215
      %v217 = vsel %vm148, %v216, 0.0
      %218 = vadd.xlane.f32.xlu0 %v217
      %v219 = vpop.xlane.xlu0 %218
      %v220 = vrcp.pop %v219
      %v221 = vmul.f32 %v216, %v220
      %223 = vrot.lane.b32.xlu0 %v120, 64
      %v224 = vpop.permute.xlu0 %223
      %v227 = vsel %vm148, %v221, 0
      %229 = vmatpush.msra.mxu0 0.0
      %230 = vmatpush.msra.mxu0 0.0
      %231 = vmatpush.msra.mxu0 0.0
      %232 = vmatpush.msra.mxu0 0.0
      %233 = vmatpush.msra.mxu0 0.0
      %234 = vmatpush.msra.mxu0 0.0
      %235 = vmatpush.msra.mxu0 0.0
      %236 = vmatpush.msra.mxu0 0.0
      %237 = vmatpush.msra.mxu0 0.0
      %238 = vmatpush.msra.mxu0 0.0
      %239 = vmatpush.msra.mxu0 0.0
      %240 = vmatpush.msra.mxu0 0.0
      %241 = vmatpush.msra.mxu0 0.0
      %242 = vmatpush.msra.mxu0 0.0
      %243 = vmatpush.msra.mxu0 0.0
      %244 = vmatpush.msra.mxu0 %v224
      %245 = vmatmul.f32.gmra.mxu0 %v227
      %v246 = vpop.f32.mrf.mxu0
      %v247 = vadd.f32 0.0, %v246
      %248 = vdwg.mxu0
      %v249 = vld [vmem:[%s111 + $0x8] sm:$0xff]
      %v250 = vmul.f32 %v249, 0.125
      %v251 = vld [vmem:[%s111 + $0x18] sm:$0xff]
      %v252 = vld [vmem:[%s111 + $0x28] sm:$0xff]
      %v254 = vsel %vm121, %v250, 0
      %v257 = vsel %vm121, %v251, 0
      %259 = vmatpush.xpose.msra.mxu0 0.0
      %260 = vmatpush.xpose.msra.mxu0 0.0
      %261 = vmatpush.xpose.msra.mxu0 0.0
      %262 = vmatpush.xpose.msra.mxu0 0.0
      %263 = vmatpush.xpose.msra.mxu0 0.0
      %264 = vmatpush.xpose.msra.mxu0 0.0
      %265 = vmatpush.xpose.msra.mxu0 0.0
      %266 = vmatpush.xpose.msra.mxu0 0.0
      %267 = vmatpush.xpose.msra.mxu0 0.0
      %268 = vmatpush.xpose.msra.mxu0 0.0
      %269 = vmatpush.xpose.msra.mxu0 0.0
      %270 = vmatpush.xpose.msra.mxu0 0.0
      %271 = vmatpush.xpose.msra.mxu0 0.0
      %272 = vmatpush.xpose.msra.mxu0 0.0
      %273 = vmatpush.xpose.msra.mxu0 0.0
      %274 = vmatpush.xpose.msra.mxu0 %v257
      %275 = vmatmul.f32.gmra.mxu0 %v254
      %v276 = vpop.f32.mrf.mxu0
      %v277 = vadd.f32 0.0, %v276
      %278 = vdwg.mxu0
      %v279 = vsel %vm148, %v277, -inf
      %280 = vmax.xlane.f32.xlu0 %v279
      %v281 = vpop.xlane.xlu0 %280
      %v282 = vsub.f32 %v277, %v281
      %v283 = vmul.f32 %v282, 1.442695
      %v284 = vpow.pop %v283
      %v285 = vsel %vm148, %v284, 0.0
      %286 = vadd.xlane.f32.xlu0 %v285
      %v287 = vpop.xlane.xlu0 %286
      %v288 = vrcp.pop %v287
      %v289 = vmul.f32 %v284, %v288
      %v291 = vsel %vm148, %v289, 0
      %293 = vmatpush.msra.mxu0 0.0
      %294 = vmatpush.msra.mxu0 0.0
      %295 = vmatpush.msra.mxu0 0.0
      %296 = vmatpush.msra.mxu0 0.0
      %297 = vmatpush.msra.mxu0 0.0
      %298 = vmatpush.msra.mxu0 0.0
      %299 = vmatpush.msra.mxu0 0.0
      %300 = vmatpush.msra.mxu0 0.0
      %301 = vmatpush.msra.mxu0 0.0
      %302 = vmatpush.msra.mxu0 0.0
      %303 = vmatpush.msra.mxu0 0.0
      %304 = vmatpush.msra.mxu0 0.0
      %305 = vmatpush.msra.mxu0 0.0
      %306 = vmatpush.msra.mxu0 0.0
      %307 = vmatpush.msra.mxu0 0.0
      %308 = vmatpush.msra.mxu0 %v252
      %309 = vmatmul.f32.gmra.mxu0 %v291
      %v310 = vpop.f32.mrf.mxu0
      %v311 = vadd.f32 0.0, %v310
      %312 = vdwg.mxu0
      %313 = vrot.lane.b32.xlu0 %v250, 64
      %v314 = vpop.permute.xlu0 %313
      %315 = vrot.lane.b32.xlu0 %v251, 64
      %v316 = vpop.permute.xlu0 %315
      %v317 = vsel %vm121, %v314, 0
      %v319 = vsel %vm121, %v316, 0
      %321 = vmatpush.xpose.msra.mxu0 0.0
      %322 = vmatpush.xpose.msra.mxu0 0.0
      %323 = vmatpush.xpose.msra.mxu0 0.0
      %324 = vmatpush.xpose.msra.mxu0 0.0
      %325 = vmatpush.xpose.msra.mxu0 0.0
      %326 = vmatpush.xpose.msra.mxu0 0.0
      %327 = vmatpush.xpose.msra.mxu0 0.0
      %328 = vmatpush.xpose.msra.mxu0 0.0
      %329 = vmatpush.xpose.msra.mxu0 0.0
      %330 = vmatpush.xpose.msra.mxu0 0.0
      %331 = vmatpush.xpose.msra.mxu0 0.0
      %332 = vmatpush.xpose.msra.mxu0 0.0
      %333 = vmatpush.xpose.msra.mxu0 0.0
      %334 = vmatpush.xpose.msra.mxu0 0.0
      %335 = vmatpush.xpose.msra.mxu0 0.0
      %336 = vmatpush.xpose.msra.mxu0 %v319
      %337 = vmatmul.f32.gmra.mxu0 %v317
      %v338 = vpop.f32.mrf.mxu0
      %v339 = vadd.f32 0.0, %v338
      %340 = vdwg.mxu0
      %v341 = vsel %vm148, %v339, -inf
      %342 = vmax.xlane.f32.xlu0 %v341
      %v343 = vpop.xlane.xlu0 %342
      %v344 = vsub.f32 %v339, %v343
      %v345 = vmul.f32 %v344, 1.442695
      %v346 = vpow.pop %v345
      %v347 = vsel %vm148, %v346, 0.0
      %348 = vadd.xlane.f32.xlu0 %v347
      %v349 = vpop.xlane.xlu0 %348
      %v350 = vrcp.pop %v349
      %v351 = vmul.f32 %v346, %v350
      %353 = vrot.lane.b32.xlu0 %v252, 64
      %v354 = vpop.permute.xlu0 %353
      %v357 = vsel %vm148, %v351, 0
      %359 = vmatpush.msra.mxu0 0.0
      %360 = vmatpush.msra.mxu0 0.0
      %361 = vmatpush.msra.mxu0 0.0
      %362 = vmatpush.msra.mxu0 0.0
      %363 = vmatpush.msra.mxu0 0.0
      %364 = vmatpush.msra.mxu0 0.0
      %365 = vmatpush.msra.mxu0 0.0
      %366 = vmatpush.msra.mxu0 0.0
      %367 = vmatpush.msra.mxu0 0.0
      %368 = vmatpush.msra.mxu0 0.0
      %369 = vmatpush.msra.mxu0 0.0
      %370 = vmatpush.msra.mxu0 0.0
      %371 = vmatpush.msra.mxu0 0.0
      %372 = vmatpush.msra.mxu0 0.0
      %373 = vmatpush.msra.mxu0 0.0
      %374 = vmatpush.msra.mxu0 %v354
      %375 = vmatmul.f32.gmra.mxu0 %v357
      %v376 = vpop.f32.mrf.mxu0
      %v377 = vadd.f32 0.0, %v376
      %378 = vdwg.mxu0
      %380 = vrot.lane.b32.xlu0 %v247, 64
      %v381 = vpop.permute.xlu0 %380
      %384 = vrot.lane.b32.xlu0 %v377, 64
      %v385 = vpop.permute.xlu0 %384
      %v387 = vsel %vm121, %v181, %v381
      %v388 = vsel %vm121, %v311, %v385
      %389 = vst [vmem:[%s116] sm:$0xff] %v387
      %390 = vst [vmem:[%s116 + $0x8] sm:$0xff] %v388
      %p391 = scmp.lt.s32.totalorder %s12, 1
      %s392 = scalar_select %p391, %s12, 1
      %s393 = smul.addr %s392, 2
      %s394 = smul.addr %s393, 8
      %s395 = scalar_lea.vmem %s1, %s394
      // Predicated region
      $region25: #{transformer_classifier.44} parent=23 // pred_check
        %p396 = pneg %p56
      $region26: #{transformer_classifier.44} parent=23 // pred_check_branch
        %398 = sbr.rel (%p396) target = $region28
      $region27: #{transformer_classifier.44} parent=23 // pred_region
        _
      $region28: #{transformer_classifier.44} parent=23 // pred_fallthru
        _
    $region24: #{transformer_classifier.44} parent=5 // pred_fallthru
      _
    %p399 = scmp.le.s32.totalorder 2, %s7
    // Predicated region
    $region29: #{transformer_classifier.44} parent=5 // pred_check
      %p400 = pneg %p399
    $region30: #{transformer_classifier.44} parent=5 // pred_check_branch
      %402 = sbr.rel (%p400) target = $region32
    $region31: #{transformer_classifier.44} parent=5 // pred_region
      %s403 = ssub.s32 %s7, 2
      // Predicated region
      $region33: #{transformer_classifier.44} parent=31 // pred_check
        %p404 = pneg %p62
      $region34: #{transformer_classifier.44} parent=31 // pred_check_branch
        %406 = sbr.rel (%p404) target = $region36
      $region35: #{transformer_classifier.44} parent=31 // pred_region
        %p407 = scmp.lt.s32.totalorder %s13, 1
        %s408 = scalar_select %p407, %s13, 1
        %s409 = smul.addr %s408, 2
        %s410 = smul.addr %s409, 8
        %s411 = scalar_lea.vmem %s1, %s410
      $region36: #{transformer_classifier.44} parent=31 // pred_fallthru
        _
    $region32: #{transformer_classifier.44} parent=5 // pred_fallthru
      _
  $region6: #{transformer_classifier.44} parent=0 // loop_footer
    %s11 = sadd.s32 1, %s7
  $region7: #{transformer_classifier.44} parent=0 // loop_footer_branch
    %6 = sbr.rel target = $region3
  $region8: #{transformer_classifier.44} parent=0 // loop_exit
    _

// kernel: transformer_classifier.46
$region0: #{transformer_classifier.46}
  #allocation0 [shape = 'u32[]', space=smem, size = 0x4, offset = 0x4, fixed_abs, tag = 'smem constant byte address 0x4 - core index']
  #allocation1 [shape = 'u32[72,128]{1,0:T(1,128)}', space=vmem, size = 0x9000, scoped, tag = 'internal scratch']
  #allocation2 [shape = 'f32[16,256]{1,0:T(8,128)}', space=vmem, size = 0x4000, scoped, tag = 'scratch operand']
  %s0 = inlined_call_operand.vmem [shape: f32[16,256], index: 0, kind: input, shape index: {}]
  %s1 = inlined_call_operand.hbm [shape: bf16[256,256], index: 1, kind: input, shape index: {}]
  %s2 = inlined_call_operand.vmem [shape: f32[1,256], index: 2, kind: input, shape index: {}]
  %s3 = inlined_call_operand.vmem [shape: f32[16,256], index: 3, kind: output, shape index: {}]
  %s4 = sld [smem:[#allocation0]]
  $region95: #{transformer_classifier.46} parent=0
    _
  %s6 = ssub.s32 1, %s4
  %s7 = scalar_select 0, %s6, %s4
  $region1: #{transformer_classifier.46} parent=0
    #allocation3 [shape = 'u8[16384]{0}', space=vmem, size = 0x4000, scoped, tag = 'input window, operand 0']
    #allocation4 [shape = 'u8[131072]{0}', space=vmem, size = 0x20000, scoped, tag = 'input window, operand 1']
    #allocation5 [shape = 's32[2]{0}', space=sflag, size = 0x8, scoped, tag = 'scoped memory for transformer_classifier.46']
    %8 = vsyncpa [#allocation5], 0
    %s9 = scalar_lea.sflag [#allocation5], 1
    %10 = vsyncpa %s9, 0
    loop: start=0, step=1, limit=4
    $region2: #{transformer_classifier.46} parent=1 // loop_pre_header
      _
    $region3: #{transformer_classifier.46} parent=1 // loop_header
      %s12 = sphi 0, %s16
      %p13 = scmp.ge.s32.totalorder %s12, 4
      %s19 = sphi 0, %s38
      %s20 = sphi 0, %s34
      %s21 = sphi 0, %s30
      %s22 = sphi 0, %s19
      %s23 = sphi 0, %s20
      %s24 = sphi 0, %s21
      %s25 = sphi 0, %s22
      %s26 = sphi 0, %s23
      %s27 = sphi 0, %s24
      %s43 = sphi 0, %s45
      %s46 = sphi 0, %s43
      %s47 = sphi 0, %s46
      %s63 = sphi 0, %s47
      %s71 = sphi 0, %s73
      %s74 = sphi 0, %s71
      %s75 = sphi 0, %s74
      %s91 = sphi 0, %s75
      %s97 = sphi 0, %s99
      %s100 = sphi 0, %s97
      %s101 = sphi 0, %s100
      %s117 = sphi 0, %s101
      %s125 = sphi 0, %s127
      %s128 = sphi 0, %s125
      %s129 = sphi 0, %s128
      %s145 = sphi 0, %s129
    $region4: #{transformer_classifier.46} parent=1 // loop_header_branch
      %15 = sbr.rel (%p13) target = $region8
    $region5: #{transformer_classifier.46} parent=1 // loop_body
      %s17 = ssub.s32 %s12, 1
      %s18 = ssub.s32 %s12, 2
      %s28 = sadd.s32 1, %s21
      %p29 = scmp.ge.s32.totalorder %s28, 2
      %s30 = scalar_select %p29, 0, %s28
      %s31 = sadd.s32 1, %s20
      %s32 = scalar_select %p29, %s31, %s20
      %p33 = scmp.ge.s32.totalorder %s32, 1
      %s34 = scalar_select %p33, 0, %s32
      %s35 = sadd.s32 1, %s19
      %s36 = scalar_select %p33, %s35, %s19
      %p37 = scmp.ge.s32.totalorder %s36, 1
      %s38 = scalar_select %p37, 0, %s36
      %s39 = ssub.s32 %s19, %s38
      %s40 = ssub.s32 %s21, %s30
      %s41 = sor.u32 %s39, %s40
      %p42 = scmp.eq.s32.totalorder %s41, 0
      %s44 = sadd.s32 %s43, 1
      %s45 = scalar_select %p42, %s43, %s44
      %p48 = pneg %p42
      %p49 = scmp.eq.s32.totalorder %s12, 1
      %p50 = por %p48, %p49
      %p51 = scmp.ne.s32.totalorder %s43, %s46
      %p52 = scmp.eq.s32.totalorder %s12, 0
      %p53 = por %p51, %p52
      %p54 = scmp.ne.s32.totalorder %s43, %s46
      %p55 = scmp.eq.s32.totalorder %s17, 1
      %p56 = por %p54, %p55
      %p57 = scmp.ne.s32.totalorder %s46, %s47
      %p58 = scmp.eq.s32.totalorder %s17, 0
      %p59 = por %p57, %p58
      %p60 = scmp.ne.s32.totalorder %s46, %s47
      %p61 = scmp.eq.s32.totalorder %s18, 1
      %p62 = por %p60, %p61
      %p64 = scmp.ne.s32.totalorder %s47, %s63
      %p65 = scmp.eq.s32.totalorder %s18, 0
      %p66 = por %p64, %p65
      %s67 = ssub.s32 %s21, %s30
      %s68 = ssub.s32 %s20, %s34
      %s69 = sor.u32 %s67, %s68
      %p70 = scmp.eq.s32.totalorder %s69, 0
      %s72 = sadd.s32 %s71, 1
      %s73 = scalar_select %p70, %s71, %s72
      %p76 = pneg %p70
      %p77 = scmp.eq.s32.totalorder %s12, 1
      %p78 = por %p76, %p77
      %p79 = scmp.ne.s32.totalorder %s71, %s74
      %p80 = scmp.eq.s32.totalorder %s12, 0
      %p81 = por %p79, %p80
      %p82 = scmp.ne.s32.totalorder %s71, %s74
      %p83 = scmp.eq.s32.totalorder %s17, 1
      %p84 = por %p82, %p83
      %p85 = scmp.ne.s32.totalorder %s74, %s75
      %p86 = scmp.eq.s32.totalorder %s17, 0
      %p87 = por %p85, %p86
      %p88 = scmp.ne.s32.totalorder %s74, %s75
      %p89 = scmp.eq.s32.totalorder %s18, 1
      %p90 = por %p88, %p89
      %p92 = scmp.ne.s32.totalorder %s75, %s91
      %p93 = scmp.eq.s32.totalorder %s18, 0
      %p94 = por %p92, %p93
      %s95 = ssub.s32 %s20, %s34
      %p96 = scmp.eq.s32.totalorder %s95, 0
      %s98 = sadd.s32 %s97, 1
      %s99 = scalar_select %p96, %s97, %s98
      %p102 = pneg %p96
      %p103 = scmp.eq.s32.totalorder %s12, 1
      %p104 = por %p102, %p103
      %p105 = scmp.ne.s32.totalorder %s97, %s100
      %p106 = scmp.eq.s32.totalorder %s12, 0
      %p107 = por %p105, %p106
      %p108 = scmp.ne.s32.totalorder %s97, %s100
      %p109 = scmp.eq.s32.totalorder %s17, 1
      %p110 = por %p108, %p109
      %p111 = scmp.ne.s32.totalorder %s100, %s101
      %p112 = scmp.eq.s32.totalorder %s17, 0
      %p113 = por %p111, %p112
      %p114 = scmp.ne.s32.totalorder %s100, %s101
      %p115 = scmp.eq.s32.totalorder %s18, 1
      %p116 = por %p114, %p115
      %p118 = scmp.ne.s32.totalorder %s101, %s117
      %p119 = scmp.eq.s32.totalorder %s18, 0
      %p120 = por %p118, %p119
      %s121 = ssub.s32 %s19, %s38
      %s122 = ssub.s32 %s20, %s34
      %s123 = sor.u32 %s121, %s122
      %p124 = scmp.eq.s32.totalorder %s123, 0
      %s126 = sadd.s32 %s125, 1
      %s127 = scalar_select %p124, %s125, %s126
      %p130 = pneg %p124
      %p131 = scmp.eq.s32.totalorder %s12, 1
      %p132 = por %p130, %p131
      %p133 = scmp.ne.s32.totalorder %s125, %s128
      %p134 = scmp.eq.s32.totalorder %s12, 0
      %p135 = por %p133, %p134
      %p136 = scmp.ne.s32.totalorder %s125, %s128
      %p137 = scmp.eq.s32.totalorder %s17, 1
      %p138 = por %p136, %p137
      %p139 = scmp.ne.s32.totalorder %s128, %s129
      %p140 = scmp.eq.s32.totalorder %s17, 0
      %p141 = por %p139, %p140
      %p142 = scmp.ne.s32.totalorder %s128, %s129
      %p143 = scmp.eq.s32.totalorder %s18, 1
      %p144 = por %p142, %p143
      %p146 = scmp.ne.s32.totalorder %s129, %s145
      %p147 = scmp.eq.s32.totalorder %s18, 0
      %p148 = por %p146, %p147
      %p149 = scmp.le.s32.totalorder 1, %s12
      %p150 = scmp.lt.s32.totalorder %s12, 3
      %p151 = pnand %p149, %p150
      %p152 = pneg %p151
      // Predicated region
      $region9: #{transformer_classifier.46} parent=5 // pred_check
        _
      $region10: #{transformer_classifier.46} parent=5 // pred_check_branch
        %154 = sbr.rel (%p151) target = $region12
      $region11: #{transformer_classifier.46} parent=5 // pred_region
        %s155 = ssub.s32 %s12, 1
        // Predicated region
        $region13: #{transformer_classifier.46} parent=11 // pred_check
          %p156 = pneg %p113
        $region14: #{transformer_classifier.46} parent=11 // pred_check_branch
          %158 = sbr.rel (%p156) target = $region16
        $region15: #{transformer_classifier.46} parent=11 // pred_region
          %s159 = smul.u32 2, %s23
          %p160 = scmp.lt.s32.totalorder %s159, 1
          %s161 = scalar_select %p160, %s159, 1
          %s162 = scalar_lea.vmem %s2, %s161
          %s163 = smul.u32 2, %s23
        $region16: #{transformer_classifier.46} parent=11 // pred_fallthru
          _
      $region12: #{transformer_classifier.46} parent=5 // pred_fallthru
        _
      %p164 = scmp.lt.s32.totalorder %s12, 2
      // Predicated region
      $region17: #{transformer_classifier.46} parent=5 // pred_check
        %p165 = pneg %p164
      $region18: #{transformer_classifier.46} parent=5 // pred_check_branch
        %167 = sbr.rel (%p165) target = $region20
      $region19: #{transformer_classifier.46} parent=5 // pred_region
        // Predicated region
        $region21: #{transformer_classifier.46} parent=19 // pred_check
          %p168 = pneg %p53
        $region22: #{transformer_classifier.46} parent=19 // pred_check_branch
          %170 = sbr.rel (%p168) target = $region24
        $region23: #{transformer_classifier.46} parent=19 // pred_region
          %s171 = sand.u32 %s43, 1
          %s172 = sand.u32 %s43, 1
          %s173 = smul.addr %s172, 16
          %s174 = scalar_lea.vmem [#allocation3], %s173
          %s175 = smul.u32 2, %s19
          %s176 = smul.addr %s175, 2
          %s177 = sadd.s32 %s21, %s176
          %s178 = smul.addr %s177, 8
          %s179 = scalar_lea.vmem %s0, %s178
          // Predicated region
          $region25: #{transformer_classifier.46} parent=23 // pred_check
            _
          $region26: #{transformer_classifier.46} parent=23 // pred_check_branch
            %181 = sbr.rel (0) target = $region28
          $region27: #{transformer_classifier.46} parent=23 // pred_region
            // Predicated region
            $region29: #{transformer_classifier.46} parent=27 // pred_check
              _
            $region30: #{transformer_classifier.46} parent=27 // pred_check_branch
              %183 = sbr.rel (0) target = $region32
            $region31: #{transformer_classifier.46} parent=27 // pred_region
              // Predicated region
              $region44: #{transformer_classifier.46} parent=31 // pred_check
                _
              $region45: #{transformer_classifier.46} parent=31 // pred_check_branch
                %201 = sbr.rel (0) target = $region47
              $region46: #{transformer_classifier.46} parent=31 // pred_region
                loop: start=0, step=1, limit=1
                $region48: #{transformer_classifier.46} parent=46 // loop_pre_header
                  _
                $region49: #{transformer_classifier.46} parent=46 // loop_header
                  %s203 = sphi 0, %s207
                  %p204 = scmp.ge.s32.totalorder %s203, 1
                  %s208 = sphi %s179, %s179
                  %s209 = sphi %s174, %s174
                $region50: #{transformer_classifier.46} parent=46 // loop_header_branch
                  %206 = sbr.rel (%p204) target = $region54
                $region51: #{transformer_classifier.46} parent=46 // loop_body
                  %v210 = vld [vmem:[%s208] sm:$0xff]
                  %211 = vst [vmem:[%s209] sm:$0xff] %v210
                  %v212 = vld [vmem:[%s208 + $0x10] sm:$0xff]
                  %213 = vst [vmem:[%s209 + $0x8] sm:$0xff] %v212
                $region52: #{transformer_classifier.46} parent=46 // loop_footer
                  %s207 = sadd.s32 1, %s203
                $region53: #{transformer_classifier.46} parent=46 // loop_footer_branch
                  %202 = sbr.rel target = $region49
                $region54: #{transformer_classifier.46} parent=46 // loop_exit
                  _
              $region47: #{transformer_classifier.46} parent=31 // pred_fallthru
                _
              // Predicated region
              $region55: #{transformer_classifier.46} parent=31 // pred_check
                _
              $region56: #{transformer_classifier.46} parent=31 // pred_check_branch
                %215 = sbr.rel target = $region58
              $region57: #{transformer_classifier.46} parent=31 // pred_region
                _
              $region58: #{transformer_classifier.46} parent=31 // pred_fallthru
                _
            $region32: #{transformer_classifier.46} parent=27 // pred_fallthru
              _
            // Predicated region
            $region33: #{transformer_classifier.46} parent=27 // pred_check
              _
            $region34: #{transformer_classifier.46} parent=27 // pred_check_branch
              %185 = sbr.rel target = $region36
            $region35: #{transformer_classifier.46} parent=27 // pred_region
              %s187 = ssub.s32 256, 1
              loop: start=0, step=1, limit=1
              $region37: #{transformer_classifier.46} parent=35 // loop_pre_header
                _
              $region38: #{transformer_classifier.46} parent=35 // loop_header
                %s189 = sphi 0, %s193
                %p190 = scmp.ge.s32.totalorder %s189, 1
                %s194 = sphi %s179, %s179
                %s195 = sphi %s174, %s174
              $region39: #{transformer_classifier.46} parent=35 // loop_header_branch
                %192 = sbr.rel (%p190) target = $region43
              $region40: #{transformer_classifier.46} parent=35 // loop_body
                %v196 = vld [vmem:[%s194] sm:%s187]
                %197 = vst [vmem:[%s195] sm:%s187] %v196
                %v198 = vld [vmem:[%s194 + $0x10] sm:%s187]
                %199 = vst [vmem:[%s195 + $0x8] sm:%s187] %v198
              $region41: #{transformer_classifier.46} parent=35 // loop_footer
                %s193 = sadd.s32 1, %s189
              $region42: #{transformer_classifier.46} parent=35 // loop_footer_branch
                %188 = sbr.rel target = $region38
              $region43: #{transformer_classifier.46} parent=35 // loop_exit
                _
            $region36: #{transformer_classifier.46} parent=27 // pred_fallthru
              _
          $region28: #{transformer_classifier.46} parent=23 // pred_fallthru
            _
          %216 = vnop
        $region24: #{transformer_classifier.46} parent=19 // pred_fallthru
          _
        // Predicated region
        $region59: #{transformer_classifier.46} parent=19 // pred_check
          %p217 = pneg %p81
        $region60: #{transformer_classifier.46} parent=19 // pred_check_branch
          %219 = sbr.rel (%p217) target = $region62
        $region61: #{transformer_classifier.46} parent=19 // pred_region
          %s220 = sand.u32 %s71, 1
          %s221 = scalar_lea.sflag [#allocation5], %s220
          %s222 = sand.u32 %s71, 1
          %s223 = smul.addr %s222, 128
          %s224 = scalar_lea.vmem [#allocation4], %s223
          %s225 = smul.u32 16, %s21
          %s226 = smul.u32 2, %s20
          %228 = vsyncadd %s221, 0
          %s229 = smul.addr %s225, 2
          %s230 = sadd.s32 %s226, %s229
          %s231 = smul.addr %s230, 4
          %s232 = scalar_lea.hbm %s1, %s231
          %s233 = sshll.u32 %s232, 4
          %s234 = int_to_ptr.hbm [resolvable:$true] %s233
          %s235 = sshll.u32 %s224, 4
          %s236 = int_to_ptr.vmem [resolvable:$true] %s235
          %241 = dma.hbm_to_vmem [thread:$0]  %s234, 2048, %s236, %s221, 128, 128, 8
        $region62: #{transformer_classifier.46} parent=19 // pred_fallthru
          _
      $region20: #{transformer_classifier.46} parent=5 // pred_fallthru
        _
      %p242 = scmp.le.s32.totalorder 1, %s12
      %p243 = scmp.lt.s32.totalorder %s12, 3
      %p244 = pnand %p242, %p243
      %p245 = pneg %p244
      // Predicated region
      $region63: #{transformer_classifier.46} parent=5 // pred_check
        _
      $region64: #{transformer_classifier.46} parent=5 // pred_check_branch
        %247 = sbr.rel (%p244) target = $region66
      $region65: #{transformer_classifier.46} parent=5 // pred_region
        %s248 = ssub.s32 %s12, 1
        %s249 = sand.u32 %s46, 1
        %s250 = sand.u32 %s46, 1
        %s251 = smul.addr %s250, 16
        %s252 = scalar_lea.vmem [#allocation3], %s251
        // Predicated region
        $region67: #{transformer_classifier.46} parent=65 // pred_check
          %p253 = pneg %p59
        $region68: #{transformer_classifier.46} parent=65 // pred_check_branch
          %255 = sbr.rel (%p253) target = $region70
        $region69: #{transformer_classifier.46} parent=65 // pred_region
          _
        $region70: #{transformer_classifier.46} parent=65 // pred_fallthru
          _
        %s256 = sand.u32 %s74, 1
        %s257 = scalar_lea.sflag [#allocation5], %s256
        %s258 = sand.u32 %s74, 1
        %s259 = smul.addr %s258, 128
        %s260 = scalar_lea.vmem [#allocation4], %s259
        // Predicated region
        $region71: #{transformer_classifier.46} parent=65 // pred_check
          %p261 = pneg %p87
        $region72: #{transformer_classifier.46} parent=65 // pred_check_branch
          %263 = sbr.rel (%p261) target = $region74
        $region73: #{transformer_classifier.46} parent=65 // pred_region
          %265 = dma.done %s257, 2048
        $region74: #{transformer_classifier.46} parent=65 // pred_fallthru
          _
        %s266 = sand.u32 %s46, 1
        %s267 = sand.u32 %s46, 1
        %s268 = smul.addr %s267, 16
        %s269 = scalar_lea.vmem [#allocation3], %s268
        %p270 = pneg %p59
        %p271 = pneg %p56
        %s272 = sand.u32 %s74, 1
        %s273 = scalar_lea.sflag [#allocation5], %s272
        %s274 = sand.u32 %s74, 1
        %s275 = smul.addr %s274, 128
        %s276 = scalar_lea.vmem [#allocation4], %s275
        %p277 = pneg %p87
        %p278 = pneg %p84
        %s279 = smul.u32 2, %s23
        %p280 = scmp.lt.s32.totalorder %s279, 1
        %s281 = scalar_select %p280, %s279, 1
        %s282 = scalar_lea.vmem %s2, %s281
        %p283 = pneg %p113
        %p284 = pneg %p110
        %p285 = pneg %p141
        %p286 = pneg %p138
        %s287 = smul.u32 2, %s22
        %s288 = smul.u32 2, %s23
        %p289 = scmp.lt.s32.totalorder %s287, 1
        %s290 = scalar_select %p289, %s287, 1
        %p291 = scmp.lt.s32.totalorder %s288, 1
        %s292 = scalar_select %p291, %s288, 1
        %s293 = smul.addr %s290, 2
        %s294 = sadd.s32 %s292, %s293
        %s295 = smul.addr %s294, 8
        %s296 = scalar_lea.vmem %s3, %s295
        %s297 = smul.u32 2, %s22
        %s298 = smul.u32 16, %s24
        %s299 = smul.u32 2, %s23
        %s300 = smul.u32 2, %s23
        %p301 = scmp.lt.s32.totalorder %s300, 1
        %s302 = scalar_select %p301, %s300, 1
        %s303 = scalar_lea.vmem %s2, %s302
        %s304 = smul.u32 2, %s23
        %s305 = smul.u32 2, %s22
        %s306 = smul.u32 2, %s23
        %p307 = scmp.lt.s32.totalorder %s305, 1
        %s308 = scalar_select %p307, %s305, 1
        %p309 = scmp.lt.s32.totalorder %s306, 1
        %s310 = scalar_select %p309, %s306, 1
        %s311 = smul.addr %s308, 2
        %s312 = sadd.s32 %s310, %s311
        %s313 = smul.addr %s312, 8
        %s314 = scalar_lea.vmem %s3, %s313
        %s315 = smul.u32 2, %s22
        %s316 = smul.u32 2, %s23
        %p317 = scmp.eq.s32.totalorder %s24, 0
        // Predicated region
        $region75: #{transformer_classifier.46} parent=65 // pred_check
          %p318 = pneg %p317
        $region76: #{transformer_classifier.46} parent=65 // pred_check_branch
          %320 = sbr.rel (%p318) target = $region78
        $region77: #{transformer_classifier.46} parent=65 // pred_region
          %321 = vst [vmem:[#allocation2] sm:$0xff] 0.0
          %322 = vst [vmem:[#allocation2 + $0x8] sm:$0xff] 0.0
          %323 = vst [vmem:[#allocation2 + $0x10] sm:$0xff] 0.0
          %324 = vst [vmem:[#allocation2 + $0x18] sm:$0xff] 0.0
        $region78: #{transformer_classifier.46} parent=65 // pred_fallthru
          _
        %v325 = vld [vmem:[#allocation2] sm:$0xff]
        %v326 = vld [vmem:[#allocation2 + $0x8] sm:$0xff]
        %v327 = vld [vmem:[#allocation2 + $0x10] sm:$0xff]
        %v328 = vld [vmem:[#allocation2 + $0x18] sm:$0xff]
        %v329 = vld [vmem:[%s252] sm:$0xff]
        %v330 = vld [vmem:[%s252 + $0x8] sm:$0xff]
        %v331 = vpack.c.bf16 %v330, %v329
        %v332 = vld [vmem:[%s260] sm:$0xff]
        %v333 = vld [vmem:[%s260 + $0x8] sm:$0xff]
        %v334 = vld [vmem:[%s260 + $0x10] sm:$0xff]
        %v335 = vld [vmem:[%s260 + $0x18] sm:$0xff]
        %v336 = vld [vmem:[%s260 + $0x20] sm:$0xff]
        %v337 = vld [vmem:[%s260 + $0x28] sm:$0xff]
        %v338 = vld [vmem:[%s260 + $0x30] sm:$0xff]
        %v339 = vld [vmem:[%s260 + $0x38] sm:$0xff]
        %v340 = vld [vmem:[%s260 + $0x40] sm:$0xff]
        %v341 = vld [vmem:[%s260 + $0x48] sm:$0xff]
        %v342 = vld [vmem:[%s260 + $0x50] sm:$0xff]
        %v343 = vld [vmem:[%s260 + $0x58] sm:$0xff]
        %v344 = vld [vmem:[%s260 + $0x60] sm:$0xff]
        %v345 = vld [vmem:[%s260 + $0x68] sm:$0xff]
        %v346 = vld [vmem:[%s260 + $0x70] sm:$0xff]
        %v347 = vld [vmem:[%s260 + $0x78] sm:$0xff]
        %v364 = vunpack.c.l.b16 %v332
        %v365 = vunpack.c.h.b16 %v332
        %v366 = vunpack.c.l.b16 %v333
        %v367 = vunpack.c.h.b16 %v333
        %v368 = vunpack.c.l.b16 %v334
        %v369 = vunpack.c.h.b16 %v334
        %v370 = vunpack.c.l.b16 %v335
        %v371 = vunpack.c.h.b16 %v335
        %v372 = vunpack.c.l.b16 %v336
        %v373 = vunpack.c.h.b16 %v336
        %v374 = vunpack.c.l.b16 %v337
        %v375 = vunpack.c.h.b16 %v337
        %v376 = vunpack.c.l.b16 %v338
        %v377 = vunpack.c.h.b16 %v338
        %v378 = vunpack.c.l.b16 %v339
        %v379 = vunpack.c.h.b16 %v339
        %v380 = vunpack.c.l.b16 %v340
        %v381 = vunpack.c.h.b16 %v340
        %v382 = vunpack.c.l.b16 %v341
        %v383 = vunpack.c.h.b16 %v341
        %v384 = vunpack.c.l.b16 %v342
        %v385 = vunpack.c.h.b16 %v342
        %v386 = vunpack.c.l.b16 %v343
        %v387 = vunpack.c.h.b16 %v343
        %v388 = vunpack.c.l.b16 %v344
        %v389 = vunpack.c.h.b16 %v344
        %v390 = vunpack.c.l.b16 %v345
        %v391 = vunpack.c.h.b16 %v345
        %v392 = vunpack.c.l.b16 %v346
        %v393 = vunpack.c.h.b16 %v346
        %v394 = vunpack.c.l.b16 %v347
        %v395 = vunpack.c.h.b16 %v347
        %v396 = vpack.c.b16 %v366, %v364
        %v397 = vpack.c.b16 %v367, %v365
        %v398 = vpack.c.b16 %v370, %v368
        %v399 = vpack.c.b16 %v371, %v369
        %v400 = vpack.c.b16 %v374, %v372
        %v401 = vpack.c.b16 %v375, %v373
        %v402 = vpack.c.b16 %v378, %v376
        %v403 = vpack.c.b16 %v379, %v377
        %v404 = vpack.c.b16 %v382, %v380
        %v405 = vpack.c.b16 %v383, %v381
        %v406 = vpack.c.b16 %v386, %v384
        %v407 = vpack.c.b16 %v387, %v385
        %v408 = vpack.c.b16 %v390, %v388
        %v409 = vpack.c.b16 %v391, %v389
        %v410 = vpack.c.b16 %v394, %v392
        %v411 = vpack.c.b16 %v395, %v393
        %428 = vmatpush.bf16.msra.mxu0 %v410
        %429 = vmatpush.bf16.msra.mxu0 %v408
        %430 = vmatpush.bf16.msra.mxu0 %v406
        %431 = vmatpush.bf16.msra.mxu0 %v404
        %432 = vmatpush.bf16.msra.mxu0 %v402
        %433 = vmatpush.bf16.msra.mxu0 %v400
        %434 = vmatpush.bf16.msra.mxu0 %v398
        %435 = vmatpush.bf16.msra.mxu0 %v396
        %436 = vmatmul.bf16.gmra.mxu0 %v331
        %v437 = vpop.f32.mrf.mxu0
        %v438 = vadd.f32 0.0, %v437
        %v439 = vpop.f32.mrf.mxu0
        %v440 = vadd.f32 0.0, %v439
        %441 = vdwg.mxu0
        %442 = vmatpush.bf16.msra.mxu0 %v411
        %443 = vmatpush.bf16.msra.mxu0 %v409
        %444 = vmatpush.bf16.msra.mxu0 %v407
        %445 = vmatpush.bf16.msra.mxu0 %v405
        %446 = vmatpush.bf16.msra.mxu0 %v403
        %447 = vmatpush.bf16.msra.mxu0 %v401
        %448 = vmatpush.bf16.msra.mxu0 %v399
        %449 = vmatpush.bf16.msra.mxu0 %v397
        %450 = vmatmul.bf16.gmra.mxu0 %v331
        %v451 = vpop.f32.mrf.mxu0
        %v452 = vadd.f32 0.0, %v451
        %v453 = vpop.f32.mrf.mxu0
        %v454 = vadd.f32 0.0, %v453
        %455 = vdwg.mxu0
        %v456 = vadd.f32 %v325, %v438
        %v457 = vadd.f32 %v326, %v452
        %v458 = vadd.f32 %v327, %v440
        %v459 = vadd.f32 %v328, %v454
        %460 = vst [vmem:[#allocation2] sm:$0xff] %v456
        %461 = vst [vmem:[#allocation2 + $0x8] sm:$0xff] %v457
        %462 = vst [vmem:[#allocation2 + $0x10] sm:$0xff] %v458
        %463 = vst [vmem:[#allocation2 + $0x18] sm:$0xff] %v459
        %p464 = scmp.eq.s32.totalorder %s24, 1
        // Predicated region
        $region79: #{transformer_classifier.46} parent=65 // pred_check
          %p465 = pneg %p464
        $region80: #{transformer_classifier.46} parent=65 // pred_check_branch
          %467 = sbr.rel (%p465) target = $region82
        $region81: #{transformer_classifier.46} parent=65 // pred_region
          %v468 = vld [vmem:[#allocation2] sm:$0xff]
          %v469 = vld [vmem:[#allocation2 + $0x8] sm:$0xff]
          %v470 = vld [vmem:[#allocation2 + $0x10] sm:$0xff]
          %v471 = vld [vmem:[#allocation2 + $0x18] sm:$0xff]
          %v472 = vld [vmem:[%s303] sm:$0x3]
          %v474 = vperm.slane %v472, 0
          %v475 = vperm.slane %v472, 1
          %v478 = vadd.f32 %v468, %v474
          %v479 = vadd.f32 %v469, %v475
          %v480 = vadd.f32 %v470, %v474
          %v481 = vadd.f32 %v471, %v475
          %v482 = vmax.f32 %v478, 0.0
          %v483 = vmax.f32 %v479, 0.0
          %v484 = vmax.f32 %v480, 0.0
          %v485 = vmax.f32 %v481, 0.0
          %486 = vst [vmem:[%s314] sm:$0xff] %v482
          %487 = vst [vmem:[%s314 + $0x8] sm:$0xff] %v483
          %488 = vst [vmem:[%s314 + $0x10] sm:$0xff] %v484
          %489 = vst [vmem:[%s314 + $0x18] sm:$0xff] %v485
        $region82: #{transformer_classifier.46} parent=65 // pred_fallthru
          _
        %s490 = smul.u32 2, %s22
        %s491 = smul.u32 2, %s23
        %p492 = scmp.lt.s32.totalorder %s490, 1
        %s493 = scalar_select %p492, %s490, 1
        %p494 = scmp.lt.s32.totalorder %s491, 1
        %s495 = scalar_select %p494, %s491, 1
        %s496 = smul.addr %s493, 2
        %s497 = sadd.s32 %s495, %s496
        %s498 = smul.addr %s497, 8
        %s499 = scalar_lea.vmem %s3, %s498
        // Predicated region
        $region83: #{transformer_classifier.46} parent=65 // pred_check
          %p500 = pneg %p138
        $region84: #{transformer_classifier.46} parent=65 // pred_check_branch
          %502 = sbr.rel (%p500) target = $region86
        $region85: #{transformer_classifier.46} parent=65 // pred_region
          %s503 = smul.u32 2, %s22
          %s504 = smul.u32 2, %s23
        $region86: #{transformer_classifier.46} parent=65 // pred_fallthru
          _
        // Predicated region
        $region87: #{transformer_classifier.46} parent=65 // pred_check
          %p505 = pneg %p138
        $region88: #{transformer_classifier.46} parent=65 // pred_check_branch
          %507 = sbr.rel (%p505) target = $region90
        $region89: #{transformer_classifier.46} parent=65 // pred_region
          %s508 = smul.u32 2, %s22
          %s509 = smul.u32 2, %s23
          %p510 = scmp.lt.s32.totalorder %s508, 1
          %s511 = scalar_select %p510, %s508, 1
          %p512 = scmp.lt.s32.totalorder %s509, 1
          %s513 = scalar_select %p512, %s509, 1
          %s514 = smul.addr %s511, 2
          %s515 = sadd.s32 %s513, %s514
          %s516 = smul.addr %s515, 8
          %s517 = scalar_lea.vmem %s3, %s516
        $region90: #{transformer_classifier.46} parent=65 // pred_fallthru
          _
      $region66: #{transformer_classifier.46} parent=5 // pred_fallthru
        _
      %p518 = scmp.le.s32.totalorder 2, %s12
      // Predicated region
      $region91: #{transformer_classifier.46} parent=5 // pred_check
        %p519 = pneg %p518
      $region92: #{transformer_classifier.46} parent=5 // pred_check_branch
        %521 = sbr.rel (%p519) target = $region94
      $region93: #{transformer_classifier.46} parent=5 // pred_region
        %s522 = ssub.s32 %s12, 2
      $region94: #{transformer_classifier.46} parent=5 // pred_fallthru
        _
    $region6: #{transformer_classifier.46} parent=1 // loop_footer
      %s16 = sadd.s32 1, %s12
    $region7: #{transformer_classifier.46} parent=1 // loop_footer_branch
      %11 = sbr.rel target = $region3
    $region8: #{transformer_classifier.46} parent=1 // loop_exit
      _
    %523 = vsyncpa [#allocation5], 1
    %s524 = scalar_lea.sflag [#allocation5], 1
    %525 = vsyncpa %s524, 1

// kernel: transformer_classifier.83
$region0: #{transformer_classifier.83}
  #allocation0 [shape = 'u32[]', space=smem, size = 0x4, offset = 0x4, fixed_abs, tag = 'smem constant byte address 0x4 - core index']
  #allocation1 [shape = 'u32[72,128]{1,0:T(1,128)}', space=vmem, size = 0x9000, scoped, tag = 'internal scratch']
  #allocation2 [shape = 'f32[16,128]{1,0:T(8,128)}', space=vmem, size = 0x2000, scoped, tag = 'scratch operand']
  %s0 = inlined_call_operand.vmem [shape: f32[16,256], index: 0, kind: input, shape index: {}]
  %s1 = inlined_call_operand.hbm [shape: bf16[256,128], index: 1, kind: input, shape index: {}]
  %s2 = inlined_call_operand.vmem [shape: f32[1,128], index: 2, kind: input, shape index: {}]
  %s3 = inlined_call_operand.vmem [shape: f32[16,128], index: 3, kind: output, shape index: {}]
  %s4 = sld [smem:[#allocation0]]
  $region95: #{transformer_classifier.83} parent=0
    _
  %s6 = ssub.s32 1, %s4
  %s7 = scalar_select 0, %s6, %s4
  $region1: #{transformer_classifier.83} parent=0
    #allocation3 [shape = 'u8[16384]{0}', space=vmem, size = 0x4000, scoped, tag = 'input window, operand 0']
    #allocation4 [shape = 'u8[65536]{0}', space=vmem, size = 0x10000, scoped, tag = 'input window, operand 1']
    #allocation5 [shape = 's32[2]{0}', space=sflag, size = 0x8, scoped, tag = 'scoped memory for transformer_classifier.83']
    %8 = vsyncpa [#allocation5], 0
    %s9 = scalar_lea.sflag [#allocation5], 1
    %10 = vsyncpa %s9, 0
    loop: start=0, step=1, limit=4
    $region2: #{transformer_classifier.83} parent=1 // loop_pre_header
      _
    $region3: #{transformer_classifier.83} parent=1 // loop_header
      %s12 = sphi 0, %s16
      %p13 = scmp.ge.s32.totalorder %s12, 4
      %s19 = sphi 0, %s38
      %s20 = sphi 0, %s34
      %s21 = sphi 0, %s30
      %s22 = sphi 0, %s19
      %s23 = sphi 0, %s20
      %s24 = sphi 0, %s21
      %s25 = sphi 0, %s22
      %s26 = sphi 0, %s23
      %s27 = sphi 0, %s24
      %s43 = sphi 0, %s45
      %s46 = sphi 0, %s43
      %s47 = sphi 0, %s46
      %s63 = sphi 0, %s47
      %s71 = sphi 0, %s73
      %s74 = sphi 0, %s71
      %s75 = sphi 0, %s74
      %s91 = sphi 0, %s75
      %s97 = sphi 0, %s99
      %s100 = sphi 0, %s97
      %s101 = sphi 0, %s100
      %s117 = sphi 0, %s101
      %s125 = sphi 0, %s127
      %s128 = sphi 0, %s125
      %s129 = sphi 0, %s128
      %s145 = sphi 0, %s129
    $region4: #{transformer_classifier.83} parent=1 // loop_header_branch
      %15 = sbr.rel (%p13) target = $region8
    $region5: #{transformer_classifier.83} parent=1 // loop_body
      %s17 = ssub.s32 %s12, 1
      %s18 = ssub.s32 %s12, 2
      %s28 = sadd.s32 1, %s21
      %p29 = scmp.ge.s32.totalorder %s28, 2
      %s30 = scalar_select %p29, 0, %s28
      %s31 = sadd.s32 1, %s20
      %s32 = scalar_select %p29, %s31, %s20
      %p33 = scmp.ge.s32.totalorder %s32, 1
      %s34 = scalar_select %p33, 0, %s32
      %s35 = sadd.s32 1, %s19
      %s36 = scalar_select %p33, %s35, %s19
      %p37 = scmp.ge.s32.totalorder %s36, 1
      %s38 = scalar_select %p37, 0, %s36
      %s39 = ssub.s32 %s19, %s38
      %s40 = ssub.s32 %s21, %s30
      %s41 = sor.u32 %s39, %s40
      %p42 = scmp.eq.s32.totalorder %s41, 0
      %s44 = sadd.s32 %s43, 1
      %s45 = scalar_select %p42, %s43, %s44
      %p48 = pneg %p42
      %p49 = scmp.eq.s32.totalorder %s12, 1
      %p50 = por %p48, %p49
      %p51 = scmp.ne.s32.totalorder %s43, %s46
      %p52 = scmp.eq.s32.totalorder %s12, 0
      %p53 = por %p51, %p52
      %p54 = scmp.ne.s32.totalorder %s43, %s46
      %p55 = scmp.eq.s32.totalorder %s17, 1
      %p56 = por %p54, %p55
      %p57 = scmp.ne.s32.totalorder %s46, %s47
      %p58 = scmp.eq.s32.totalorder %s17, 0
      %p59 = por %p57, %p58
      %p60 = scmp.ne.s32.totalorder %s46, %s47
      %p61 = scmp.eq.s32.totalorder %s18, 1
      %p62 = por %p60, %p61
      %p64 = scmp.ne.s32.totalorder %s47, %s63
      %p65 = scmp.eq.s32.totalorder %s18, 0
      %p66 = por %p64, %p65
      %s67 = ssub.s32 %s21, %s30
      %s68 = ssub.s32 %s20, %s34
      %s69 = sor.u32 %s67, %s68
      %p70 = scmp.eq.s32.totalorder %s69, 0
      %s72 = sadd.s32 %s71, 1
      %s73 = scalar_select %p70, %s71, %s72
      %p76 = pneg %p70
      %p77 = scmp.eq.s32.totalorder %s12, 1
      %p78 = por %p76, %p77
      %p79 = scmp.ne.s32.totalorder %s71, %s74
      %p80 = scmp.eq.s32.totalorder %s12, 0
      %p81 = por %p79, %p80
      %p82 = scmp.ne.s32.totalorder %s71, %s74
      %p83 = scmp.eq.s32.totalorder %s17, 1
      %p84 = por %p82, %p83
      %p85 = scmp.ne.s32.totalorder %s74, %s75
      %p86 = scmp.eq.s32.totalorder %s17, 0
      %p87 = por %p85, %p86
      %p88 = scmp.ne.s32.totalorder %s74, %s75
      %p89 = scmp.eq.s32.totalorder %s18, 1
      %p90 = por %p88, %p89
      %p92 = scmp.ne.s32.totalorder %s75, %s91
      %p93 = scmp.eq.s32.totalorder %s18, 0
      %p94 = por %p92, %p93
      %s95 = ssub.s32 %s20, %s34
      %p96 = scmp.eq.s32.totalorder %s95, 0
      %s98 = sadd.s32 %s97, 1
      %s99 = scalar_select %p96, %s97, %s98
      %p102 = pneg %p96
      %p103 = scmp.eq.s32.totalorder %s12, 1
      %p104 = por %p102, %p103
      %p105 = scmp.ne.s32.totalorder %s97, %s100
      %p106 = scmp.eq.s32.totalorder %s12, 0
      %p107 = por %p105, %p106
      %p108 = scmp.ne.s32.totalorder %s97, %s100
      %p109 = scmp.eq.s32.totalorder %s17, 1
      %p110 = por %p108, %p109
      %p111 = scmp.ne.s32.totalorder %s100, %s101
      %p112 = scmp.eq.s32.totalorder %s17, 0
      %p113 = por %p111, %p112
      %p114 = scmp.ne.s32.totalorder %s100, %s101
      %p115 = scmp.eq.s32.totalorder %s18, 1
      %p116 = por %p114, %p115
      %p118 = scmp.ne.s32.totalorder %s101, %s117
      %p119 = scmp.eq.s32.totalorder %s18, 0
      %p120 = por %p118, %p119
      %s121 = ssub.s32 %s19, %s38
      %s122 = ssub.s32 %s20, %s34
      %s123 = sor.u32 %s121, %s122
      %p124 = scmp.eq.s32.totalorder %s123, 0
      %s126 = sadd.s32 %s125, 1
      %s127 = scalar_select %p124, %s125, %s126
      %p130 = pneg %p124
      %p131 = scmp.eq.s32.totalorder %s12, 1
      %p132 = por %p130, %p131
      %p133 = scmp.ne.s32.totalorder %s125, %s128
      %p134 = scmp.eq.s32.totalorder %s12, 0
      %p135 = por %p133, %p134
      %p136 = scmp.ne.s32.totalorder %s125, %s128
      %p137 = scmp.eq.s32.totalorder %s17, 1
      %p138 = por %p136, %p137
      %p139 = scmp.ne.s32.totalorder %s128, %s129
      %p140 = scmp.eq.s32.totalorder %s17, 0
      %p141 = por %p139, %p140
      %p142 = scmp.ne.s32.totalorder %s128, %s129
      %p143 = scmp.eq.s32.totalorder %s18, 1
      %p144 = por %p142, %p143
      %p146 = scmp.ne.s32.totalorder %s129, %s145
      %p147 = scmp.eq.s32.totalorder %s18, 0
      %p148 = por %p146, %p147
      %p149 = scmp.le.s32.totalorder 1, %s12
      %p150 = scmp.lt.s32.totalorder %s12, 3
      %p151 = pnand %p149, %p150
      %p152 = pneg %p151
      // Predicated region
      $region9: #{transformer_classifier.83} parent=5 // pred_check
        _
      $region10: #{transformer_classifier.83} parent=5 // pred_check_branch
        %154 = sbr.rel (%p151) target = $region12
      $region11: #{transformer_classifier.83} parent=5 // pred_region
        %s155 = ssub.s32 %s12, 1
        // Predicated region
        $region13: #{transformer_classifier.83} parent=11 // pred_check
          %p156 = pneg %p113
        $region14: #{transformer_classifier.83} parent=11 // pred_check_branch
          %158 = sbr.rel (%p156) target = $region16
        $region15: #{transformer_classifier.83} parent=11 // pred_region
          %p159 = scmp.lt.s32.totalorder %s23, 0
          %s160 = scalar_select %p159, %s23, 0
          %s161 = scalar_lea.vmem %s2, %s160
        $region16: #{transformer_classifier.83} parent=11 // pred_fallthru
          _
      $region12: #{transformer_classifier.83} parent=5 // pred_fallthru
        _
      %p162 = scmp.lt.s32.totalorder %s12, 2
      // Predicated region
      $region17: #{transformer_classifier.83} parent=5 // pred_check
        %p163 = pneg %p162
      $region18: #{transformer_classifier.83} parent=5 // pred_check_branch
        %165 = sbr.rel (%p163) target = $region20
      $region19: #{transformer_classifier.83} parent=5 // pred_region
        // Predicated region
        $region21: #{transformer_classifier.83} parent=19 // pred_check
          %p166 = pneg %p53
        $region22: #{transformer_classifier.83} parent=19 // pred_check_branch
          %168 = sbr.rel (%p166) target = $region24
        $region23: #{transformer_classifier.83} parent=19 // pred_region
          %s169 = sand.u32 %s43, 1
          %s170 = sand.u32 %s43, 1
          %s171 = smul.addr %s170, 16
          %s172 = scalar_lea.vmem [#allocation3], %s171
          %s173 = smul.u32 2, %s19
          %s174 = smul.addr %s173, 2
          %s175 = sadd.s32 %s21, %s174
          %s176 = smul.addr %s175, 8
          %s177 = scalar_lea.vmem %s0, %s176
          // Predicated region
          $region25: #{transformer_classifier.83} parent=23 // pred_check
            _
          $region26: #{transformer_classifier.83} parent=23 // pred_check_branch
            %179 = sbr.rel (0) target = $region28
          $region27: #{transformer_classifier.83} parent=23 // pred_region
            // Predicated region
            $region29: #{transformer_classifier.83} parent=27 // pred_check
              _
            $region30: #{transformer_classifier.83} parent=27 // pred_check_branch
              %181 = sbr.rel (0) target = $region32
            $region31: #{transformer_classifier.83} parent=27 // pred_region
              // Predicated region
              $region44: #{transformer_classifier.83} parent=31 // pred_check
                _
              $region45: #{transformer_classifier.83} parent=31 // pred_check_branch
                %199 = sbr.rel (0) target = $region47
              $region46: #{transformer_classifier.83} parent=31 // pred_region
                loop: start=0, step=1, limit=1
                $region48: #{transformer_classifier.83} parent=46 // loop_pre_header
                  _
                $region49: #{transformer_classifier.83} parent=46 // loop_header
                  %s201 = sphi 0, %s205
                  %p202 = scmp.ge.s32.totalorder %s201, 1
                  %s206 = sphi %s177, %s177
                  %s207 = sphi %s172, %s172
                $region50: #{transformer_classifier.83} parent=46 // loop_header_branch
                  %204 = sbr.rel (%p202) target = $region54
                $region51: #{transformer_classifier.83} parent=46 // loop_body
                  %v208 = vld [vmem:[%s206] sm:$0xff]
                  %209 = vst [vmem:[%s207] sm:$0xff] %v208
                  %v210 = vld [vmem:[%s206 + $0x10] sm:$0xff]
                  %211 = vst [vmem:[%s207 + $0x8] sm:$0xff] %v210
                $region52: #{transformer_classifier.83} parent=46 // loop_footer
                  %s205 = sadd.s32 1, %s201
                $region53: #{transformer_classifier.83} parent=46 // loop_footer_branch
                  %200 = sbr.rel target = $region49
                $region54: #{transformer_classifier.83} parent=46 // loop_exit
                  _
              $region47: #{transformer_classifier.83} parent=31 // pred_fallthru
                _
              // Predicated region
              $region55: #{transformer_classifier.83} parent=31 // pred_check
                _
              $region56: #{transformer_classifier.83} parent=31 // pred_check_branch
                %213 = sbr.rel target = $region58
              $region57: #{transformer_classifier.83} parent=31 // pred_region
                _
              $region58: #{transformer_classifier.83} parent=31 // pred_fallthru
                _
            $region32: #{transformer_classifier.83} parent=27 // pred_fallthru
              _
            // Predicated region
            $region33: #{transformer_classifier.83} parent=27 // pred_check
              _
            $region34: #{transformer_classifier.83} parent=27 // pred_check_branch
              %183 = sbr.rel target = $region36
            $region35: #{transformer_classifier.83} parent=27 // pred_region
              %s185 = ssub.s32 256, 1
              loop: start=0, step=1, limit=1
              $region37: #{transformer_classifier.83} parent=35 // loop_pre_header
                _
              $region38: #{transformer_classifier.83} parent=35 // loop_header
                %s187 = sphi 0, %s191
                %p188 = scmp.ge.s32.totalorder %s187, 1
                %s192 = sphi %s177, %s177
                %s193 = sphi %s172, %s172
              $region39: #{transformer_classifier.83} parent=35 // loop_header_branch
                %190 = sbr.rel (%p188) target = $region43
              $region40: #{transformer_classifier.83} parent=35 // loop_body
                %v194 = vld [vmem:[%s192] sm:%s185]
                %195 = vst [vmem:[%s193] sm:%s185] %v194
                %v196 = vld [vmem:[%s192 + $0x10] sm:%s185]
                %197 = vst [vmem:[%s193 + $0x8] sm:%s185] %v196
              $region41: #{transformer_classifier.83} parent=35 // loop_footer
                %s191 = sadd.s32 1, %s187
              $region42: #{transformer_classifier.83} parent=35 // loop_footer_branch
                %186 = sbr.rel target = $region38
              $region43: #{transformer_classifier.83} parent=35 // loop_exit
                _
            $region36: #{transformer_classifier.83} parent=27 // pred_fallthru
              _
          $region28: #{transformer_classifier.83} parent=23 // pred_fallthru
            _
          %214 = vnop
        $region24: #{transformer_classifier.83} parent=19 // pred_fallthru
          _
        // Predicated region
        $region59: #{transformer_classifier.83} parent=19 // pred_check
          %p215 = pneg %p81
        $region60: #{transformer_classifier.83} parent=19 // pred_check_branch
          %217 = sbr.rel (%p215) target = $region62
        $region61: #{transformer_classifier.83} parent=19 // pred_region
          %s218 = sand.u32 %s71, 1
          %s219 = scalar_lea.sflag [#allocation5], %s218
          %s220 = sand.u32 %s71, 1
          %s221 = smul.addr %s220, 64
          %s222 = scalar_lea.vmem [#allocation4], %s221
          %s223 = smul.u32 16, %s21
          %225 = vsyncadd %s219, 0
          %s226 = sadd.s32 %s20, %s223
          %s227 = smul.addr %s226, 4
          %s228 = scalar_lea.hbm %s1, %s227
          %s229 = sshll.u32 %s228, 4
          %s230 = int_to_ptr.hbm [resolvable:$true] %s229
          %s231 = sshll.u32 %s222, 4
          %s232 = int_to_ptr.vmem [resolvable:$true] %s231
          %237 = dma.hbm_to_vmem [thread:$0]  %s230, 1024, %s232, %s219, 64, 64, 4
        $region62: #{transformer_classifier.83} parent=19 // pred_fallthru
          _
      $region20: #{transformer_classifier.83} parent=5 // pred_fallthru
        _
      %p238 = scmp.le.s32.totalorder 1, %s12
      %p239 = scmp.lt.s32.totalorder %s12, 3
      %p240 = pnand %p238, %p239
      %p241 = pneg %p240
      // Predicated region
      $region63: #{transformer_classifier.83} parent=5 // pred_check
        _
      $region64: #{transformer_classifier.83} parent=5 // pred_check_branch
        %243 = sbr.rel (%p240) target = $region66
      $region65: #{transformer_classifier.83} parent=5 // pred_region
        %s244 = ssub.s32 %s12, 1
        %s245 = sand.u32 %s46, 1
        %s246 = sand.u32 %s46, 1
        %s247 = smul.addr %s246, 16
        %s248 = scalar_lea.vmem [#allocation3], %s247
        // Predicated region
        $region67: #{transformer_classifier.83} parent=65 // pred_check
          %p249 = pneg %p59
        $region68: #{transformer_classifier.83} parent=65 // pred_check_branch
          %251 = sbr.rel (%p249) target = $region70
        $region69: #{transformer_classifier.83} parent=65 // pred_region
          _
        $region70: #{transformer_classifier.83} parent=65 // pred_fallthru
          _
        %s252 = sand.u32 %s74, 1
        %s253 = scalar_lea.sflag [#allocation5], %s252
        %s254 = sand.u32 %s74, 1
        %s255 = smul.addr %s254, 64
        %s256 = scalar_lea.vmem [#allocation4], %s255
        // Predicated region
        $region71: #{transformer_classifier.83} parent=65 // pred_check
          %p257 = pneg %p87
        $region72: #{transformer_classifier.83} parent=65 // pred_check_branch
          %259 = sbr.rel (%p257) target = $region74
        $region73: #{transformer_classifier.83} parent=65 // pred_region
          %261 = dma.done %s253, 1024
        $region74: #{transformer_classifier.83} parent=65 // pred_fallthru
          _
        %s262 = sand.u32 %s46, 1
        %s263 = sand.u32 %s46, 1
        %s264 = smul.addr %s263, 16
        %s265 = scalar_lea.vmem [#allocation3], %s264
        %p266 = pneg %p59
        %p267 = pneg %p56
        %s268 = sand.u32 %s74, 1
        %s269 = scalar_lea.sflag [#allocation5], %s268
        %s270 = sand.u32 %s74, 1
        %s271 = smul.addr %s270, 64
        %s272 = scalar_lea.vmem [#allocation4], %s271
        %p273 = pneg %p87
        %p274 = pneg %p84
        %p275 = scmp.lt.s32.totalorder %s23, 0
        %s276 = scalar_select %p275, %s23, 0
        %s277 = scalar_lea.vmem %s2, %s276
        %p278 = pneg %p113
        %p279 = pneg %p110
        %p280 = pneg %p141
        %p281 = pneg %p138
        %s282 = smul.u32 2, %s22
        %p283 = scmp.lt.s32.totalorder %s282, 1
        %s284 = scalar_select %p283, %s282, 1
        %p285 = scmp.lt.s32.totalorder %s23, 0
        %s286 = scalar_select %p285, %s23, 0
        %s287 = sadd.s32 %s286, %s284
        %s288 = smul.addr %s287, 8
        %s289 = scalar_lea.vmem %s3, %s288
        %s290 = smul.u32 2, %s22
        %s291 = smul.u32 16, %s24
        %p292 = scmp.lt.s32.totalorder %s23, 0
        %s293 = scalar_select %p292, %s23, 0
        %s294 = scalar_lea.vmem %s2, %s293
        %s295 = smul.u32 2, %s22
        %p296 = scmp.lt.s32.totalorder %s295, 1
        %s297 = scalar_select %p296, %s295, 1
        %p298 = scmp.lt.s32.totalorder %s23, 0
        %s299 = scalar_select %p298, %s23, 0
        %s300 = sadd.s32 %s299, %s297
        %s301 = smul.addr %s300, 8
        %s302 = scalar_lea.vmem %s3, %s301
        %s303 = smul.u32 2, %s22
        %p304 = scmp.eq.s32.totalorder %s24, 0
        // Predicated region
        $region75: #{transformer_classifier.83} parent=65 // pred_check
          %p305 = pneg %p304
        $region76: #{transformer_classifier.83} parent=65 // pred_check_branch
          %307 = sbr.rel (%p305) target = $region78
        $region77: #{transformer_classifier.83} parent=65 // pred_region
          %308 = vst [vmem:[#allocation2] sm:$0xff] 0.0
          %309 = vst [vmem:[#allocation2 + $0x8] sm:$0xff] 0.0
        $region78: #{transformer_classifier.83} parent=65 // pred_fallthru
          _
        %v310 = vld [vmem:[#allocation2] sm:$0xff]
        %v311 = vld [vmem:[#allocation2 + $0x8] sm:$0xff]
        %v312 = vld [vmem:[%s248] sm:$0xff]
        %v313 = vld [vmem:[%s248 + $0x8] sm:$0xff]
        %v314 = vpack.c.bf16 %v313, %v312
        %v315 = vld [vmem:[%s256] sm:$0xf]
        %v316 = vld [vmem:[%s256 + $0x4] sm:$0xf]
        %v317 = vld [vmem:[%s256 + $0x8] sm:$0xf]
        %v318 = vld [vmem:[%s256 + $0xc] sm:$0xf]
        %v319 = vld [vmem:[%s256 + $0x10] sm:$0xf]
        %v320 = vld [vmem:[%s256 + $0x14] sm:$0xf]
        %v321 = vld [vmem:[%s256 + $0x18] sm:$0xf]
        %v322 = vld [vmem:[%s256 + $0x1c] sm:$0xf]
        %v323 = vld [vmem:[%s256 + $0x20] sm:$0xf]
        %v324 = vld [vmem:[%s256 + $0x24] sm:$0xf]
        %v325 = vld [vmem:[%s256 + $0x28] sm:$0xf]
        %v326 = vld [vmem:[%s256 + $0x2c] sm:$0xf]
        %v327 = vld [vmem:[%s256 + $0x30] sm:$0xf]
        %v328 = vld [vmem:[%s256 + $0x34] sm:$0xf]
        %v329 = vld [vmem:[%s256 + $0x38] sm:$0xf]
        %v330 = vld [vmem:[%s256 + $0x3c] sm:$0xf]
        %v347 = vunpack.c.l.b16 %v315
        %v348 = vunpack.c.l.b16 %v316
        %v349 = vunpack.c.l.b16 %v317
        %v350 = vunpack.c.l.b16 %v318
        %v351 = vunpack.c.l.b16 %v319
        %v352 = vunpack.c.l.b16 %v320
        %v353 = vunpack.c.l.b16 %v321
        %v354 = vunpack.c.l.b16 %v322
        %v355 = vunpack.c.l.b16 %v323
        %v356 = vunpack.c.l.b16 %v324
        %v357 = vunpack.c.l.b16 %v325
        %v358 = vunpack.c.l.b16 %v326
        %v359 = vunpack.c.l.b16 %v327
        %v360 = vunpack.c.l.b16 %v328
        %v361 = vunpack.c.l.b16 %v329
        %v362 = vunpack.c.l.b16 %v330
        %v363 = vpack.c.b16 %v348, %v347
        %v364 = vpack.c.b16 %v350, %v349
        %v365 = vpack.c.b16 %v352, %v351
        %v366 = vpack.c.b16 %v354, %v353
        %v367 = vpack.c.b16 %v356, %v355
        %v368 = vpack.c.b16 %v358, %v357
        %v369 = vpack.c.b16 %v360, %v359
        %v370 = vpack.c.b16 %v362, %v361
        %379 = vmatpush.bf16.msra.mxu0 %v370
        %380 = vmatpush.bf16.msra.mxu0 %v369
        %381 = vmatpush.bf16.msra.mxu0 %v368
        %382 = vmatpush.bf16.msra.mxu0 %v367
        %383 = vmatpush.bf16.msra.mxu0 %v366
        %384 = vmatpush.bf16.msra.mxu0 %v365
        %385 = vmatpush.bf16.msra.mxu0 %v364
        %386 = vmatpush.bf16.msra.mxu0 %v363
        %387 = vmatmul.bf16.gmra.mxu0 %v314
        %v388 = vpop.f32.mrf.mxu0
        %v389 = vadd.f32 0.0, %v388
        %v390 = vpop.f32.mrf.mxu0
        %v391 = vadd.f32 0.0, %v390
        %392 = vdwg.mxu0
        %v393 = vadd.f32 %v310, %v389
        %v394 = vadd.f32 %v311, %v391
        %395 = vst [vmem:[#allocation2] sm:$0xff] %v393
        %396 = vst [vmem:[#allocation2 + $0x8] sm:$0xff] %v394
        %p397 = scmp.eq.s32.totalorder %s24, 1
        // Predicated region
        $region79: #{transformer_classifier.83} parent=65 // pred_check
          %p398 = pneg %p397
        $region80: #{transformer_classifier.83} parent=65 // pred_check_branch
          %400 = sbr.rel (%p398) target = $region82
        $region81: #{transformer_classifier.83} parent=65 // pred_region
          %v401 = vld [vmem:[#allocation2] sm:$0xff]
          %v402 = vld [vmem:[#allocation2 + $0x8] sm:$0xff]
          %v403 = vld [vmem:[%s294] sm:$0x1]
          %v405 = vperm.slane %v403, 0
          %v407 = vadd.f32 %v401, %v405
          %v408 = vadd.f32 %v402, %v405
          %v409 = vmax.f32 %v407, 0.0
          %v410 = vmax.f32 %v408, 0.0
          %411 = vst [vmem:[%s302] sm:$0xff] %v409
          %412 = vst [vmem:[%s302 + $0x8] sm:$0xff] %v410
        $region82: #{transformer_classifier.83} parent=65 // pred_fallthru
          _
        %s413 = smul.u32 2, %s22
        %p414 = scmp.lt.s32.totalorder %s413, 1
        %s415 = scalar_select %p414, %s413, 1
        %p416 = scmp.lt.s32.totalorder %s23, 0
        %s417 = scalar_select %p416, %s23, 0
        %s418 = sadd.s32 %s417, %s415
        %s419 = smul.addr %s418, 8
        %s420 = scalar_lea.vmem %s3, %s419
        // Predicated region
        $region83: #{transformer_classifier.83} parent=65 // pred_check
          %p421 = pneg %p138
        $region84: #{transformer_classifier.83} parent=65 // pred_check_branch
          %423 = sbr.rel (%p421) target = $region86
        $region85: #{transformer_classifier.83} parent=65 // pred_region
          %s424 = smul.u32 2, %s22
        $region86: #{transformer_classifier.83} parent=65 // pred_fallthru
          _
        // Predicated region
        $region87: #{transformer_classifier.83} parent=65 // pred_check
          %p425 = pneg %p138
        $region88: #{transformer_classifier.83} parent=65 // pred_check_branch
          %427 = sbr.rel (%p425) target = $region90
        $region89: #{transformer_classifier.83} parent=65 // pred_region
          %s428 = smul.u32 2, %s22
          %p429 = scmp.lt.s32.totalorder %s428, 1
          %s430 = scalar_select %p429, %s428, 1
          %p431 = scmp.lt.s32.totalorder %s23, 0
          %s432 = scalar_select %p431, %s23, 0
          %s433 = sadd.s32 %s432, %s430
          %s434 = smul.addr %s433, 8
          %s435 = scalar_lea.vmem %s3, %s434
        $region90: #{transformer_classifier.83} parent=65 // pred_fallthru
          _
      $region66: #{transformer_classifier.83} parent=5 // pred_fallthru
        _
      %p436 = scmp.le.s32.totalorder 2, %s12
      // Predicated region
      $region91: #{transformer_classifier.83} parent=5 // pred_check
        %p437 = pneg %p436
      $region92: #{transformer_classifier.83} parent=5 // pred_check_branch
        %439 = sbr.rel (%p437) target = $region94
      $region93: #{transformer_classifier.83} parent=5 // pred_region
        %s440 = ssub.s32 %s12, 2
      $region94: #{transformer_classifier.83} parent=5 // pred_fallthru
        _
    $region6: #{transformer_classifier.83} parent=1 // loop_footer
      %s16 = sadd.s32 1, %s12
    $region7: #{transformer_classifier.83} parent=1 // loop_footer_branch
      %11 = sbr.rel target = $region3
    $region8: #{transformer_classifier.83} parent=1 // loop_exit
      _
    %441 = vsyncpa [#allocation5], 1
    %s442 = scalar_lea.sflag [#allocation5], 1
    %443 = vsyncpa %s442, 1

// kernel: transformer_classifier.84
$region0: #{transformer_classifier.84}
  #allocation0 [shape = 'u32[]', space=smem, size = 0x4, offset = 0x4, fixed_abs, tag = 'smem constant byte address 0x4 - core index']
  #allocation1 [shape = 'u32[72,128]{1,0:T(1,128)}', space=vmem, size = 0x9000, scoped, tag = 'internal scratch']
  #allocation2 [shape = 'f32[16,64]{1,0:T(8,128)}', space=vmem, size = 0x2000, scoped, tag = 'scratch operand']
  %s0 = inlined_call_operand.vmem [shape: f32[16,128], index: 0, kind: input, shape index: {}]
  %s1 = inlined_call_operand.vmem [shape: bf16[128,64], index: 1, kind: input, shape index: {}]
  %s2 = inlined_call_operand.vmem [shape: f32[1,64], index: 2, kind: input, shape index: {}]
  %s3 = inlined_call_operand.vmem [shape: f32[16,64], index: 3, kind: output, shape index: {}]
  %s4 = sld [smem:[#allocation0]]
  $region30: #{transformer_classifier.84} parent=0
    _
  %s6 = ssub.s32 1, %s4
  %s7 = scalar_select 0, %s6, %s4
  // Predicated region
  $region2: #{transformer_classifier.84} parent=0 // pred_check
    _
  $region3: #{transformer_classifier.84} parent=0 // pred_check_branch
    %9 = sbr.rel (0) target = $region5
  $region4: #{transformer_classifier.84} parent=0 // pred_region
    _
  $region5: #{transformer_classifier.84} parent=0 // pred_fallthru
    _
  // Predicated region
  $region6: #{transformer_classifier.84} parent=0 // pred_check
    _
  $region7: #{transformer_classifier.84} parent=0 // pred_check_branch
    %11 = sbr.rel (0) target = $region9
  $region8: #{transformer_classifier.84} parent=0 // pred_region
    _
  $region9: #{transformer_classifier.84} parent=0 // pred_fallthru
    _
  // Predicated region
  $region10: #{transformer_classifier.84} parent=0 // pred_check
    _
  $region11: #{transformer_classifier.84} parent=0 // pred_check_branch
    %13 = sbr.rel (0) target = $region13
  $region12: #{transformer_classifier.84} parent=0 // pred_region
    _
  $region13: #{transformer_classifier.84} parent=0 // pred_fallthru
    _
  %p14 = scmp.eq.s32.totalorder 0, 0
  // Predicated region
  $region14: #{transformer_classifier.84} parent=0 // pred_check
    %p15 = pneg %p14
  $region15: #{transformer_classifier.84} parent=0 // pred_check_branch
    %17 = sbr.rel (%p15) target = $region17
  $region16: #{transformer_classifier.84} parent=0 // pred_region
    %vm18 = vcmask 523264
    %19 = vst.msk [vmem:[#allocation2] sm:$0xff] %vm18, 0.0
    %20 = vst.msk [vmem:[#allocation2 + $0x8] sm:$0xff] %vm18, 0.0
  $region17: #{transformer_classifier.84} parent=0 // pred_fallthru
    _
  %v21 = vld [vmem:[#allocation2] sm:$0xff]
  %v22 = vld [vmem:[#allocation2 + $0x8] sm:$0xff]
  %v23 = vld [vmem:[%s0] sm:$0xff]
  %v24 = vld [vmem:[%s0 + $0x8] sm:$0xff]
  %v25 = vpack.c.bf16 %v24, %v23
  %v26 = vld [vmem:[%s1] sm:$0xf]
  %v27 = vld [vmem:[%s1 + $0x4] sm:$0xf]
  %v28 = vld [vmem:[%s1 + $0x8] sm:$0xf]
  %v29 = vld [vmem:[%s1 + $0xc] sm:$0xf]
  %v30 = vld [vmem:[%s1 + $0x10] sm:$0xf]
  %v31 = vld [vmem:[%s1 + $0x14] sm:$0xf]
  %v32 = vld [vmem:[%s1 + $0x18] sm:$0xf]
  %v33 = vld [vmem:[%s1 + $0x1c] sm:$0xf]
  %v34 = vld [vmem:[%s1 + $0x20] sm:$0xf]
  %v35 = vld [vmem:[%s1 + $0x24] sm:$0xf]
  %v36 = vld [vmem:[%s1 + $0x28] sm:$0xf]
  %v37 = vld [vmem:[%s1 + $0x2c] sm:$0xf]
  %v38 = vld [vmem:[%s1 + $0x30] sm:$0xf]
  %v39 = vld [vmem:[%s1 + $0x34] sm:$0xf]
  %v40 = vld [vmem:[%s1 + $0x38] sm:$0xf]
  %v41 = vld [vmem:[%s1 + $0x3c] sm:$0xf]
  %v58 = vunpack.c.l.b16 %v26
  %v59 = vunpack.c.l.b16 %v27
  %v60 = vunpack.c.l.b16 %v28
  %v61 = vunpack.c.l.b16 %v29
  %v62 = vunpack.c.l.b16 %v30
  %v63 = vunpack.c.l.b16 %v31
  %v64 = vunpack.c.l.b16 %v32
  %v65 = vunpack.c.l.b16 %v33
  %v66 = vunpack.c.l.b16 %v34
  %v67 = vunpack.c.l.b16 %v35
  %v68 = vunpack.c.l.b16 %v36
  %v69 = vunpack.c.l.b16 %v37
  %v70 = vunpack.c.l.b16 %v38
  %v71 = vunpack.c.l.b16 %v39
  %v72 = vunpack.c.l.b16 %v40
  %v73 = vunpack.c.l.b16 %v41
  %v74 = vpack.c.b16 %v59, %v58
  %v75 = vpack.c.b16 %v61, %v60
  %v76 = vpack.c.b16 %v63, %v62
  %v77 = vpack.c.b16 %v65, %v64
  %v78 = vpack.c.b16 %v67, %v66
  %v79 = vpack.c.b16 %v69, %v68
  %v80 = vpack.c.b16 %v71, %v70
  %v81 = vpack.c.b16 %v73, %v72
  %90 = vmatpush.bf16.msra.mxu0 %v81
  %91 = vmatpush.bf16.msra.mxu0 %v80
  %92 = vmatpush.bf16.msra.mxu0 %v79
  %93 = vmatpush.bf16.msra.mxu0 %v78
  %94 = vmatpush.bf16.msra.mxu0 %v77
  %95 = vmatpush.bf16.msra.mxu0 %v76
  %96 = vmatpush.bf16.msra.mxu0 %v75
  %97 = vmatpush.bf16.msra.mxu0 %v74
  %98 = vmatmul.bf16.gmra.mxu0 %v25
  %v99 = vpop.f32.mrf.mxu0
  %v100 = vadd.f32 0.0, %v99
  %v101 = vpop.f32.mrf.mxu0
  %v102 = vadd.f32 0.0, %v101
  %103 = vdwg.mxu0
  %v104 = vadd.f32 %v21, %v100
  %v105 = vadd.f32 %v22, %v102
  %vm106 = vcmask 523264
  %107 = vst.msk [vmem:[#allocation2] sm:$0xff] %vm106, %v104
  %108 = vst.msk [vmem:[#allocation2 + $0x8] sm:$0xff] %vm106, %v105
  // Predicated region
  $region18: #{transformer_classifier.84} parent=0 // pred_check
    %p109 = pneg %p14
  $region19: #{transformer_classifier.84} parent=0 // pred_check_branch
    %111 = sbr.rel (%p109) target = $region21
  $region20: #{transformer_classifier.84} parent=0 // pred_region
    %v112 = vld [vmem:[#allocation2] sm:$0xff]
    %v113 = vld [vmem:[#allocation2 + $0x8] sm:$0xff]
    %v114 = vld [vmem:[%s2] sm:$0x1]
    %v116 = vperm.slane %v114, 0
    %v118 = vadd.f32 %v112, %v116
    %v119 = vadd.f32 %v113, %v116
    %v120 = vmax.f32 %v118, 0.0
    %v121 = vmax.f32 %v119, 0.0
    %122 = vst.msk [vmem:[%s3] sm:$0xff] %vm106, %v120
    %123 = vst.msk [vmem:[%s3 + $0x8] sm:$0xff] %vm106, %v121
  $region21: #{transformer_classifier.84} parent=0 // pred_fallthru
    _
  // Predicated region
  $region22: #{transformer_classifier.84} parent=0 // pred_check
    _
  $region23: #{transformer_classifier.84} parent=0 // pred_check_branch
    %125 = sbr.rel (0) target = $region25
  $region24: #{transformer_classifier.84} parent=0 // pred_region
    _
  $region25: #{transformer_classifier.84} parent=0 // pred_fallthru
    _
  // Predicated region
  $region26: #{transformer_classifier.84} parent=0 // pred_check
    _
  $region27: #{transformer_classifier.84} parent=0 // pred_check_branch
    %127 = sbr.rel (0) target = $region29
  $region28: #{transformer_classifier.84} parent=0 // pred_region
    _
  $region29: #{transformer_classifier.84} parent=0 // pred_fallthru
    _

// kernel: transformer_classifier.85
$region0: #{transformer_classifier.85}
  #allocation0 [shape = 'u32[]', space=smem, size = 0x4, offset = 0x4, fixed_abs, tag = 'smem constant byte address 0x4 - core index']
  #allocation1 [shape = 'u32[72,128]{1,0:T(1,128)}', space=vmem, size = 0x9000, scoped, tag = 'internal scratch']
  %s0 = inlined_call_operand.vmem [shape: f32[16,64], index: 0, kind: input, shape index: {}]
  %s1 = inlined_call_operand.vmem [shape: bf16[64,5], index: 1, kind: input, shape index: {}]
  %s2 = inlined_call_operand.vmem [shape: f32[1,5], index: 2, kind: input, shape index: {}]
  %s3 = inlined_call_operand.vmem [shape: f32[16,5], index: 3, kind: output, shape index: {}]
  %s4 = sld [smem:[#allocation0]]
  $region22: #{transformer_classifier.85} parent=0
    _
  %s6 = ssub.s32 1, %s4
  %s7 = scalar_select 0, %s6, %s4
  // Predicated region
  $region2: #{transformer_classifier.85} parent=0 // pred_check
    _
  $region3: #{transformer_classifier.85} parent=0 // pred_check_branch
    %9 = sbr.rel (0) target = $region5
  $region4: #{transformer_classifier.85} parent=0 // pred_region
    _
  $region5: #{transformer_classifier.85} parent=0 // pred_fallthru
    _
  // Predicated region
  $region6: #{transformer_classifier.85} parent=0 // pred_check
    _
  $region7: #{transformer_classifier.85} parent=0 // pred_check_branch
    %11 = sbr.rel (0) target = $region9
  $region8: #{transformer_classifier.85} parent=0 // pred_region
    _
  $region9: #{transformer_classifier.85} parent=0 // pred_fallthru
    _
  // Predicated region
  $region10: #{transformer_classifier.85} parent=0 // pred_check
    _
  $region11: #{transformer_classifier.85} parent=0 // pred_check_branch
    %13 = sbr.rel (0) target = $region13
  $region12: #{transformer_classifier.85} parent=0 // pred_region
    _
  $region13: #{transformer_classifier.85} parent=0 // pred_fallthru
    _
  %v15 = vld [vmem:[%s0] sm:$0xff]
  %v16 = vld [vmem:[%s0 + $0x8] sm:$0xff]
  %v17 = vpack.c.bf16 %v16, %v15
  %v18 = vld [vmem:[%s1] sm:$0xf]
  %v19 = vld [vmem:[%s1 + $0x4] sm:$0xf]
  %v20 = vld [vmem:[%s1 + $0x8] sm:$0xf]
  %v21 = vld [vmem:[%s1 + $0xc] sm:$0xf]
  %v22 = vld [vmem:[%s1 + $0x10] sm:$0xf]
  %v23 = vld [vmem:[%s1 + $0x14] sm:$0xf]
  %v24 = vld [vmem:[%s1 + $0x18] sm:$0xf]
  %v25 = vld [vmem:[%s1 + $0x1c] sm:$0xf]
  %v26 = vld [vmem:[%s2] sm:$0x1]
  %v28 = vperm.slane %v26, 0
  %v38 = vunpack.c.l.b16 %v18
  %v39 = vunpack.c.l.b16 %v19
  %v40 = vunpack.c.l.b16 %v20
  %v41 = vunpack.c.l.b16 %v21
  %v42 = vunpack.c.l.b16 %v22
  %v43 = vunpack.c.l.b16 %v23
  %v44 = vunpack.c.l.b16 %v24
  %v45 = vunpack.c.l.b16 %v25
  %v46 = vpack.c.b16 %v39, %v38
  %v47 = vpack.c.b16 %v41, %v40
  %v48 = vpack.c.b16 %v43, %v42
  %v49 = vpack.c.b16 %v45, %v44
  %vm54 = vcmask 523264
  %v56 = vsel %vm54, %v17, 0
  %58 = vmatpush.bf16.msra.mxu0 0
  %59 = vmatpush.bf16.msra.mxu0 0
  %60 = vmatpush.bf16.msra.mxu0 0
  %61 = vmatpush.bf16.msra.mxu0 0
  %62 = vmatpush.bf16.msra.mxu0 %v49
  %63 = vmatpush.bf16.msra.mxu0 %v48
  %64 = vmatpush.bf16.msra.mxu0 %v47
  %65 = vmatpush.bf16.msra.mxu0 %v46
  %66 = vmatmul.bf16.gmra.mxu0 %v56
  %v67 = vpop.f32.mrf.mxu0
  %v68 = vadd.f32 %v28, %v67
  %v69 = vpop.f32.mrf.mxu0
  %v70 = vadd.f32 %v28, %v69
  %71 = vdwg.mxu0
  %vm72 = vcmask 39936
  %v73 = vsel %vm72, %v68, -inf
  %74 = vmax.xlane.f32.xlu0 %v73
  %v75 = vpop.xlane.xlu0 %74
  %v76 = vsel %vm72, %v70, -inf
  %77 = vmax.xlane.f32.xlu0 %v76
  %v78 = vpop.xlane.xlu0 %77
  %v79 = vsub.f32 %v68, %v75
  %v80 = vsub.f32 %v70, %v78
  %v81 = vmul.f32 %v79, 1.442695
  %v82 = vpow.pop %v81
  %v83 = vmul.f32 %v80, 1.442695
  %v84 = vpow.pop %v83
  %v85 = vsel %vm72, %v82, 0.0
  %86 = vadd.xlane.f32.xlu0 %v85
  %v87 = vpop.xlane.xlu0 %86
  %v88 = vsel %vm72, %v84, 0.0
  %89 = vadd.xlane.f32.xlu0 %v88
  %v90 = vpop.xlane.xlu0 %89
  %v91 = vlog2.pop %v87
  %v92 = vmul.f32 %v91, 0.6931472
  %v93 = vlog2.pop %v90
  %v94 = vmul.f32 %v93, 0.6931472
  %v95 = vsub.f32 %v79, %v92
  %v96 = vsub.f32 %v80, %v94
  %97 = vst.msk [vmem:[%s3] sm:$0xff] %vm72, %v95
  %98 = vst.msk [vmem:[%s3 + $0x8] sm:$0xff] %vm72, %v96
  // Predicated region
  $region14: #{transformer_classifier.85} parent=0 // pred_check
    _
  $region15: #{transformer_classifier.85} parent=0 // pred_check_branch
    %100 = sbr.rel (0) target = $region17
  $region16: #{transformer_classifier.85} parent=0 // pred_region
    _
  $region17: #{transformer_classifier.85} parent=0 // pred_fallthru
    _
  // Predicated region
  $region18: #{transformer_classifier.85} parent=0 // pred_check
    _
  $region19: #{transformer_classifier.85} parent=0 // pred_check_branch
    %102 = sbr.rel (0) target = $region21
  $region20: #{transformer_classifier.85} parent=0 // pred_region
    _
  $region21: #{transformer_classifier.85} parent=0 // pred_fallthru
    _

</llo_original>
